<compile_context>
chip_gen: v7x
topology: tpu7x:2x2x1
jax: 0.10.0
libtpu: 0.0.40
codegen_flags: <defaults>
</compile_context>

<pallas_src>
import functools

import jax
import jax.numpy as jnp
from jax.experimental import pallas as pl
from jax.experimental.pallas import tpu as pltpu

FEAT_DIM = 2048      # backbone output channels
BOTTLENECK = 512     # ClassBlock num_bottleneck
PARTS = 4            # CPB self.part
BN_EPS = 1e-5        # PyTorch BatchNorm1d default eps
P_PAD = 8            # parts padded to a full sublane group for the pooling matmul
LANE = 128


def _round_up(n, m):
    return (n + m - 1) // m * m


def _pick_tb(batch, block_b, min_steps=4):
    """Largest divisor of `batch` that is <= block_b and still yields at least
    min(min_steps, batch) grid steps.  Divisor => no batch padding (no extra HBM pass);
    >= min_steps => the 'parallel' batch axis pipelines and can feed both v7x TensorCores."""
    target = min(min_steps, batch)
    best = 1
    for t in range(1, min(block_b, batch) + 1):
        if batch % t == 0 and batch // t >= target:
            best = t
    return best


# ---------------------------------------------------------------------------
# Parameters: mirror PyTorch init, then fold each ClassBlock into one affine.
# ---------------------------------------------------------------------------
def init_params(key, class_num):
    params = []
    for _ in range(PARTS):
        key, k1, k2, k3 = jax.random.split(key, 4)
        params.append(dict(
            # add_block Linear(2048,512): kaiming_normal_(mode='fan_out') -> std=sqrt(2/512);
            # stored transposed as (in, out) for x @ W.
            w1=jax.random.normal(k1, (FEAT_DIM, BOTTLENECK), jnp.float32)
               * jnp.sqrt(2.0 / BOTTLENECK),
            b1=jnp.zeros((BOTTLENECK,), jnp.float32),
            # BatchNorm1d(512): weight ~ N(1.0, 0.02), bias = 0, running stats (0, 1)
            gamma=1.0 + 0.02 * jax.random.normal(k2, (BOTTLENECK,), jnp.float32),
            beta=jnp.zeros((BOTTLENECK,), jnp.float32),
            mean=jnp.zeros((BOTTLENECK,), jnp.float32),
            var=jnp.ones((BOTTLENECK,), jnp.float32),
            # classifier Linear(512, class_num): weight ~ N(0, 0.001), bias = 0
            w2=0.001 * jax.random.normal(k3, (BOTTLENECK, class_num), jnp.float32),
            b2=jnp.zeros((class_num,), jnp.float32),
        ))
    return params


def _part_inv_denoms(H, W):
    """Per-part avg-pool 1/denominator, following CPB.forward's crop recursion."""
    assert H == W and W > 12, "CPB.forward requires square feature maps with H = W >= 13"
    inv, d = [], 6
    for _ in range(PARTS):
        inv.append(1.0 / float((W - 2 * d) * (H - 2 * d)))
        d -= 2
    return tuple(inv)


def fold_params(params, class_num, feat_hw):
    """Eval-mode folding per part (all in f32, then one bf16 cast):
         W_eff = inv_denom * (w1 * s) @ w2
         b_eff = ((b1 - mean) * s + beta) @ w2 + b2,   s = gamma * rsqrt(var + eps).
    Dropout is identity at inference; the avg-pool divisor is folded into W_eff so the kernel
    can feed the raw pooled sums straight into the classifier."""
    H, W = feat_hw
    inv_denoms = _part_inv_denoms(H, W)
    n_pad = _round_up(class_num, LANE)
    ws, bs = [], []
    for p, inv in zip(params, inv_denoms):
        scale = p["gamma"] * jax.lax.rsqrt(p["var"] + BN_EPS)
        w1f = p["w1"] * scale[None, :]
        b1f = (p["b1"] - p["mean"]) * scale + p["beta"]
        ws.append((w1f @ p["w2"]) * inv)         # (2048, class_num), avg divisor folded in
        bs.append(b1f @ p["w2"] + p["b2"])       # (class_num,)
    w_eff = jnp.stack(ws)                        # (PARTS, 2048, class_num)
    b_eff = jnp.stack(bs)                        # (PARTS, class_num)
    w_eff = jnp.pad(w_eff, ((0, 0), (0, 0), (0, n_pad - class_num))).astype(jnp.bfloat16)
    b_eff = jnp.pad(b_eff, ((0, 0), (0, n_pad - class_num)))[:, None, :]  # (PARTS, 1, n_pad) f32
    return w_eff, b_eff


def _part_masks(H, W):
    """Exact per-position {-1,0,+1} coefficients of x for each part's pooling sum.  Mirrors
    CPB.forward's crop / subtract / pad(2) recursion (including its swapped H/W slice bounds,
    which requires square feature maps)."""
    assert H == W and W > 12, "CPB.forward requires square feature maps with H = W >= 13"
    coef = jnp.zeros((H, W), jnp.float32)
    cols = []
    d = 6
    for i in range(PARTS):
        ind = jnp.zeros((H, W), jnp.float32).at[d:W - d, d:H - d].set(1.0)
        coef = ind if i == 0 else ind - coef      # part_input_i = crop_d(x) - pad2(part_input_{i-1})
        cols.append(coef.reshape(-1))
        d -= 2
    masks = jnp.stack(cols, axis=0)               # (PARTS, H*W), values in {-1,0,+1} -> exact in bf16
    masks = jnp.pad(masks, ((0, P_PAD - PARTS), (0, 0)))
    return masks.astype(jnp.bfloat16)


# ---------------------------------------------------------------------------
# Kernel
# ---------------------------------------------------------------------------
def _cpb_head_kernel(x_ref, m_ref, w_ref, b_ref, out_ref):
    # x_ref:   (TB, C, HW)         backbone dtype   feature-map block (NCHW, HW flattened)
    # m_ref:   (P_PAD, HW)         bf16  {-1,0,+1} part pooling coefficients (resident)
    # w_ref:   (PARTS, C, N_PAD)   bf16  folded Linear->BN->Linear weights, avg divisor folded in
    # b_ref:   (PARTS, 1, N_PAD)   f32   folded biases (resident)
    # out_ref: (TB, PARTS, N_PAD)  f32
    tb, _, hw = x_ref.shape
    p_pad = m_ref.shape[0]

    x = x_ref[...]
    if x.dtype != jnp.bfloat16:
        # In-kernel cast of the streamed block: no extra HBM pass (the wrapper never rewrites x).
        x = x.astype(jnp.bfloat16)

    # All-part spatial pooling as one batched MXU contraction over the HW lane axis (both
    # operands contracted on their last dim, same style as q @ k^T in flash attention).  The
    # broadcast mask replicas are only (TB, 8, HW) bf16 (tens of KiB) and keep pooled directly
    # in (TB, P, C) layout (C on lanes), so neither the big x tile nor pooled needs a relayout.
    m_b = jnp.broadcast_to(m_ref[...][None, :, :], (tb, p_pad, hw))
    pooled = jnp.einsum("bph,bch->bpc", m_b, x,
                        preferred_element_type=jnp.float32)          # (TB, P_PAD, C) f32

    for p in range(PARTS):
        # avg-pool divisor already folded into w_ref -> pooled sums feed the classifier directly.
        feat = pooled[:, p, :].astype(jnp.bfloat16)                          # (TB, C)
        logits = jnp.dot(feat, w_ref[p],
                         preferred_element_type=jnp.float32) + b_ref[p]      # (TB, N_PAD)
        # Lane-dense (N_PAD = k*128) store; out block keeps (PARTS, N_PAD) as its last two dims
        # so the BlockSpec stays tile-legal for any TB (including TB = 1).
        out_ref[:, p:p + 1, :] = logits[:, None, :]


# ---------------------------------------------------------------------------
# Wrapper
# ---------------------------------------------------------------------------
@functools.partial(jax.jit, static_argnames=("class_num", "block_b"))
def cpb_forward(x_feat, w_eff, b_eff, *, class_num, block_b=8):
    """CPB head on a backbone feature map x_feat: (B, 2048, H, W), H == W.
    Returns a list of PARTS logits arrays, each (B, class_num) — same as the PyTorch module."""
    B, C, H, W = x_feat.shape
    assert C == FEAT_DIM
    masks = _part_masks(H, W)
    n_pad = w_eff.shape[-1]
    hw = H * W

    # Pure reshape only: keep the backbone's NCHW layout AND dtype (no wrapper-side cast or pad
    # -> no extra HBM pass over the dominant tensor).
    x = x_feat.reshape(B, C, hw)

    tb = _pick_tb(B, block_b)          # divisor of B, >= 4 grid steps when possible
    grid_steps = B // tb

    # Explicit VMEM budget: 2x streamed x block (double-buffered) + single-buffered residents
    # + out blocks + headroom for in-kernel intermediates / the optional bf16 cast copy.
    x_block = tb * C * hw * x.dtype.itemsize
    resident = masks.size * masks.dtype.itemsize + w_eff.size * 2 + b_eff.size * 4
    out_block = tb * PARTS * n_pad * 4
    vmem_limit = 3 * x_block + resident + 2 * out_block + (8 << 20)
    vmem_limit = int(max(32 << 20, min(vmem_limit, 64 << 20)))  # stay within v7x's 64 MiB physical

    flops = 2 * B * C * (hw * P_PAD + PARTS * n_pad)
    bytes_accessed = x.size * x.dtype.itemsize + resident + B * PARTS * n_pad * 4

    out = pl.pallas_call(
        _cpb_head_kernel,
        out_shape=jax.ShapeDtypeStruct((B, PARTS, n_pad), jnp.float32),
        grid=(grid_steps,),
        in_specs=[
            # x: streamed, double-buffered per batch block
            pl.BlockSpec((tb, C, hw), lambda b: (b, 0, 0)),
            # masks / folded weights / folded biases: constant index_map -> resident across the
            # grid; single-buffered so they don't burn 2x VMEM (matters at real class counts).
            pl.BlockSpec((P_PAD, hw), lambda b: (0, 0),
                         pipeline_mode=pl.Buffered(1)),
            pl.BlockSpec((PARTS, C, n_pad), lambda b: (0, 0, 0),
                         pipeline_mode=pl.Buffered(1)),
            pl.BlockSpec((PARTS, 1, n_pad), lambda b: (0, 0, 0),
                         pipeline_mode=pl.Buffered(1)),
        ],
        out_specs=pl.BlockSpec((tb, PARTS, n_pad), lambda b: (b, 0, 0)),
        compiler_params=pltpu.CompilerParams(
            dimension_semantics=("parallel",),
            vmem_limit_bytes=vmem_limit),
        cost_estimate=pl.CostEstimate(flops=flops, transcendentals=0,
                                      bytes_accessed=bytes_accessed),
    )(x, masks, w_eff, b_eff)

    out = out[:, :, :class_num]
    return [out[:, p, :] for p in range(PARTS)]


# ---------------------------------------------------------------------------
# Pure-JAX reference of the PyTorch head (f32, unfolded) for a correctness check.
# ---------------------------------------------------------------------------
def cpb_reference(x_feat, params):
    x = x_feat.astype(jnp.float32)
    _, _, H, W = x.shape
    outs, last, d = [], None, 6
    for i in range(PARTS):
        part_input = x[:, :, d:W - d, d:H - d]
        if i > 0:
            part_input = part_input - last
        feat = part_input.mean(axis=(2, 3))                               # AdaptiveAvgPool2d((1,1))
        last = jnp.pad(part_input, ((0, 0), (0, 0), (2, 2), (2, 2)))
        p = params[i]
        y = feat @ p["w1"] + p["b1"]
        y = (y - p["mean"]) * jax.lax.rsqrt(p["var"] + BN_EPS) * p["gamma"] + p["beta"]
        y = y @ p["w2"] + p["b2"]                                         # dropout = identity (eval)
        outs.append(y)
        d -= 2
    return outs


if __name__ == "__main__":
    key = jax.random.PRNGKey(0)
    k_x, k_p = jax.random.split(key)

    B, H, W = 4, 16, 16
    CLASS_NUM = 16

    # Synthetic backbone feature map (bf16, as a bf16 inference backbone would emit).
    # TODO(synk): self.model.features (pretrained se_resnext101_32x4d) is not re-implemented here.
    x = jax.random.normal(k_x, (B, FEAT_DIM, H, W), jnp.float32).astype(jnp.bfloat16)

    params = init_params(k_p, CLASS_NUM)
    w_eff, b_eff = fold_params(params, CLASS_NUM, (H, W))

    y = cpb_forward(x, w_eff, b_eff, class_num=CLASS_NUM)
    y = jax.block_until_ready(y)
    assert len(y) == PARTS and all(p.shape == (B, CLASS_NUM) for p in y)

    # Loose tolerance: folded bf16 weights + bf16 pooled features vs. the f32 two-step reference.
    ref = cpb_reference(x, params)
    for yp, rp in zip(y, ref):
        err = float(jnp.max(jnp.abs(yp.astype(jnp.float32) - rp)))
        scale = float(jnp.max(jnp.abs(rp)))
        assert err <= 0.1 * scale + 1e-5, (err, scale)

    print("KERNEL_OK")
</pallas_src>

<mosaic_0001>
module attributes {stable_mosaic.version = 11 : i64} {
  func.func @_cpb_head_kernel(%arg0: i32, %arg1: memref<1x2048x256xbf16, #tpu.memory_space<vmem>>, %arg2: memref<8x256xbf16, #tpu.memory_space<vmem>>, %arg3: memref<4x2048x128xbf16, #tpu.memory_space<vmem>>, %arg4: memref<4x1x128xf32, #tpu.memory_space<vmem>>, %arg5: memref<1x4x128xf32, #tpu.memory_space<vmem>>) attributes {dimension_semantics = [#tpu.dimension_semantics<parallel>], iteration_bounds = array<i64: 4>, scalar_prefetch = 0 : i64, scratch_operands = 0 : i64, tpu.core_type = #tpu.core_type<tc>, window_params = [{transform_indices = @transform_0, window_bounds = array<i64: 1, 2048, 256>}, {pipeline_mode = #tpu.pipeline_mode<synchronous>, transform_indices = @transform_1, window_bounds = array<i64: 8, 256>}, {pipeline_mode = #tpu.pipeline_mode<synchronous>, transform_indices = @transform_2, window_bounds = array<i64: 4, 2048, 128>}, {pipeline_mode = #tpu.pipeline_mode<synchronous>, transform_indices = @transform_3, window_bounds = array<i64: 4, 1, 128>}, {transform_indices = @transform_4, window_bounds = array<i64: 1, 4, 128>}]} {
    %c0 = arith.constant 0 : index
    %c0_0 = arith.constant 0 : index
    %c0_1 = arith.constant 0 : index
    %0 = vector.load %arg1[%c0, %c0_0, %c0_1] : memref<1x2048x256xbf16, #tpu.memory_space<vmem>>, vector<1x2048x256xbf16>
    %c0_2 = arith.constant 0 : index
    %c0_3 = arith.constant 0 : index
    %1 = vector.load %arg2[%c0_2, %c0_3] : memref<8x256xbf16, #tpu.memory_space<vmem>>, vector<8x256xbf16>
    %2 = vector.shape_cast %1 : vector<8x256xbf16> to vector<1x8x256xbf16>
    "tpu.trace_start"() <{level = 10 : i32, message = "bph,bch->bpc"}> : () -> ()
    %cst = arith.constant dense<0.000000e+00> : vector<1x8x2048xf32>
    %3 = tpu.matmul %2, %0, %cst {dimension_numbers = #tpu.dot_dimension_numbers<[2], [2], [1], [1], [0, 0, 0, 1, 1, 1], [0], [0]>} : vector<1x8x256xbf16>, vector<1x2048x256xbf16>, vector<1x8x2048xf32> -> vector<1x8x2048xf32>
    "tpu.trace_stop"() : () -> ()
    %4 = vector.extract_strided_slice %3 {offsets = [0, 0, 0], sizes = [1, 1, 2048], strides = [1, 1, 1]} : vector<1x8x2048xf32> to vector<1x1x2048xf32>
    %5 = vector.shape_cast %4 : vector<1x1x2048xf32> to vector<1x2048xf32>
    %6 = arith.truncf %5 : vector<1x2048xf32> to vector<1x2048xbf16>
    %c0_4 = arith.constant 0 : index
    %c0_5 = arith.constant 0 : index
    %c0_6 = arith.constant 0 : index
    %7 = vector.load %arg3[%c0_4, %c0_5, %c0_6] : memref<4x2048x128xbf16, #tpu.memory_space<vmem>>, vector<1x2048x128xbf16>
    %8 = vector.shape_cast %7 : vector<1x2048x128xbf16> to vector<2048x128xbf16>
    %cst_7 = arith.constant dense<0.000000e+00> : vector<1x128xf32>
    %9 = tpu.matmul %6, %8, %cst_7 {dimension_numbers = #tpu.dot_dimension_numbers<[1], [0], [0], [1], [0, 0, 1, 1], [], []>} : vector<1x2048xbf16>, vector<2048x128xbf16>, vector<1x128xf32> -> vector<1x128xf32>
    %c0_8 = arith.constant 0 : index
    %c0_9 = arith.constant 0 : index
    %c0_10 = arith.constant 0 : index
    %10 = vector.load %arg4[%c0_8, %c0_9, %c0_10] : memref<4x1x128xf32, #tpu.memory_space<vmem>>, vector<1x1x128xf32>
    %11 = vector.shape_cast %10 : vector<1x1x128xf32> to vector<1x128xf32>
    %12 = arith.addf %9, %11 : vector<1x128xf32>
    %13 = vector.shape_cast %12 : vector<1x128xf32> to vector<1x1x128xf32>
    %c0_11 = arith.constant 0 : index
    %c0_12 = arith.constant 0 : index
    %c0_13 = arith.constant 0 : index
    %14 = vector.load %arg5[%c0_11, %c0_12, %c0_13] : memref<1x4x128xf32, #tpu.memory_space<vmem>>, vector<1x1x128xf32>
    tpu.vector_store %arg5[%c0_11, %c0_12, %c0_13], %13 {strides = array<i32>} : memref<1x4x128xf32, #tpu.memory_space<vmem>>, vector<1x1x128xf32>,
    %15 = vector.extract_strided_slice %3 {offsets = [0, 1, 0], sizes = [1, 1, 2048], strides = [1, 1, 1]} : vector<1x8x2048xf32> to vector<1x1x2048xf32>
    %16 = vector.shape_cast %15 : vector<1x1x2048xf32> to vector<1x2048xf32>
    %17 = arith.truncf %16 : vector<1x2048xf32> to vector<1x2048xbf16>
    %c1 = arith.constant 1 : index
    %c0_14 = arith.constant 0 : index
    %c0_15 = arith.constant 0 : index
    %18 = vector.load %arg3[%c1, %c0_14, %c0_15] : memref<4x2048x128xbf16, #tpu.memory_space<vmem>>, vector<1x2048x128xbf16>
    %19 = vector.shape_cast %18 : vector<1x2048x128xbf16> to vector<2048x128xbf16>
    %cst_16 = arith.constant dense<0.000000e+00> : vector<1x128xf32>
    %20 = tpu.matmul %17, %19, %cst_16 {dimension_numbers = #tpu.dot_dimension_numbers<[1], [0], [0], [1], [0, 0, 1, 1], [], []>} : vector<1x2048xbf16>, vector<2048x128xbf16>, vector<1x128xf32> -> vector<1x128xf32>
    %c1_17 = arith.constant 1 : index
    %c0_18 = arith.constant 0 : index
    %c0_19 = arith.constant 0 : index
    %21 = vector.load %arg4[%c1_17, %c0_18, %c0_19] : memref<4x1x128xf32, #tpu.memory_space<vmem>>, vector<1x1x128xf32>
    %22 = vector.shape_cast %21 : vector<1x1x128xf32> to vector<1x128xf32>
    %23 = arith.addf %20, %22 : vector<1x128xf32>
    %24 = vector.shape_cast %23 : vector<1x128xf32> to vector<1x1x128xf32>
    %c0_20 = arith.constant 0 : index
    %c1_21 = arith.constant 1 : index
    %c0_22 = arith.constant 0 : index
    %25 = vector.load %arg5[%c0_20, %c1_21, %c0_22] : memref<1x4x128xf32, #tpu.memory_space<vmem>>, vector<1x1x128xf32>
    tpu.vector_store %arg5[%c0_20, %c1_21, %c0_22], %24 {strides = array<i32>} : memref<1x4x128xf32, #tpu.memory_space<vmem>>, vector<1x1x128xf32>,
    %26 = vector.extract_strided_slice %3 {offsets = [0, 2, 0], sizes = [1, 1, 2048], strides = [1, 1, 1]} : vector<1x8x2048xf32> to vector<1x1x2048xf32>
    %27 = vector.shape_cast %26 : vector<1x1x2048xf32> to vector<1x2048xf32>
    %28 = arith.truncf %27 : vector<1x2048xf32> to vector<1x2048xbf16>
    %c2 = arith.constant 2 : index
    %c0_23 = arith.constant 0 : index
    %c0_24 = arith.constant 0 : index
    %29 = vector.load %arg3[%c2, %c0_23, %c0_24] : memref<4x2048x128xbf16, #tpu.memory_space<vmem>>, vector<1x2048x128xbf16>
    %30 = vector.shape_cast %29 : vector<1x2048x128xbf16> to vector<2048x128xbf16>
    %cst_25 = arith.constant dense<0.000000e+00> : vector<1x128xf32>
    %31 = tpu.matmul %28, %30, %cst_25 {dimension_numbers = #tpu.dot_dimension_numbers<[1], [0], [0], [1], [0, 0, 1, 1], [], []>} : vector<1x2048xbf16>, vector<2048x128xbf16>, vector<1x128xf32> -> vector<1x128xf32>
    %c2_26 = arith.constant 2 : index
    %c0_27 = arith.constant 0 : index
    %c0_28 = arith.constant 0 : index
    %32 = vector.load %arg4[%c2_26, %c0_27, %c0_28] : memref<4x1x128xf32, #tpu.memory_space<vmem>>, vector<1x1x128xf32>
    %33 = vector.shape_cast %32 : vector<1x1x128xf32> to vector<1x128xf32>
    %34 = arith.addf %31, %33 : vector<1x128xf32>
    %35 = vector.shape_cast %34 : vector<1x128xf32> to vector<1x1x128xf32>
    %c0_29 = arith.constant 0 : index
    %c2_30 = arith.constant 2 : index
    %c0_31 = arith.constant 0 : index
    %36 = vector.load %arg5[%c0_29, %c2_30, %c0_31] : memref<1x4x128xf32, #tpu.memory_space<vmem>>, vector<1x1x128xf32>
    tpu.vector_store %arg5[%c0_29, %c2_30, %c0_31], %35 {strides = array<i32>} : memref<1x4x128xf32, #tpu.memory_space<vmem>>, vector<1x1x128xf32>,
    %37 = vector.extract_strided_slice %3 {offsets = [0, 3, 0], sizes = [1, 1, 2048], strides = [1, 1, 1]} : vector<1x8x2048xf32> to vector<1x1x2048xf32>
    %38 = vector.shape_cast %37 : vector<1x1x2048xf32> to vector<1x2048xf32>
    %39 = arith.truncf %38 : vector<1x2048xf32> to vector<1x2048xbf16>
    %c3 = arith.constant 3 : index
    %c0_32 = arith.constant 0 : index
    %c0_33 = arith.constant 0 : index
    %40 = vector.load %arg3[%c3, %c0_32, %c0_33] : memref<4x2048x128xbf16, #tpu.memory_space<vmem>>, vector<1x2048x128xbf16>
    %41 = vector.shape_cast %40 : vector<1x2048x128xbf16> to vector<2048x128xbf16>
    %cst_34 = arith.constant dense<0.000000e+00> : vector<1x128xf32>
    %42 = tpu.matmul %39, %41, %cst_34 {dimension_numbers = #tpu.dot_dimension_numbers<[1], [0], [0], [1], [0, 0, 1, 1], [], []>} : vector<1x2048xbf16>, vector<2048x128xbf16>, vector<1x128xf32> -> vector<1x128xf32>
    %c3_35 = arith.constant 3 : index
    %c0_36 = arith.constant 0 : index
    %c0_37 = arith.constant 0 : index
    %43 = vector.load %arg4[%c3_35, %c0_36, %c0_37] : memref<4x1x128xf32, #tpu.memory_space<vmem>>, vector<1x1x128xf32>
    %44 = vector.shape_cast %43 : vector<1x1x128xf32> to vector<1x128xf32>
    %45 = arith.addf %42, %44 : vector<1x128xf32>
    %46 = vector.shape_cast %45 : vector<1x128xf32> to vector<1x1x128xf32>
    %c0_38 = arith.constant 0 : index
    %c3_39 = arith.constant 3 : index
    %c0_40 = arith.constant 0 : index
    %47 = vector.load %arg5[%c0_38, %c3_39, %c0_40] : memref<1x4x128xf32, #tpu.memory_space<vmem>>, vector<1x1x128xf32>
    tpu.vector_store %arg5[%c0_38, %c3_39, %c0_40], %46 {strides = array<i32>} : memref<1x4x128xf32, #tpu.memory_space<vmem>>, vector<1x1x128xf32>,
    return
  }
  func.func @transform_0(%arg0: i32) -> (i32, i32, i32) {
    %c0_i32 = arith.constant 0 : i32
    %c0_i32_0 = arith.constant 0 : i32
    %c0_i32_1 = arith.constant 0 : i32
    return %arg0, %c0_i32, %c0_i32_0 : i32, i32, i32
  }
  func.func @transform_1(%arg0: i32) -> (i32, i32) {
    %c0_i32 = arith.constant 0 : i32
    %c0_i32_0 = arith.constant 0 : i32
    %c0_i32_1 = arith.constant 0 : i32
    return %c0_i32, %c0_i32_0 : i32, i32
  }
  func.func @transform_2(%arg0: i32) -> (i32, i32, i32) {
    %c0_i32 = arith.constant 0 : i32
    %c0_i32_0 = arith.constant 0 : i32
    %c0_i32_1 = arith.constant 0 : i32
    %c0_i32_2 = arith.constant 0 : i32
    return %c0_i32, %c0_i32_0, %c0_i32_1 : i32, i32, i32
  }
  func.func @transform_3(%arg0: i32) -> (i32, i32, i32) {
    %c0_i32 = arith.constant 0 : i32
    %c0_i32_0 = arith.constant 0 : i32
    %c0_i32_1 = arith.constant 0 : i32
    %c0_i32_2 = arith.constant 0 : i32
    return %c0_i32, %c0_i32_0, %c0_i32_1 : i32, i32, i32
  }
  func.func @transform_4(%arg0: i32) -> (i32, i32, i32) {
    %c0_i32 = arith.constant 0 : i32
    %c0_i32_0 = arith.constant 0 : i32
    %c0_i32_1 = arith.constant 0 : i32
    return %arg0, %c0_i32, %c0_i32_0 : i32, i32, i32
  }
}

</mosaic_0001>

<llo_original>
// kernel: cpb_forward.1
$region0: #{cpb_forward.1}
  #allocation0 [shape = 'u32[]', space=smem, size = 0x4, offset = 0x4, fixed_abs, tag = 'smem constant byte address 0x4 - core index']
  #allocation1 [shape = 'u32[144,128]{1,0:T(1,128)}', space=vmem, size = 0x12000, scoped, tag = 'internal scratch']
  %s0 = inlined_call_operand.vmem [shape: bf16[4,2048,256], index: 0, kind: input, shape index: {}]
  %s1 = inlined_call_operand.vmem [shape: bf16[8,256], index: 1, kind: input, shape index: {}]
  %s2 = inlined_call_operand.vmem [shape: bf16[4,2048,128], index: 2, kind: input, shape index: {}]
  %s3 = inlined_call_operand.vmem [shape: f32[4,1,128], index: 3, kind: input, shape index: {}]
  %s4 = inlined_call_operand.vmem [shape: f32[4,4,128], index: 4, kind: output, shape index: {}]
  %s5 = sld [smem:[#allocation0]]
  $region49: #{cpb_forward.1} parent=0
    _
  %s7 = ssub.s32 1, %s5
  %s8 = scalar_select 0, %s7, %s5
  loop: start=0, step=1, limit=6
  $region2: #{cpb_forward.1} parent=0 // loop_pre_header
    _
  $region3: #{cpb_forward.1} parent=0 // loop_header
    %s10 = sphi 0, %s14
    %p11 = scmp.ge.s32.totalorder %s10, 6
    %s20 = sphi 0, %s22
    %s23 = sphi 0, %s20
    %s24 = sphi 0, %s23
    %s40 = sphi 0, %s24
    %s44 = sphi 0, %s44
    %s46 = sphi 0, %s44
    %s47 = sphi 0, %s46
    %s61 = sphi 0, %s47
    %s65 = sphi 0, %s65
    %s67 = sphi 0, %s65
    %s68 = sphi 0, %s67
    %s82 = sphi 0, %s68
    %s86 = sphi 0, %s86
    %s88 = sphi 0, %s86
    %s89 = sphi 0, %s88
    %s103 = sphi 0, %s89
    %s109 = sphi 0, %s111
    %s112 = sphi 0, %s109
    %s113 = sphi 0, %s112
    %s129 = sphi 0, %s113
  $region4: #{cpb_forward.1} parent=0 // loop_header_branch
    %13 = sbr.rel (%p11) target = $region8
  $region5: #{cpb_forward.1} parent=0 // loop_body
    %s15 = ssub.s32 %s10, 1
    %s16 = ssub.s32 %s10, 2
    %s17 = sadd.s32 %s10, 1
    %s18 = ssub.s32 %s10, %s17
    %p19 = scmp.eq.s32.totalorder %s18, 0
    %s21 = sadd.s32 %s20, 1
    %s22 = scalar_select %p19, %s20, %s21
    %p25 = pneg %p19
    %p26 = scmp.eq.s32.totalorder %s10, 3
    %p27 = por %p25, %p26
    %p28 = scmp.ne.s32.totalorder %s20, %s23
    %p29 = scmp.eq.s32.totalorder %s10, 0
    %p30 = por %p28, %p29
    %p31 = scmp.ne.s32.totalorder %s20, %s23
    %p32 = scmp.eq.s32.totalorder %s15, 3
    %p33 = por %p31, %p32
    %p34 = scmp.ne.s32.totalorder %s23, %s24
    %p35 = scmp.eq.s32.totalorder %s15, 0
    %p36 = por %p34, %p35
    %p37 = scmp.ne.s32.totalorder %s23, %s24
    %p38 = scmp.eq.s32.totalorder %s16, 3
    %p39 = por %p37, %p38
    %p41 = scmp.ne.s32.totalorder %s24, %s40
    %p42 = scmp.eq.s32.totalorder %s16, 0
    %p43 = por %p41, %p42
    %s45 = sadd.s32 %s44, 1
    %p48 = scmp.eq.s32.totalorder %s10, 3
    %p49 = scmp.ne.s32.totalorder %s44, %s46
    %p50 = scmp.eq.s32.totalorder %s10, 0
    %p51 = por %p49, %p50
    %p52 = scmp.ne.s32.totalorder %s44, %s46
    %p53 = scmp.eq.s32.totalorder %s15, 3
    %p54 = por %p52, %p53
    %p55 = scmp.ne.s32.totalorder %s46, %s47
    %p56 = scmp.eq.s32.totalorder %s15, 0
    %p57 = por %p55, %p56
    %p58 = scmp.ne.s32.totalorder %s46, %s47
    %p59 = scmp.eq.s32.totalorder %s16, 3
    %p60 = por %p58, %p59
    %p62 = scmp.ne.s32.totalorder %s47, %s61
    %p63 = scmp.eq.s32.totalorder %s16, 0
    %p64 = por %p62, %p63
    %s66 = sadd.s32 %s65, 1
    %p69 = scmp.eq.s32.totalorder %s10, 3
    %p70 = scmp.ne.s32.totalorder %s65, %s67
    %p71 = scmp.eq.s32.totalorder %s10, 0
    %p72 = por %p70, %p71
    %p73 = scmp.ne.s32.totalorder %s65, %s67
    %p74 = scmp.eq.s32.totalorder %s15, 3
    %p75 = por %p73, %p74
    %p76 = scmp.ne.s32.totalorder %s67, %s68
    %p77 = scmp.eq.s32.totalorder %s15, 0
    %p78 = por %p76, %p77
    %p79 = scmp.ne.s32.totalorder %s67, %s68
    %p80 = scmp.eq.s32.totalorder %s16, 3
    %p81 = por %p79, %p80
    %p83 = scmp.ne.s32.totalorder %s68, %s82
    %p84 = scmp.eq.s32.totalorder %s16, 0
    %p85 = por %p83, %p84
    %s87 = sadd.s32 %s86, 1
    %p90 = scmp.eq.s32.totalorder %s10, 3
    %p91 = scmp.ne.s32.totalorder %s86, %s88
    %p92 = scmp.eq.s32.totalorder %s10, 0
    %p93 = por %p91, %p92
    %p94 = scmp.ne.s32.totalorder %s86, %s88
    %p95 = scmp.eq.s32.totalorder %s15, 3
    %p96 = por %p94, %p95
    %p97 = scmp.ne.s32.totalorder %s88, %s89
    %p98 = scmp.eq.s32.totalorder %s15, 0
    %p99 = por %p97, %p98
    %p100 = scmp.ne.s32.totalorder %s88, %s89
    %p101 = scmp.eq.s32.totalorder %s16, 3
    %p102 = por %p100, %p101
    %p104 = scmp.ne.s32.totalorder %s89, %s103
    %p105 = scmp.eq.s32.totalorder %s16, 0
    %p106 = por %p104, %p105
    %s107 = ssub.s32 %s10, %s17
    %p108 = scmp.eq.s32.totalorder %s107, 0
    %s110 = sadd.s32 %s109, 1
    %s111 = scalar_select %p108, %s109, %s110
    %p114 = pneg %p108
    %p115 = scmp.eq.s32.totalorder %s10, 3
    %p116 = por %p114, %p115
    %p117 = scmp.ne.s32.totalorder %s109, %s112
    %p118 = scmp.eq.s32.totalorder %s10, 0
    %p119 = por %p117, %p118
    %p120 = scmp.ne.s32.totalorder %s109, %s112
    %p121 = scmp.eq.s32.totalorder %s15, 3
    %p122 = por %p120, %p121
    %p123 = scmp.ne.s32.totalorder %s112, %s113
    %p124 = scmp.eq.s32.totalorder %s15, 0
    %p125 = por %p123, %p124
    %p126 = scmp.ne.s32.totalorder %s112, %s113
    %p127 = scmp.eq.s32.totalorder %s16, 3
    %p128 = por %p126, %p127
    %p130 = scmp.ne.s32.totalorder %s113, %s129
    %p131 = scmp.eq.s32.totalorder %s16, 0
    %p132 = por %p130, %p131
    %p133 = scmp.le.s32.totalorder 1, %s10
    %p134 = scmp.lt.s32.totalorder %s10, 5
    %p135 = pnand %p133, %p134
    %p136 = pneg %p135
    // Predicated region
    $region9: #{cpb_forward.1} parent=5 // pred_check
      _
    $region10: #{cpb_forward.1} parent=5 // pred_check_branch
      %138 = sbr.rel (%p135) target = $region12
    $region11: #{cpb_forward.1} parent=5 // pred_region
      %s139 = ssub.s32 %s10, 1
      // Predicated region
      $region13: #{cpb_forward.1} parent=11 // pred_check
        %p140 = pneg %p57
      $region14: #{cpb_forward.1} parent=11 // pred_check_branch
        %142 = sbr.rel (%p140) target = $region16
      $region15: #{cpb_forward.1} parent=11 // pred_region
        _
      $region16: #{cpb_forward.1} parent=11 // pred_fallthru
        _
      // Predicated region
      $region17: #{cpb_forward.1} parent=11 // pred_check
        %p143 = pneg %p78
      $region18: #{cpb_forward.1} parent=11 // pred_check_branch
        %145 = sbr.rel (%p143) target = $region20
      $region19: #{cpb_forward.1} parent=11 // pred_region
        _
      $region20: #{cpb_forward.1} parent=11 // pred_fallthru
        _
      // Predicated region
      $region21: #{cpb_forward.1} parent=11 // pred_check
        %p146 = pneg %p99
      $region22: #{cpb_forward.1} parent=11 // pred_check_branch
        %148 = sbr.rel (%p146) target = $region24
      $region23: #{cpb_forward.1} parent=11 // pred_region
        _
      $region24: #{cpb_forward.1} parent=11 // pred_fallthru
        _
    $region12: #{cpb_forward.1} parent=5 // pred_fallthru
      _
    %p149 = scmp.lt.s32.totalorder %s10, 4
    // Predicated region
    $region25: #{cpb_forward.1} parent=5 // pred_check
      %p150 = pneg %p149
    $region26: #{cpb_forward.1} parent=5 // pred_check_branch
      %152 = sbr.rel (%p150) target = $region28
    $region27: #{cpb_forward.1} parent=5 // pred_region
      // Predicated region
      $region29: #{cpb_forward.1} parent=27 // pred_check
        %p153 = pneg %p30
      $region30: #{cpb_forward.1} parent=27 // pred_check_branch
        %155 = sbr.rel (%p153) target = $region32
      $region31: #{cpb_forward.1} parent=27 // pred_region
        %p156 = scmp.lt.s32.totalorder %s10, 3
        %s157 = scalar_select %p156, %s10, 3
        %s158 = smul.addr %s157, 512
        %s159 = smul.addr %s158, 4
        %s160 = scalar_lea.vmem %s0, %s159
      $region32: #{cpb_forward.1} parent=27 // pred_fallthru
        _
    $region28: #{cpb_forward.1} parent=5 // pred_fallthru
      _
    %p161 = scmp.le.s32.totalorder 1, %s10
    %p162 = scmp.lt.s32.totalorder %s10, 5
    %p163 = pnand %p161, %p162
    %p164 = pneg %p163
    // Predicated region
    $region33: #{cpb_forward.1} parent=5 // pred_check
      _
    $region34: #{cpb_forward.1} parent=5 // pred_check_branch
      %166 = sbr.rel (%p163) target = $region36
    $region35: #{cpb_forward.1} parent=5 // pred_region
      %s167 = ssub.s32 %s10, 1
      %p168 = scmp.lt.s32.totalorder %s15, 3
      %s169 = scalar_select %p168, %s15, 3
      %s170 = smul.addr %s169, 512
      %s171 = smul.addr %s170, 4
      %s172 = scalar_lea.vmem %s0, %s171
      %p173 = pneg %p36
      %p174 = pneg %p33
      %p175 = pneg %p57
      %p176 = pneg %p54
      %p177 = pneg %p78
      %p178 = pneg %p75
      %p179 = pneg %p99
      %p180 = pneg %p96
      %p181 = pneg %p125
      %p182 = pneg %p122
      %p183 = scmp.lt.s32.totalorder %s15, 3
      %s184 = scalar_select %p183, %s15, 3
      %s185 = smul.addr %s184, 4
      %s186 = scalar_lea.vmem %s4, %s185
      %p187 = scmp.lt.s32.totalorder %s15, 3
      %s188 = scalar_select %p187, %s15, 3
      %s189 = smul.addr %s188, 512
      %s190 = smul.addr %s189, 4
      %s191 = scalar_lea.vmem %s0, %s190
      %p192 = scmp.lt.s32.totalorder %s15, 3
      %s193 = scalar_select %p192, %s15, 3
      %s194 = smul.addr %s193, 4
      %s195 = scalar_lea.vmem %s4, %s194
      %v197 = vld [vmem:[%s191] sm:$0xff]
      %v198 = vld [vmem:[%s191 + $0x8] sm:$0xff]
      %v199 = vld [vmem:[%s191 + $0x10] sm:$0xff]
      %v200 = vld [vmem:[%s191 + $0x18] sm:$0xff]
      %v201 = vld [vmem:[%s191 + $0x20] sm:$0xff]
      %v202 = vld [vmem:[%s191 + $0x28] sm:$0xff]
      %v203 = vld [vmem:[%s191 + $0x30] sm:$0xff]
      %v204 = vld [vmem:[%s191 + $0x38] sm:$0xff]
      %v205 = vld [vmem:[%s191 + $0x40] sm:$0xff]
      %v206 = vld [vmem:[%s191 + $0x48] sm:$0xff]
      %v207 = vld [vmem:[%s191 + $0x50] sm:$0xff]
      %v208 = vld [vmem:[%s191 + $0x58] sm:$0xff]
      %v209 = vld [vmem:[%s191 + $0x60] sm:$0xff]
      %v210 = vld [vmem:[%s191 + $0x68] sm:$0xff]
      %v211 = vld [vmem:[%s191 + $0x70] sm:$0xff]
      %v212 = vld [vmem:[%s191 + $0x78] sm:$0xff]
      %v213 = vld [vmem:[%s191 + $0x80] sm:$0xff]
      %v214 = vld [vmem:[%s191 + $0x88] sm:$0xff]
      %v215 = vld [vmem:[%s191 + $0x90] sm:$0xff]
      %v216 = vld [vmem:[%s191 + $0x98] sm:$0xff]
      %v217 = vld [vmem:[%s191 + $0xa0] sm:$0xff]
      %v218 = vld [vmem:[%s191 + $0xa8] sm:$0xff]
      %v219 = vld [vmem:[%s191 + $0xb0] sm:$0xff]
      %v220 = vld [vmem:[%s191 + $0xb8] sm:$0xff]
      %v221 = vld [vmem:[%s191 + $0xc0] sm:$0xff]
      %v222 = vld [vmem:[%s191 + $0xc8] sm:$0xff]
      %v223 = vld [vmem:[%s191 + $0xd0] sm:$0xff]
      %v224 = vld [vmem:[%s191 + $0xd8] sm:$0xff]
      %v225 = vld [vmem:[%s191 + $0xe0] sm:$0xff]
      %v226 = vld [vmem:[%s191 + $0xe8] sm:$0xff]
      %v227 = vld [vmem:[%s191 + $0xf0] sm:$0xff]
      %v228 = vld [vmem:[%s191 + $0xf8] sm:$0xff]
      %v229 = vld [vmem:[%s191 + $0x100] sm:$0xff]
      %v230 = vld [vmem:[%s191 + $0x108] sm:$0xff]
      %v231 = vld [vmem:[%s191 + $0x110] sm:$0xff]
      %v232 = vld [vmem:[%s191 + $0x118] sm:$0xff]
      %v233 = vld [vmem:[%s191 + $0x120] sm:$0xff]
      %v234 = vld [vmem:[%s191 + $0x128] sm:$0xff]
      %v235 = vld [vmem:[%s191 + $0x130] sm:$0xff]
      %v236 = vld [vmem:[%s191 + $0x138] sm:$0xff]
      %v237 = vld [vmem:[%s191 + $0x140] sm:$0xff]
      %v238 = vld [vmem:[%s191 + $0x148] sm:$0xff]
      %v239 = vld [vmem:[%s191 + $0x150] sm:$0xff]
      %v240 = vld [vmem:[%s191 + $0x158] sm:$0xff]
      %v241 = vld [vmem:[%s191 + $0x160] sm:$0xff]
      %v242 = vld [vmem:[%s191 + $0x168] sm:$0xff]
      %v243 = vld [vmem:[%s191 + $0x170] sm:$0xff]
      %v244 = vld [vmem:[%s191 + $0x178] sm:$0xff]
      %v245 = vld [vmem:[%s191 + $0x180] sm:$0xff]
      %v246 = vld [vmem:[%s191 + $0x188] sm:$0xff]
      %v247 = vld [vmem:[%s191 + $0x190] sm:$0xff]
      %v248 = vld [vmem:[%s191 + $0x198] sm:$0xff]
      %v249 = vld [vmem:[%s191 + $0x1a0] sm:$0xff]
      %v250 = vld [vmem:[%s191 + $0x1a8] sm:$0xff]
      %v251 = vld [vmem:[%s191 + $0x1b0] sm:$0xff]
      %v252 = vld [vmem:[%s191 + $0x1b8] sm:$0xff]
      %v253 = vld [vmem:[%s191 + $0x1c0] sm:$0xff]
      %v254 = vld [vmem:[%s191 + $0x1c8] sm:$0xff]
      %v255 = vld [vmem:[%s191 + $0x1d0] sm:$0xff]
      %v256 = vld [vmem:[%s191 + $0x1d8] sm:$0xff]
      %v257 = vld [vmem:[%s191 + $0x1e0] sm:$0xff]
      %v258 = vld [vmem:[%s191 + $0x1e8] sm:$0xff]
      %v259 = vld [vmem:[%s191 + $0x1f0] sm:$0xff]
      %v260 = vld [vmem:[%s191 + $0x1f8] sm:$0xff]
      %v261 = vld [vmem:[%s191 + $0x200] sm:$0xff]
      %v262 = vld [vmem:[%s191 + $0x208] sm:$0xff]
      %v263 = vld [vmem:[%s191 + $0x210] sm:$0xff]
      %v264 = vld [vmem:[%s191 + $0x218] sm:$0xff]
      %v265 = vld [vmem:[%s191 + $0x220] sm:$0xff]
      %v266 = vld [vmem:[%s191 + $0x228] sm:$0xff]
      %v267 = vld [vmem:[%s191 + $0x230] sm:$0xff]
      %v268 = vld [vmem:[%s191 + $0x238] sm:$0xff]
      %v269 = vld [vmem:[%s191 + $0x240] sm:$0xff]
      %v270 = vld [vmem:[%s191 + $0x248] sm:$0xff]
      %v271 = vld [vmem:[%s191 + $0x250] sm:$0xff]
      %v272 = vld [vmem:[%s191 + $0x258] sm:$0xff]
      %v273 = vld [vmem:[%s191 + $0x260] sm:$0xff]
      %v274 = vld [vmem:[%s191 + $0x268] sm:$0xff]
      %v275 = vld [vmem:[%s191 + $0x270] sm:$0xff]
      %v276 = vld [vmem:[%s191 + $0x278] sm:$0xff]
      %v277 = vld [vmem:[%s191 + $0x280] sm:$0xff]
      %v278 = vld [vmem:[%s191 + $0x288] sm:$0xff]
      %v279 = vld [vmem:[%s191 + $0x290] sm:$0xff]
      %v280 = vld [vmem:[%s191 + $0x298] sm:$0xff]
      %v281 = vld [vmem:[%s191 + $0x2a0] sm:$0xff]
      %v282 = vld [vmem:[%s191 + $0x2a8] sm:$0xff]
      %v283 = vld [vmem:[%s191 + $0x2b0] sm:$0xff]
      %v284 = vld [vmem:[%s191 + $0x2b8] sm:$0xff]
      %v285 = vld [vmem:[%s191 + $0x2c0] sm:$0xff]
      %v286 = vld [vmem:[%s191 + $0x2c8] sm:$0xff]
      %v287 = vld [vmem:[%s191 + $0x2d0] sm:$0xff]
      %v288 = vld [vmem:[%s191 + $0x2d8] sm:$0xff]
      %v289 = vld [vmem:[%s191 + $0x2e0] sm:$0xff]
      %v290 = vld [vmem:[%s191 + $0x2e8] sm:$0xff]
      %v291 = vld [vmem:[%s191 + $0x2f0] sm:$0xff]
      %v292 = vld [vmem:[%s191 + $0x2f8] sm:$0xff]
      %v293 = vld [vmem:[%s191 + $0x300] sm:$0xff]
      %v294 = vld [vmem:[%s191 + $0x308] sm:$0xff]
      %v295 = vld [vmem:[%s191 + $0x310] sm:$0xff]
      %v296 = vld [vmem:[%s191 + $0x318] sm:$0xff]
      %v297 = vld [vmem:[%s191 + $0x320] sm:$0xff]
      %v298 = vld [vmem:[%s191 + $0x328] sm:$0xff]
      %v299 = vld [vmem:[%s191 + $0x330] sm:$0xff]
      %v300 = vld [vmem:[%s191 + $0x338] sm:$0xff]
      %v301 = vld [vmem:[%s191 + $0x340] sm:$0xff]
      %v302 = vld [vmem:[%s191 + $0x348] sm:$0xff]
      %v303 = vld [vmem:[%s191 + $0x350] sm:$0xff]
      %v304 = vld [vmem:[%s191 + $0x358] sm:$0xff]
      %v305 = vld [vmem:[%s191 + $0x360] sm:$0xff]
      %v306 = vld [vmem:[%s191 + $0x368] sm:$0xff]
      %v307 = vld [vmem:[%s191 + $0x370] sm:$0xff]
      %v308 = vld [vmem:[%s191 + $0x378] sm:$0xff]
      %v309 = vld [vmem:[%s191 + $0x380] sm:$0xff]
      %v310 = vld [vmem:[%s191 + $0x388] sm:$0xff]
      %v311 = vld [vmem:[%s191 + $0x390] sm:$0xff]
      %v312 = vld [vmem:[%s191 + $0x398] sm:$0xff]
      %v313 = vld [vmem:[%s191 + $0x3a0] sm:$0xff]
      %v314 = vld [vmem:[%s191 + $0x3a8] sm:$0xff]
      %v315 = vld [vmem:[%s191 + $0x3b0] sm:$0xff]
      %v316 = vld [vmem:[%s191 + $0x3b8] sm:$0xff]
      %v317 = vld [vmem:[%s191 + $0x3c0] sm:$0xff]
      %v318 = vld [vmem:[%s191 + $0x3c8] sm:$0xff]
      %v319 = vld [vmem:[%s191 + $0x3d0] sm:$0xff]
      %v320 = vld [vmem:[%s191 + $0x3d8] sm:$0xff]
      %v321 = vld [vmem:[%s191 + $0x3e0] sm:$0xff]
      %v322 = vld [vmem:[%s191 + $0x3e8] sm:$0xff]
      %v323 = vld [vmem:[%s191 + $0x3f0] sm:$0xff]
      %v324 = vld [vmem:[%s191 + $0x3f8] sm:$0xff]
      %v325 = vld [vmem:[%s191 + $0x400] sm:$0xff]
      %v326 = vld [vmem:[%s191 + $0x408] sm:$0xff]
      %v327 = vld [vmem:[%s191 + $0x410] sm:$0xff]
      %v328 = vld [vmem:[%s191 + $0x418] sm:$0xff]
      %v329 = vld [vmem:[%s191 + $0x420] sm:$0xff]
      %v330 = vld [vmem:[%s191 + $0x428] sm:$0xff]
      %v331 = vld [vmem:[%s191 + $0x430] sm:$0xff]
      %v332 = vld [vmem:[%s191 + $0x438] sm:$0xff]
      %v333 = vld [vmem:[%s191 + $0x440] sm:$0xff]
      %v334 = vld [vmem:[%s191 + $0x448] sm:$0xff]
      %v335 = vld [vmem:[%s191 + $0x450] sm:$0xff]
      %v336 = vld [vmem:[%s191 + $0x458] sm:$0xff]
      %v337 = vld [vmem:[%s191 + $0x460] sm:$0xff]
      %v338 = vld [vmem:[%s191 + $0x468] sm:$0xff]
      %v339 = vld [vmem:[%s191 + $0x470] sm:$0xff]
      %v340 = vld [vmem:[%s191 + $0x478] sm:$0xff]
      %v341 = vld [vmem:[%s191 + $0x480] sm:$0xff]
      %v342 = vld [vmem:[%s191 + $0x488] sm:$0xff]
      %v343 = vld [vmem:[%s191 + $0x490] sm:$0xff]
      %v344 = vld [vmem:[%s191 + $0x498] sm:$0xff]
      %v345 = vld [vmem:[%s191 + $0x4a0] sm:$0xff]
      %v346 = vld [vmem:[%s191 + $0x4a8] sm:$0xff]
      %v347 = vld [vmem:[%s191 + $0x4b0] sm:$0xff]
      %v348 = vld [vmem:[%s191 + $0x4b8] sm:$0xff]
      %v349 = vld [vmem:[%s191 + $0x4c0] sm:$0xff]
      %v350 = vld [vmem:[%s191 + $0x4c8] sm:$0xff]
      %v351 = vld [vmem:[%s191 + $0x4d0] sm:$0xff]
      %v352 = vld [vmem:[%s191 + $0x4d8] sm:$0xff]
      %v353 = vld [vmem:[%s191 + $0x4e0] sm:$0xff]
      %v354 = vld [vmem:[%s191 + $0x4e8] sm:$0xff]
      %v355 = vld [vmem:[%s191 + $0x4f0] sm:$0xff]
      %v356 = vld [vmem:[%s191 + $0x4f8] sm:$0xff]
      %v357 = vld [vmem:[%s191 + $0x500] sm:$0xff]
      %v358 = vld [vmem:[%s191 + $0x508] sm:$0xff]
      %v359 = vld [vmem:[%s191 + $0x510] sm:$0xff]
      %v360 = vld [vmem:[%s191 + $0x518] sm:$0xff]
      %v361 = vld [vmem:[%s191 + $0x520] sm:$0xff]
      %v362 = vld [vmem:[%s191 + $0x528] sm:$0xff]
      %v363 = vld [vmem:[%s191 + $0x530] sm:$0xff]
      %v364 = vld [vmem:[%s191 + $0x538] sm:$0xff]
      %v365 = vld [vmem:[%s191 + $0x540] sm:$0xff]
      %v366 = vld [vmem:[%s191 + $0x548] sm:$0xff]
      %v367 = vld [vmem:[%s191 + $0x550] sm:$0xff]
      %v368 = vld [vmem:[%s191 + $0x558] sm:$0xff]
      %v369 = vld [vmem:[%s191 + $0x560] sm:$0xff]
      %v370 = vld [vmem:[%s191 + $0x568] sm:$0xff]
      %v371 = vld [vmem:[%s191 + $0x570] sm:$0xff]
      %v372 = vld [vmem:[%s191 + $0x578] sm:$0xff]
      %v373 = vld [vmem:[%s191 + $0x580] sm:$0xff]
      %v374 = vld [vmem:[%s191 + $0x588] sm:$0xff]
      %v375 = vld [vmem:[%s191 + $0x590] sm:$0xff]
      %v376 = vld [vmem:[%s191 + $0x598] sm:$0xff]
      %v377 = vld [vmem:[%s191 + $0x5a0] sm:$0xff]
      %v378 = vld [vmem:[%s191 + $0x5a8] sm:$0xff]
      %v379 = vld [vmem:[%s191 + $0x5b0] sm:$0xff]
      %v380 = vld [vmem:[%s191 + $0x5b8] sm:$0xff]
      %v381 = vld [vmem:[%s191 + $0x5c0] sm:$0xff]
      %v382 = vld [vmem:[%s191 + $0x5c8] sm:$0xff]
      %v383 = vld [vmem:[%s191 + $0x5d0] sm:$0xff]
      %v384 = vld [vmem:[%s191 + $0x5d8] sm:$0xff]
      %v385 = vld [vmem:[%s191 + $0x5e0] sm:$0xff]
      %v386 = vld [vmem:[%s191 + $0x5e8] sm:$0xff]
      %v387 = vld [vmem:[%s191 + $0x5f0] sm:$0xff]
      %v388 = vld [vmem:[%s191 + $0x5f8] sm:$0xff]
      %v389 = vld [vmem:[%s191 + $0x600] sm:$0xff]
      %v390 = vld [vmem:[%s191 + $0x608] sm:$0xff]
      %v391 = vld [vmem:[%s191 + $0x610] sm:$0xff]
      %v392 = vld [vmem:[%s191 + $0x618] sm:$0xff]
      %v393 = vld [vmem:[%s191 + $0x620] sm:$0xff]
      %v394 = vld [vmem:[%s191 + $0x628] sm:$0xff]
      %v395 = vld [vmem:[%s191 + $0x630] sm:$0xff]
      %v396 = vld [vmem:[%s191 + $0x638] sm:$0xff]
      %v397 = vld [vmem:[%s191 + $0x640] sm:$0xff]
      %v398 = vld [vmem:[%s191 + $0x648] sm:$0xff]
      %v399 = vld [vmem:[%s191 + $0x650] sm:$0xff]
      %v400 = vld [vmem:[%s191 + $0x658] sm:$0xff]
      %v401 = vld [vmem:[%s191 + $0x660] sm:$0xff]
      %v402 = vld [vmem:[%s191 + $0x668] sm:$0xff]
      %v403 = vld [vmem:[%s191 + $0x670] sm:$0xff]
      %v404 = vld [vmem:[%s191 + $0x678] sm:$0xff]
      %v405 = vld [vmem:[%s191 + $0x680] sm:$0xff]
      %v406 = vld [vmem:[%s191 + $0x688] sm:$0xff]
      %v407 = vld [vmem:[%s191 + $0x690] sm:$0xff]
      %v408 = vld [vmem:[%s191 + $0x698] sm:$0xff]
      %v409 = vld [vmem:[%s191 + $0x6a0] sm:$0xff]
      %v410 = vld [vmem:[%s191 + $0x6a8] sm:$0xff]
      %v411 = vld [vmem:[%s191 + $0x6b0] sm:$0xff]
      %v412 = vld [vmem:[%s191 + $0x6b8] sm:$0xff]
      %v413 = vld [vmem:[%s191 + $0x6c0] sm:$0xff]
      %v414 = vld [vmem:[%s191 + $0x6c8] sm:$0xff]
      %v415 = vld [vmem:[%s191 + $0x6d0] sm:$0xff]
      %v416 = vld [vmem:[%s191 + $0x6d8] sm:$0xff]
      %v417 = vld [vmem:[%s191 + $0x6e0] sm:$0xff]
      %v418 = vld [vmem:[%s191 + $0x6e8] sm:$0xff]
      %v419 = vld [vmem:[%s191 + $0x6f0] sm:$0xff]
      %v420 = vld [vmem:[%s191 + $0x6f8] sm:$0xff]
      %v421 = vld [vmem:[%s191 + $0x700] sm:$0xff]
      %v422 = vld [vmem:[%s191 + $0x708] sm:$0xff]
      %v423 = vld [vmem:[%s191 + $0x710] sm:$0xff]
      %v424 = vld [vmem:[%s191 + $0x718] sm:$0xff]
      %v425 = vld [vmem:[%s191 + $0x720] sm:$0xff]
      %v426 = vld [vmem:[%s191 + $0x728] sm:$0xff]
      %v427 = vld [vmem:[%s191 + $0x730] sm:$0xff]
      %v428 = vld [vmem:[%s191 + $0x738] sm:$0xff]
      %v429 = vld [vmem:[%s191 + $0x740] sm:$0xff]
      %v430 = vld [vmem:[%s191 + $0x748] sm:$0xff]
      %v431 = vld [vmem:[%s191 + $0x750] sm:$0xff]
      %v432 = vld [vmem:[%s191 + $0x758] sm:$0xff]
      %v433 = vld [vmem:[%s191 + $0x760] sm:$0xff]
      %v434 = vld [vmem:[%s191 + $0x768] sm:$0xff]
      %v435 = vld [vmem:[%s191 + $0x770] sm:$0xff]
      %v436 = vld [vmem:[%s191 + $0x778] sm:$0xff]
      %v437 = vld [vmem:[%s191 + $0x780] sm:$0xff]
      %v438 = vld [vmem:[%s191 + $0x788] sm:$0xff]
      %v439 = vld [vmem:[%s191 + $0x790] sm:$0xff]
      %v440 = vld [vmem:[%s191 + $0x798] sm:$0xff]
      %v441 = vld [vmem:[%s191 + $0x7a0] sm:$0xff]
      %v442 = vld [vmem:[%s191 + $0x7a8] sm:$0xff]
      %v443 = vld [vmem:[%s191 + $0x7b0] sm:$0xff]
      %v444 = vld [vmem:[%s191 + $0x7b8] sm:$0xff]
      %v445 = vld [vmem:[%s191 + $0x7c0] sm:$0xff]
      %v446 = vld [vmem:[%s191 + $0x7c8] sm:$0xff]
      %v447 = vld [vmem:[%s191 + $0x7d0] sm:$0xff]
      %v448 = vld [vmem:[%s191 + $0x7d8] sm:$0xff]
      %v449 = vld [vmem:[%s191 + $0x7e0] sm:$0xff]
      %v450 = vld [vmem:[%s191 + $0x7e8] sm:$0xff]
      %v451 = vld [vmem:[%s191 + $0x7f0] sm:$0xff]
      %v452 = vld [vmem:[%s191 + $0x7f8] sm:$0xff]
      %v453 = vld [vmem:[%s1] sm:$0xff]
      %v455 = vunpack.c.l.b16 %v453
      %v456 = vunpack.c.h.b16 %v453
      %v457 = vpack.c.b16 %v455, %v455
      %v458 = vpack.c.b16 %v456, %v456
      %v717 = vunpack.c.l.b16 %v197
      %v718 = vunpack.c.h.b16 %v197
      %v719 = vunpack.c.l.b16 %v198
      %v720 = vunpack.c.h.b16 %v198
      %v721 = vunpack.c.l.b16 %v199
      %v722 = vunpack.c.h.b16 %v199
      %v723 = vunpack.c.l.b16 %v200
      %v724 = vunpack.c.h.b16 %v200
      %v725 = vunpack.c.l.b16 %v201
      %v726 = vunpack.c.h.b16 %v201
      %v727 = vunpack.c.l.b16 %v202
      %v728 = vunpack.c.h.b16 %v202
      %v729 = vunpack.c.l.b16 %v203
      %v730 = vunpack.c.h.b16 %v203
      %v731 = vunpack.c.l.b16 %v204
      %v732 = vunpack.c.h.b16 %v204
      %v733 = vunpack.c.l.b16 %v205
      %v734 = vunpack.c.h.b16 %v205
      %v735 = vunpack.c.l.b16 %v206
      %v736 = vunpack.c.h.b16 %v206
      %v737 = vunpack.c.l.b16 %v207
      %v738 = vunpack.c.h.b16 %v207
      %v739 = vunpack.c.l.b16 %v208
      %v740 = vunpack.c.h.b16 %v208
      %v741 = vunpack.c.l.b16 %v209
      %v742 = vunpack.c.h.b16 %v209
      %v743 = vunpack.c.l.b16 %v210
      %v744 = vunpack.c.h.b16 %v210
      %v745 = vunpack.c.l.b16 %v211
      %v746 = vunpack.c.h.b16 %v211
      %v747 = vunpack.c.l.b16 %v212
      %v748 = vunpack.c.h.b16 %v212
      %v749 = vunpack.c.l.b16 %v213
      %v750 = vunpack.c.h.b16 %v213
      %v751 = vunpack.c.l.b16 %v214
      %v752 = vunpack.c.h.b16 %v214
      %v753 = vunpack.c.l.b16 %v215
      %v754 = vunpack.c.h.b16 %v215
      %v755 = vunpack.c.l.b16 %v216
      %v756 = vunpack.c.h.b16 %v216
      %v757 = vunpack.c.l.b16 %v217
      %v758 = vunpack.c.h.b16 %v217
      %v759 = vunpack.c.l.b16 %v218
      %v760 = vunpack.c.h.b16 %v218
      %v761 = vunpack.c.l.b16 %v219
      %v762 = vunpack.c.h.b16 %v219
      %v763 = vunpack.c.l.b16 %v220
      %v764 = vunpack.c.h.b16 %v220
      %v765 = vunpack.c.l.b16 %v221
      %v766 = vunpack.c.h.b16 %v221
      %v767 = vunpack.c.l.b16 %v222
      %v768 = vunpack.c.h.b16 %v222
      %v769 = vunpack.c.l.b16 %v223
      %v770 = vunpack.c.h.b16 %v223
      %v771 = vunpack.c.l.b16 %v224
      %v772 = vunpack.c.h.b16 %v224
      %v773 = vunpack.c.l.b16 %v225
      %v774 = vunpack.c.h.b16 %v225
      %v775 = vunpack.c.l.b16 %v226
      %v776 = vunpack.c.h.b16 %v226
      %v777 = vunpack.c.l.b16 %v227
      %v778 = vunpack.c.h.b16 %v227
      %v779 = vunpack.c.l.b16 %v228
      %v780 = vunpack.c.h.b16 %v228
      %v781 = vunpack.c.l.b16 %v229
      %v782 = vunpack.c.h.b16 %v229
      %v783 = vunpack.c.l.b16 %v230
      %v784 = vunpack.c.h.b16 %v230
      %v785 = vunpack.c.l.b16 %v231
      %v786 = vunpack.c.h.b16 %v231
      %v787 = vunpack.c.l.b16 %v232
      %v788 = vunpack.c.h.b16 %v232
      %v789 = vunpack.c.l.b16 %v233
      %v790 = vunpack.c.h.b16 %v233
      %v791 = vunpack.c.l.b16 %v234
      %v792 = vunpack.c.h.b16 %v234
      %v793 = vunpack.c.l.b16 %v235
      %v794 = vunpack.c.h.b16 %v235
      %v795 = vunpack.c.l.b16 %v236
      %v796 = vunpack.c.h.b16 %v236
      %v797 = vunpack.c.l.b16 %v237
      %v798 = vunpack.c.h.b16 %v237
      %v799 = vunpack.c.l.b16 %v238
      %v800 = vunpack.c.h.b16 %v238
      %v801 = vunpack.c.l.b16 %v239
      %v802 = vunpack.c.h.b16 %v239
      %v803 = vunpack.c.l.b16 %v240
      %v804 = vunpack.c.h.b16 %v240
      %v805 = vunpack.c.l.b16 %v241
      %v806 = vunpack.c.h.b16 %v241
      %v807 = vunpack.c.l.b16 %v242
      %v808 = vunpack.c.h.b16 %v242
      %v809 = vunpack.c.l.b16 %v243
      %v810 = vunpack.c.h.b16 %v243
      %v811 = vunpack.c.l.b16 %v244
      %v812 = vunpack.c.h.b16 %v244
      %v813 = vunpack.c.l.b16 %v245
      %v814 = vunpack.c.h.b16 %v245
      %v815 = vunpack.c.l.b16 %v246
      %v816 = vunpack.c.h.b16 %v246
      %v817 = vunpack.c.l.b16 %v247
      %v818 = vunpack.c.h.b16 %v247
      %v819 = vunpack.c.l.b16 %v248
      %v820 = vunpack.c.h.b16 %v248
      %v821 = vunpack.c.l.b16 %v249
      %v822 = vunpack.c.h.b16 %v249
      %v823 = vunpack.c.l.b16 %v250
      %v824 = vunpack.c.h.b16 %v250
      %v825 = vunpack.c.l.b16 %v251
      %v826 = vunpack.c.h.b16 %v251
      %v827 = vunpack.c.l.b16 %v252
      %v828 = vunpack.c.h.b16 %v252
      %v829 = vunpack.c.l.b16 %v253
      %v830 = vunpack.c.h.b16 %v253
      %v831 = vunpack.c.l.b16 %v254
      %v832 = vunpack.c.h.b16 %v254
      %v833 = vunpack.c.l.b16 %v255
      %v834 = vunpack.c.h.b16 %v255
      %v835 = vunpack.c.l.b16 %v256
      %v836 = vunpack.c.h.b16 %v256
      %v837 = vunpack.c.l.b16 %v257
      %v838 = vunpack.c.h.b16 %v257
      %v839 = vunpack.c.l.b16 %v258
      %v840 = vunpack.c.h.b16 %v258
      %v841 = vunpack.c.l.b16 %v259
      %v842 = vunpack.c.h.b16 %v259
      %v843 = vunpack.c.l.b16 %v260
      %v844 = vunpack.c.h.b16 %v260
      %v845 = vunpack.c.l.b16 %v261
      %v846 = vunpack.c.h.b16 %v261
      %v847 = vunpack.c.l.b16 %v262
      %v848 = vunpack.c.h.b16 %v262
      %v849 = vunpack.c.l.b16 %v263
      %v850 = vunpack.c.h.b16 %v263
      %v851 = vunpack.c.l.b16 %v264
      %v852 = vunpack.c.h.b16 %v264
      %v853 = vunpack.c.l.b16 %v265
      %v854 = vunpack.c.h.b16 %v265
      %v855 = vunpack.c.l.b16 %v266
      %v856 = vunpack.c.h.b16 %v266
      %v857 = vunpack.c.l.b16 %v267
      %v858 = vunpack.c.h.b16 %v267
      %v859 = vunpack.c.l.b16 %v268
      %v860 = vunpack.c.h.b16 %v268
      %v861 = vunpack.c.l.b16 %v269
      %v862 = vunpack.c.h.b16 %v269
      %v863 = vunpack.c.l.b16 %v270
      %v864 = vunpack.c.h.b16 %v270
      %v865 = vunpack.c.l.b16 %v271
      %v866 = vunpack.c.h.b16 %v271
      %v867 = vunpack.c.l.b16 %v272
      %v868 = vunpack.c.h.b16 %v272
      %v869 = vunpack.c.l.b16 %v273
      %v870 = vunpack.c.h.b16 %v273
      %v871 = vunpack.c.l.b16 %v274
      %v872 = vunpack.c.h.b16 %v274
      %v873 = vunpack.c.l.b16 %v275
      %v874 = vunpack.c.h.b16 %v275
      %v875 = vunpack.c.l.b16 %v276
      %v876 = vunpack.c.h.b16 %v276
      %v877 = vunpack.c.l.b16 %v277
      %v878 = vunpack.c.h.b16 %v277
      %v879 = vunpack.c.l.b16 %v278
      %v880 = vunpack.c.h.b16 %v278
      %v881 = vunpack.c.l.b16 %v279
      %v882 = vunpack.c.h.b16 %v279
      %v883 = vunpack.c.l.b16 %v280
      %v884 = vunpack.c.h.b16 %v280
      %v885 = vunpack.c.l.b16 %v281
      %v886 = vunpack.c.h.b16 %v281
      %v887 = vunpack.c.l.b16 %v282
      %v888 = vunpack.c.h.b16 %v282
      %v889 = vunpack.c.l.b16 %v283
      %v890 = vunpack.c.h.b16 %v283
      %v891 = vunpack.c.l.b16 %v284
      %v892 = vunpack.c.h.b16 %v284
      %v893 = vunpack.c.l.b16 %v285
      %v894 = vunpack.c.h.b16 %v285
      %v895 = vunpack.c.l.b16 %v286
      %v896 = vunpack.c.h.b16 %v286
      %v897 = vunpack.c.l.b16 %v287
      %v898 = vunpack.c.h.b16 %v287
      %v899 = vunpack.c.l.b16 %v288
      %v900 = vunpack.c.h.b16 %v288
      %v901 = vunpack.c.l.b16 %v289
      %v902 = vunpack.c.h.b16 %v289
      %v903 = vunpack.c.l.b16 %v290
      %v904 = vunpack.c.h.b16 %v290
      %v905 = vunpack.c.l.b16 %v291
      %v906 = vunpack.c.h.b16 %v291
      %v907 = vunpack.c.l.b16 %v292
      %v908 = vunpack.c.h.b16 %v292
      %v909 = vunpack.c.l.b16 %v293
      %v910 = vunpack.c.h.b16 %v293
      %v911 = vunpack.c.l.b16 %v294
      %v912 = vunpack.c.h.b16 %v294
      %v913 = vunpack.c.l.b16 %v295
      %v914 = vunpack.c.h.b16 %v295
      %v915 = vunpack.c.l.b16 %v296
      %v916 = vunpack.c.h.b16 %v296
      %v917 = vunpack.c.l.b16 %v297
      %v918 = vunpack.c.h.b16 %v297
      %v919 = vunpack.c.l.b16 %v298
      %v920 = vunpack.c.h.b16 %v298
      %v921 = vunpack.c.l.b16 %v299
      %v922 = vunpack.c.h.b16 %v299
      %v923 = vunpack.c.l.b16 %v300
      %v924 = vunpack.c.h.b16 %v300
      %v925 = vunpack.c.l.b16 %v301
      %v926 = vunpack.c.h.b16 %v301
      %v927 = vunpack.c.l.b16 %v302
      %v928 = vunpack.c.h.b16 %v302
      %v929 = vunpack.c.l.b16 %v303
      %v930 = vunpack.c.h.b16 %v303
      %v931 = vunpack.c.l.b16 %v304
      %v932 = vunpack.c.h.b16 %v304
      %v933 = vunpack.c.l.b16 %v305
      %v934 = vunpack.c.h.b16 %v305
      %v935 = vunpack.c.l.b16 %v306
      %v936 = vunpack.c.h.b16 %v306
      %v937 = vunpack.c.l.b16 %v307
      %v938 = vunpack.c.h.b16 %v307
      %v939 = vunpack.c.l.b16 %v308
      %v940 = vunpack.c.h.b16 %v308
      %v941 = vunpack.c.l.b16 %v309
      %v942 = vunpack.c.h.b16 %v309
      %v943 = vunpack.c.l.b16 %v310
      %v944 = vunpack.c.h.b16 %v310
      %v945 = vunpack.c.l.b16 %v311
      %v946 = vunpack.c.h.b16 %v311
      %v947 = vunpack.c.l.b16 %v312
      %v948 = vunpack.c.h.b16 %v312
      %v949 = vunpack.c.l.b16 %v313
      %v950 = vunpack.c.h.b16 %v313
      %v951 = vunpack.c.l.b16 %v314
      %v952 = vunpack.c.h.b16 %v314
      %v953 = vunpack.c.l.b16 %v315
      %v954 = vunpack.c.h.b16 %v315
      %v955 = vunpack.c.l.b16 %v316
      %v956 = vunpack.c.h.b16 %v316
      %v957 = vunpack.c.l.b16 %v317
      %v958 = vunpack.c.h.b16 %v317
      %v959 = vunpack.c.l.b16 %v318
      %v960 = vunpack.c.h.b16 %v318
      %v961 = vunpack.c.l.b16 %v319
      %v962 = vunpack.c.h.b16 %v319
      %v963 = vunpack.c.l.b16 %v320
      %v964 = vunpack.c.h.b16 %v320
      %v965 = vunpack.c.l.b16 %v321
      %v966 = vunpack.c.h.b16 %v321
      %v967 = vunpack.c.l.b16 %v322
      %v968 = vunpack.c.h.b16 %v322
      %v969 = vunpack.c.l.b16 %v323
      %v970 = vunpack.c.h.b16 %v323
      %v971 = vunpack.c.l.b16 %v324
      %v972 = vunpack.c.h.b16 %v324
      %v973 = vunpack.c.l.b16 %v325
      %v974 = vunpack.c.h.b16 %v325
      %v975 = vunpack.c.l.b16 %v326
      %v976 = vunpack.c.h.b16 %v326
      %v977 = vunpack.c.l.b16 %v327
      %v978 = vunpack.c.h.b16 %v327
      %v979 = vunpack.c.l.b16 %v328
      %v980 = vunpack.c.h.b16 %v328
      %v981 = vunpack.c.l.b16 %v329
      %v982 = vunpack.c.h.b16 %v329
      %v983 = vunpack.c.l.b16 %v330
      %v984 = vunpack.c.h.b16 %v330
      %v985 = vunpack.c.l.b16 %v331
      %v986 = vunpack.c.h.b16 %v331
      %v987 = vunpack.c.l.b16 %v332
      %v988 = vunpack.c.h.b16 %v332
      %v989 = vunpack.c.l.b16 %v333
      %v990 = vunpack.c.h.b16 %v333
      %v991 = vunpack.c.l.b16 %v334
      %v992 = vunpack.c.h.b16 %v334
      %v993 = vunpack.c.l.b16 %v335
      %v994 = vunpack.c.h.b16 %v335
      %v995 = vunpack.c.l.b16 %v336
      %v996 = vunpack.c.h.b16 %v336
      %v997 = vunpack.c.l.b16 %v337
      %v998 = vunpack.c.h.b16 %v337
      %v999 = vunpack.c.l.b16 %v338
      %v1000 = vunpack.c.h.b16 %v338
      %v1001 = vunpack.c.l.b16 %v339
      %v1002 = vunpack.c.h.b16 %v339
      %v1003 = vunpack.c.l.b16 %v340
      %v1004 = vunpack.c.h.b16 %v340
      %v1005 = vunpack.c.l.b16 %v341
      %v1006 = vunpack.c.h.b16 %v341
      %v1007 = vunpack.c.l.b16 %v342
      %v1008 = vunpack.c.h.b16 %v342
      %v1009 = vunpack.c.l.b16 %v343
      %v1010 = vunpack.c.h.b16 %v343
      %v1011 = vunpack.c.l.b16 %v344
      %v1012 = vunpack.c.h.b16 %v344
      %v1013 = vunpack.c.l.b16 %v345
      %v1014 = vunpack.c.h.b16 %v345
      %v1015 = vunpack.c.l.b16 %v346
      %v1016 = vunpack.c.h.b16 %v346
      %v1017 = vunpack.c.l.b16 %v347
      %v1018 = vunpack.c.h.b16 %v347
      %v1019 = vunpack.c.l.b16 %v348
      %v1020 = vunpack.c.h.b16 %v348
      %v1021 = vunpack.c.l.b16 %v349
      %v1022 = vunpack.c.h.b16 %v349
      %v1023 = vunpack.c.l.b16 %v350
      %v1024 = vunpack.c.h.b16 %v350
      %v1025 = vunpack.c.l.b16 %v351
      %v1026 = vunpack.c.h.b16 %v351
      %v1027 = vunpack.c.l.b16 %v352
      %v1028 = vunpack.c.h.b16 %v352
      %v1029 = vunpack.c.l.b16 %v353
      %v1030 = vunpack.c.h.b16 %v353
      %v1031 = vunpack.c.l.b16 %v354
      %v1032 = vunpack.c.h.b16 %v354
      %v1033 = vunpack.c.l.b16 %v355
      %v1034 = vunpack.c.h.b16 %v355
      %v1035 = vunpack.c.l.b16 %v356
      %v1036 = vunpack.c.h.b16 %v356
      %v1037 = vunpack.c.l.b16 %v357
      %v1038 = vunpack.c.h.b16 %v357
      %v1039 = vunpack.c.l.b16 %v358
      %v1040 = vunpack.c.h.b16 %v358
      %v1041 = vunpack.c.l.b16 %v359
      %v1042 = vunpack.c.h.b16 %v359
      %v1043 = vunpack.c.l.b16 %v360
      %v1044 = vunpack.c.h.b16 %v360
      %v1045 = vunpack.c.l.b16 %v361
      %v1046 = vunpack.c.h.b16 %v361
      %v1047 = vunpack.c.l.b16 %v362
      %v1048 = vunpack.c.h.b16 %v362
      %v1049 = vunpack.c.l.b16 %v363
      %v1050 = vunpack.c.h.b16 %v363
      %v1051 = vunpack.c.l.b16 %v364
      %v1052 = vunpack.c.h.b16 %v364
      %v1053 = vunpack.c.l.b16 %v365
      %v1054 = vunpack.c.h.b16 %v365
      %v1055 = vunpack.c.l.b16 %v366
      %v1056 = vunpack.c.h.b16 %v366
      %v1057 = vunpack.c.l.b16 %v367
      %v1058 = vunpack.c.h.b16 %v367
      %v1059 = vunpack.c.l.b16 %v368
      %v1060 = vunpack.c.h.b16 %v368
      %v1061 = vunpack.c.l.b16 %v369
      %v1062 = vunpack.c.h.b16 %v369
      %v1063 = vunpack.c.l.b16 %v370
      %v1064 = vunpack.c.h.b16 %v370
      %v1065 = vunpack.c.l.b16 %v371
      %v1066 = vunpack.c.h.b16 %v371
      %v1067 = vunpack.c.l.b16 %v372
      %v1068 = vunpack.c.h.b16 %v372
      %v1069 = vunpack.c.l.b16 %v373
      %v1070 = vunpack.c.h.b16 %v373
      %v1071 = vunpack.c.l.b16 %v374
      %v1072 = vunpack.c.h.b16 %v374
      %v1073 = vunpack.c.l.b16 %v375
      %v1074 = vunpack.c.h.b16 %v375
      %v1075 = vunpack.c.l.b16 %v376
      %v1076 = vunpack.c.h.b16 %v376
      %v1077 = vunpack.c.l.b16 %v377
      %v1078 = vunpack.c.h.b16 %v377
      %v1079 = vunpack.c.l.b16 %v378
      %v1080 = vunpack.c.h.b16 %v378
      %v1081 = vunpack.c.l.b16 %v379
      %v1082 = vunpack.c.h.b16 %v379
      %v1083 = vunpack.c.l.b16 %v380
      %v1084 = vunpack.c.h.b16 %v380
      %v1085 = vunpack.c.l.b16 %v381
      %v1086 = vunpack.c.h.b16 %v381
      %v1087 = vunpack.c.l.b16 %v382
      %v1088 = vunpack.c.h.b16 %v382
      %v1089 = vunpack.c.l.b16 %v383
      %v1090 = vunpack.c.h.b16 %v383
      %v1091 = vunpack.c.l.b16 %v384
      %v1092 = vunpack.c.h.b16 %v384
      %v1093 = vunpack.c.l.b16 %v385
      %v1094 = vunpack.c.h.b16 %v385
      %v1095 = vunpack.c.l.b16 %v386
      %v1096 = vunpack.c.h.b16 %v386
      %v1097 = vunpack.c.l.b16 %v387
      %v1098 = vunpack.c.h.b16 %v387
      %v1099 = vunpack.c.l.b16 %v388
      %v1100 = vunpack.c.h.b16 %v388
      %v1101 = vunpack.c.l.b16 %v389
      %v1102 = vunpack.c.h.b16 %v389
      %v1103 = vunpack.c.l.b16 %v390
      %v1104 = vunpack.c.h.b16 %v390
      %v1105 = vunpack.c.l.b16 %v391
      %v1106 = vunpack.c.h.b16 %v391
      %v1107 = vunpack.c.l.b16 %v392
      %v1108 = vunpack.c.h.b16 %v392
      %v1109 = vunpack.c.l.b16 %v393
      %v1110 = vunpack.c.h.b16 %v393
      %v1111 = vunpack.c.l.b16 %v394
      %v1112 = vunpack.c.h.b16 %v394
      %v1113 = vunpack.c.l.b16 %v395
      %v1114 = vunpack.c.h.b16 %v395
      %v1115 = vunpack.c.l.b16 %v396
      %v1116 = vunpack.c.h.b16 %v396
      %v1117 = vunpack.c.l.b16 %v397
      %v1118 = vunpack.c.h.b16 %v397
      %v1119 = vunpack.c.l.b16 %v398
      %v1120 = vunpack.c.h.b16 %v398
      %v1121 = vunpack.c.l.b16 %v399
      %v1122 = vunpack.c.h.b16 %v399
      %v1123 = vunpack.c.l.b16 %v400
      %v1124 = vunpack.c.h.b16 %v400
      %v1125 = vunpack.c.l.b16 %v401
      %v1126 = vunpack.c.h.b16 %v401
      %v1127 = vunpack.c.l.b16 %v402
      %v1128 = vunpack.c.h.b16 %v402
      %v1129 = vunpack.c.l.b16 %v403
      %v1130 = vunpack.c.h.b16 %v403
      %v1131 = vunpack.c.l.b16 %v404
      %v1132 = vunpack.c.h.b16 %v404
      %v1133 = vunpack.c.l.b16 %v405
      %v1134 = vunpack.c.h.b16 %v405
      %v1135 = vunpack.c.l.b16 %v406
      %v1136 = vunpack.c.h.b16 %v406
      %v1137 = vunpack.c.l.b16 %v407
      %v1138 = vunpack.c.h.b16 %v407
      %v1139 = vunpack.c.l.b16 %v408
      %v1140 = vunpack.c.h.b16 %v408
      %v1141 = vunpack.c.l.b16 %v409
      %v1142 = vunpack.c.h.b16 %v409
      %v1143 = vunpack.c.l.b16 %v410
      %v1144 = vunpack.c.h.b16 %v410
      %v1145 = vunpack.c.l.b16 %v411
      %v1146 = vunpack.c.h.b16 %v411
      %v1147 = vunpack.c.l.b16 %v412
      %v1148 = vunpack.c.h.b16 %v412
      %v1149 = vunpack.c.l.b16 %v413
      %v1150 = vunpack.c.h.b16 %v413
      %v1151 = vunpack.c.l.b16 %v414
      %v1152 = vunpack.c.h.b16 %v414
      %v1153 = vunpack.c.l.b16 %v415
      %v1154 = vunpack.c.h.b16 %v415
      %v1155 = vunpack.c.l.b16 %v416
      %v1156 = vunpack.c.h.b16 %v416
      %v1157 = vunpack.c.l.b16 %v417
      %v1158 = vunpack.c.h.b16 %v417
      %v1159 = vunpack.c.l.b16 %v418
      %v1160 = vunpack.c.h.b16 %v418
      %v1161 = vunpack.c.l.b16 %v419
      %v1162 = vunpack.c.h.b16 %v419
      %v1163 = vunpack.c.l.b16 %v420
      %v1164 = vunpack.c.h.b16 %v420
      %v1165 = vunpack.c.l.b16 %v421
      %v1166 = vunpack.c.h.b16 %v421
      %v1167 = vunpack.c.l.b16 %v422
      %v1168 = vunpack.c.h.b16 %v422
      %v1169 = vunpack.c.l.b16 %v423
      %v1170 = vunpack.c.h.b16 %v423
      %v1171 = vunpack.c.l.b16 %v424
      %v1172 = vunpack.c.h.b16 %v424
      %v1173 = vunpack.c.l.b16 %v425
      %v1174 = vunpack.c.h.b16 %v425
      %v1175 = vunpack.c.l.b16 %v426
      %v1176 = vunpack.c.h.b16 %v426
      %v1177 = vunpack.c.l.b16 %v427
      %v1178 = vunpack.c.h.b16 %v427
      %v1179 = vunpack.c.l.b16 %v428
      %v1180 = vunpack.c.h.b16 %v428
      %v1181 = vunpack.c.l.b16 %v429
      %v1182 = vunpack.c.h.b16 %v429
      %v1183 = vunpack.c.l.b16 %v430
      %v1184 = vunpack.c.h.b16 %v430
      %v1185 = vunpack.c.l.b16 %v431
      %v1186 = vunpack.c.h.b16 %v431
      %v1187 = vunpack.c.l.b16 %v432
      %v1188 = vunpack.c.h.b16 %v432
      %v1189 = vunpack.c.l.b16 %v433
      %v1190 = vunpack.c.h.b16 %v433
      %v1191 = vunpack.c.l.b16 %v434
      %v1192 = vunpack.c.h.b16 %v434
      %v1193 = vunpack.c.l.b16 %v435
      %v1194 = vunpack.c.h.b16 %v435
      %v1195 = vunpack.c.l.b16 %v436
      %v1196 = vunpack.c.h.b16 %v436
      %v1197 = vunpack.c.l.b16 %v437
      %v1198 = vunpack.c.h.b16 %v437
      %v1199 = vunpack.c.l.b16 %v438
      %v1200 = vunpack.c.h.b16 %v438
      %v1201 = vunpack.c.l.b16 %v439
      %v1202 = vunpack.c.h.b16 %v439
      %v1203 = vunpack.c.l.b16 %v440
      %v1204 = vunpack.c.h.b16 %v440
      %v1205 = vunpack.c.l.b16 %v441
      %v1206 = vunpack.c.h.b16 %v441
      %v1207 = vunpack.c.l.b16 %v442
      %v1208 = vunpack.c.h.b16 %v442
      %v1209 = vunpack.c.l.b16 %v443
      %v1210 = vunpack.c.h.b16 %v443
      %v1211 = vunpack.c.l.b16 %v444
      %v1212 = vunpack.c.h.b16 %v444
      %v1213 = vunpack.c.l.b16 %v445
      %v1214 = vunpack.c.h.b16 %v445
      %v1215 = vunpack.c.l.b16 %v446
      %v1216 = vunpack.c.h.b16 %v446
      %v1217 = vunpack.c.l.b16 %v447
      %v1218 = vunpack.c.h.b16 %v447
      %v1219 = vunpack.c.l.b16 %v448
      %v1220 = vunpack.c.h.b16 %v448
      %v1221 = vunpack.c.l.b16 %v449
      %v1222 = vunpack.c.h.b16 %v449
      %v1223 = vunpack.c.l.b16 %v450
      %v1224 = vunpack.c.h.b16 %v450
      %v1225 = vunpack.c.l.b16 %v451
      %v1226 = vunpack.c.h.b16 %v451
      %v1227 = vunpack.c.l.b16 %v452
      %v1228 = vunpack.c.h.b16 %v452
      %v1229 = vpack.c.b16 %v719, %v717
      %v1230 = vpack.c.b16 %v720, %v718
      %v1231 = vpack.c.b16 %v723, %v721
      %v1232 = vpack.c.b16 %v724, %v722
      %v1233 = vpack.c.b16 %v727, %v725
      %v1234 = vpack.c.b16 %v728, %v726
      %v1235 = vpack.c.b16 %v731, %v729
      %v1236 = vpack.c.b16 %v732, %v730
      %v1237 = vpack.c.b16 %v735, %v733
      %v1238 = vpack.c.b16 %v736, %v734
      %v1239 = vpack.c.b16 %v739, %v737
      %v1240 = vpack.c.b16 %v740, %v738
      %v1241 = vpack.c.b16 %v743, %v741
      %v1242 = vpack.c.b16 %v744, %v742
      %v1243 = vpack.c.b16 %v747, %v745
      %v1244 = vpack.c.b16 %v748, %v746
      %v1245 = vpack.c.b16 %v751, %v749
      %v1246 = vpack.c.b16 %v752, %v750
      %v1247 = vpack.c.b16 %v755, %v753
      %v1248 = vpack.c.b16 %v756, %v754
      %v1249 = vpack.c.b16 %v759, %v757
      %v1250 = vpack.c.b16 %v760, %v758
      %v1251 = vpack.c.b16 %v763, %v761
      %v1252 = vpack.c.b16 %v764, %v762
      %v1253 = vpack.c.b16 %v767, %v765
      %v1254 = vpack.c.b16 %v768, %v766
      %v1255 = vpack.c.b16 %v771, %v769
      %v1256 = vpack.c.b16 %v772, %v770
      %v1257 = vpack.c.b16 %v775, %v773
      %v1258 = vpack.c.b16 %v776, %v774
      %v1259 = vpack.c.b16 %v779, %v777
      %v1260 = vpack.c.b16 %v780, %v778
      %v1261 = vpack.c.b16 %v783, %v781
      %v1262 = vpack.c.b16 %v784, %v782
      %v1263 = vpack.c.b16 %v787, %v785
      %v1264 = vpack.c.b16 %v788, %v786
      %v1265 = vpack.c.b16 %v791, %v789
      %v1266 = vpack.c.b16 %v792, %v790
      %v1267 = vpack.c.b16 %v795, %v793
      %v1268 = vpack.c.b16 %v796, %v794
      %v1269 = vpack.c.b16 %v799, %v797
      %v1270 = vpack.c.b16 %v800, %v798
      %v1271 = vpack.c.b16 %v803, %v801
      %v1272 = vpack.c.b16 %v804, %v802
      %v1273 = vpack.c.b16 %v807, %v805
      %v1274 = vpack.c.b16 %v808, %v806
      %v1275 = vpack.c.b16 %v811, %v809
      %v1276 = vpack.c.b16 %v812, %v810
      %v1277 = vpack.c.b16 %v815, %v813
      %v1278 = vpack.c.b16 %v816, %v814
      %v1279 = vpack.c.b16 %v819, %v817
      %v1280 = vpack.c.b16 %v820, %v818
      %v1281 = vpack.c.b16 %v823, %v821
      %v1282 = vpack.c.b16 %v824, %v822
      %v1283 = vpack.c.b16 %v827, %v825
      %v1284 = vpack.c.b16 %v828, %v826
      %v1285 = vpack.c.b16 %v831, %v829
      %v1286 = vpack.c.b16 %v832, %v830
      %v1287 = vpack.c.b16 %v835, %v833
      %v1288 = vpack.c.b16 %v836, %v834
      %v1289 = vpack.c.b16 %v839, %v837
      %v1290 = vpack.c.b16 %v840, %v838
      %v1291 = vpack.c.b16 %v843, %v841
      %v1292 = vpack.c.b16 %v844, %v842
      %v1293 = vpack.c.b16 %v847, %v845
      %v1294 = vpack.c.b16 %v848, %v846
      %v1295 = vpack.c.b16 %v851, %v849
      %v1296 = vpack.c.b16 %v852, %v850
      %v1297 = vpack.c.b16 %v855, %v853
      %v1298 = vpack.c.b16 %v856, %v854
      %v1299 = vpack.c.b16 %v859, %v857
      %v1300 = vpack.c.b16 %v860, %v858
      %v1301 = vpack.c.b16 %v863, %v861
      %v1302 = vpack.c.b16 %v864, %v862
      %v1303 = vpack.c.b16 %v867, %v865
      %v1304 = vpack.c.b16 %v868, %v866
      %v1305 = vpack.c.b16 %v871, %v869
      %v1306 = vpack.c.b16 %v872, %v870
      %v1307 = vpack.c.b16 %v875, %v873
      %v1308 = vpack.c.b16 %v876, %v874
      %v1309 = vpack.c.b16 %v879, %v877
      %v1310 = vpack.c.b16 %v880, %v878
      %v1311 = vpack.c.b16 %v883, %v881
      %v1312 = vpack.c.b16 %v884, %v882
      %v1313 = vpack.c.b16 %v887, %v885
      %v1314 = vpack.c.b16 %v888, %v886
      %v1315 = vpack.c.b16 %v891, %v889
      %v1316 = vpack.c.b16 %v892, %v890
      %v1317 = vpack.c.b16 %v895, %v893
      %v1318 = vpack.c.b16 %v896, %v894
      %v1319 = vpack.c.b16 %v899, %v897
      %v1320 = vpack.c.b16 %v900, %v898
      %v1321 = vpack.c.b16 %v903, %v901
      %v1322 = vpack.c.b16 %v904, %v902
      %v1323 = vpack.c.b16 %v907, %v905
      %v1324 = vpack.c.b16 %v908, %v906
      %v1325 = vpack.c.b16 %v911, %v909
      %v1326 = vpack.c.b16 %v912, %v910
      %v1327 = vpack.c.b16 %v915, %v913
      %v1328 = vpack.c.b16 %v916, %v914
      %v1329 = vpack.c.b16 %v919, %v917
      %v1330 = vpack.c.b16 %v920, %v918
      %v1331 = vpack.c.b16 %v923, %v921
      %v1332 = vpack.c.b16 %v924, %v922
      %v1333 = vpack.c.b16 %v927, %v925
      %v1334 = vpack.c.b16 %v928, %v926
      %v1335 = vpack.c.b16 %v931, %v929
      %v1336 = vpack.c.b16 %v932, %v930
      %v1337 = vpack.c.b16 %v935, %v933
      %v1338 = vpack.c.b16 %v936, %v934
      %v1339 = vpack.c.b16 %v939, %v937
      %v1340 = vpack.c.b16 %v940, %v938
      %v1341 = vpack.c.b16 %v943, %v941
      %v1342 = vpack.c.b16 %v944, %v942
      %v1343 = vpack.c.b16 %v947, %v945
      %v1344 = vpack.c.b16 %v948, %v946
      %v1345 = vpack.c.b16 %v951, %v949
      %v1346 = vpack.c.b16 %v952, %v950
      %v1347 = vpack.c.b16 %v955, %v953
      %v1348 = vpack.c.b16 %v956, %v954
      %v1349 = vpack.c.b16 %v959, %v957
      %v1350 = vpack.c.b16 %v960, %v958
      %v1351 = vpack.c.b16 %v963, %v961
      %v1352 = vpack.c.b16 %v964, %v962
      %v1353 = vpack.c.b16 %v967, %v965
      %v1354 = vpack.c.b16 %v968, %v966
      %v1355 = vpack.c.b16 %v971, %v969
      %v1356 = vpack.c.b16 %v972, %v970
      %v1357 = vpack.c.b16 %v975, %v973
      %v1358 = vpack.c.b16 %v976, %v974
      %v1359 = vpack.c.b16 %v979, %v977
      %v1360 = vpack.c.b16 %v980, %v978
      %v1361 = vpack.c.b16 %v983, %v981
      %v1362 = vpack.c.b16 %v984, %v982
      %v1363 = vpack.c.b16 %v987, %v985
      %v1364 = vpack.c.b16 %v988, %v986
      %v1365 = vpack.c.b16 %v991, %v989
      %v1366 = vpack.c.b16 %v992, %v990
      %v1367 = vpack.c.b16 %v995, %v993
      %v1368 = vpack.c.b16 %v996, %v994
      %v1369 = vpack.c.b16 %v999, %v997
      %v1370 = vpack.c.b16 %v1000, %v998
      %v1371 = vpack.c.b16 %v1003, %v1001
      %v1372 = vpack.c.b16 %v1004, %v1002
      %v1373 = vpack.c.b16 %v1007, %v1005
      %v1374 = vpack.c.b16 %v1008, %v1006
      %v1375 = vpack.c.b16 %v1011, %v1009
      %v1376 = vpack.c.b16 %v1012, %v1010
      %v1377 = vpack.c.b16 %v1015, %v1013
      %v1378 = vpack.c.b16 %v1016, %v1014
      %v1379 = vpack.c.b16 %v1019, %v1017
      %v1380 = vpack.c.b16 %v1020, %v1018
      %v1381 = vpack.c.b16 %v1023, %v1021
      %v1382 = vpack.c.b16 %v1024, %v1022
      %v1383 = vpack.c.b16 %v1027, %v1025
      %v1384 = vpack.c.b16 %v1028, %v1026
      %v1385 = vpack.c.b16 %v1031, %v1029
      %v1386 = vpack.c.b16 %v1032, %v1030
      %v1387 = vpack.c.b16 %v1035, %v1033
      %v1388 = vpack.c.b16 %v1036, %v1034
      %v1389 = vpack.c.b16 %v1039, %v1037
      %v1390 = vpack.c.b16 %v1040, %v1038
      %v1391 = vpack.c.b16 %v1043, %v1041
      %v1392 = vpack.c.b16 %v1044, %v1042
      %v1393 = vpack.c.b16 %v1047, %v1045
      %v1394 = vpack.c.b16 %v1048, %v1046
      %v1395 = vpack.c.b16 %v1051, %v1049
      %v1396 = vpack.c.b16 %v1052, %v1050
      %v1397 = vpack.c.b16 %v1055, %v1053
      %v1398 = vpack.c.b16 %v1056, %v1054
      %v1399 = vpack.c.b16 %v1059, %v1057
      %v1400 = vpack.c.b16 %v1060, %v1058
      %v1401 = vpack.c.b16 %v1063, %v1061
      %v1402 = vpack.c.b16 %v1064, %v1062
      %v1403 = vpack.c.b16 %v1067, %v1065
      %v1404 = vpack.c.b16 %v1068, %v1066
      %v1405 = vpack.c.b16 %v1071, %v1069
      %v1406 = vpack.c.b16 %v1072, %v1070
      %v1407 = vpack.c.b16 %v1075, %v1073
      %v1408 = vpack.c.b16 %v1076, %v1074
      %v1409 = vpack.c.b16 %v1079, %v1077
      %v1410 = vpack.c.b16 %v1080, %v1078
      %v1411 = vpack.c.b16 %v1083, %v1081
      %v1412 = vpack.c.b16 %v1084, %v1082
      %v1413 = vpack.c.b16 %v1087, %v1085
      %v1414 = vpack.c.b16 %v1088, %v1086
      %v1415 = vpack.c.b16 %v1091, %v1089
      %v1416 = vpack.c.b16 %v1092, %v1090
      %v1417 = vpack.c.b16 %v1095, %v1093
      %v1418 = vpack.c.b16 %v1096, %v1094
      %v1419 = vpack.c.b16 %v1099, %v1097
      %v1420 = vpack.c.b16 %v1100, %v1098
      %v1421 = vpack.c.b16 %v1103, %v1101
      %v1422 = vpack.c.b16 %v1104, %v1102
      %v1423 = vpack.c.b16 %v1107, %v1105
      %v1424 = vpack.c.b16 %v1108, %v1106
      %v1425 = vpack.c.b16 %v1111, %v1109
      %v1426 = vpack.c.b16 %v1112, %v1110
      %v1427 = vpack.c.b16 %v1115, %v1113
      %v1428 = vpack.c.b16 %v1116, %v1114
      %v1429 = vpack.c.b16 %v1119, %v1117
      %v1430 = vpack.c.b16 %v1120, %v1118
      %v1431 = vpack.c.b16 %v1123, %v1121
      %v1432 = vpack.c.b16 %v1124, %v1122
      %v1433 = vpack.c.b16 %v1127, %v1125
      %v1434 = vpack.c.b16 %v1128, %v1126
      %v1435 = vpack.c.b16 %v1131, %v1129
      %v1436 = vpack.c.b16 %v1132, %v1130
      %v1437 = vpack.c.b16 %v1135, %v1133
      %v1438 = vpack.c.b16 %v1136, %v1134
      %v1439 = vpack.c.b16 %v1139, %v1137
      %v1440 = vpack.c.b16 %v1140, %v1138
      %v1441 = vpack.c.b16 %v1143, %v1141
      %v1442 = vpack.c.b16 %v1144, %v1142
      %v1443 = vpack.c.b16 %v1147, %v1145
      %v1444 = vpack.c.b16 %v1148, %v1146
      %v1445 = vpack.c.b16 %v1151, %v1149
      %v1446 = vpack.c.b16 %v1152, %v1150
      %v1447 = vpack.c.b16 %v1155, %v1153
      %v1448 = vpack.c.b16 %v1156, %v1154
      %v1449 = vpack.c.b16 %v1159, %v1157
      %v1450 = vpack.c.b16 %v1160, %v1158
      %v1451 = vpack.c.b16 %v1163, %v1161
      %v1452 = vpack.c.b16 %v1164, %v1162
      %v1453 = vpack.c.b16 %v1167, %v1165
      %v1454 = vpack.c.b16 %v1168, %v1166
      %v1455 = vpack.c.b16 %v1171, %v1169
      %v1456 = vpack.c.b16 %v1172, %v1170
      %v1457 = vpack.c.b16 %v1175, %v1173
      %v1458 = vpack.c.b16 %v1176, %v1174
      %v1459 = vpack.c.b16 %v1179, %v1177
      %v1460 = vpack.c.b16 %v1180, %v1178
      %v1461 = vpack.c.b16 %v1183, %v1181
      %v1462 = vpack.c.b16 %v1184, %v1182
      %v1463 = vpack.c.b16 %v1187, %v1185
      %v1464 = vpack.c.b16 %v1188, %v1186
      %v1465 = vpack.c.b16 %v1191, %v1189
      %v1466 = vpack.c.b16 %v1192, %v1190
      %v1467 = vpack.c.b16 %v1195, %v1193
      %v1468 = vpack.c.b16 %v1196, %v1194
      %v1469 = vpack.c.b16 %v1199, %v1197
      %v1470 = vpack.c.b16 %v1200, %v1198
      %v1471 = vpack.c.b16 %v1203, %v1201
      %v1472 = vpack.c.b16 %v1204, %v1202
      %v1473 = vpack.c.b16 %v1207, %v1205
      %v1474 = vpack.c.b16 %v1208, %v1206
      %v1475 = vpack.c.b16 %v1211, %v1209
      %v1476 = vpack.c.b16 %v1212, %v1210
      %v1477 = vpack.c.b16 %v1215, %v1213
      %v1478 = vpack.c.b16 %v1216, %v1214
      %v1479 = vpack.c.b16 %v1219, %v1217
      %v1480 = vpack.c.b16 %v1220, %v1218
      %v1481 = vpack.c.b16 %v1223, %v1221
      %v1482 = vpack.c.b16 %v1224, %v1222
      %v1483 = vpack.c.b16 %v1227, %v1225
      %v1484 = vpack.c.b16 %v1228, %v1226
      %1741 = vmatprep.subr.bf16.mxu0 %v1230
      %1742 = vmatpush1.bf16.xpose.msra.mxu0 %v1229
      %1743 = vmatprep.subr.bf16.mxu0 %v1232
      %1744 = vmatpush1.bf16.xpose.msra.mxu0 %v1231
      %1745 = vmatprep.subr.bf16.mxu0 %v1234
      %1746 = vmatpush1.bf16.xpose.msra.mxu0 %v1233
      %1747 = vmatprep.subr.bf16.mxu0 %v1236
      %1748 = vmatpush1.bf16.xpose.msra.mxu0 %v1235
      %1749 = vmatprep.subr.bf16.mxu0 %v1238
      %1750 = vmatpush1.bf16.xpose.msra.mxu0 %v1237
      %1751 = vmatprep.subr.bf16.mxu0 %v1240
      %1752 = vmatpush1.bf16.xpose.msra.mxu0 %v1239
      %1753 = vmatprep.subr.bf16.mxu0 %v1242
      %1754 = vmatpush1.bf16.xpose.msra.mxu0 %v1241
      %1755 = vmatprep.subr.bf16.mxu0 %v1244
      %1756 = vmatpush1.bf16.xpose.msra.mxu0 %v1243
      %1757 = vmatprep.subr.bf16.mxu0 %v1246
      %1758 = vmatpush1.bf16.xpose.msra.mxu0 %v1245
      %1759 = vmatprep.subr.bf16.mxu0 %v1248
      %1760 = vmatpush1.bf16.xpose.msra.mxu0 %v1247
      %1761 = vmatprep.subr.bf16.mxu0 %v1250
      %1762 = vmatpush1.bf16.xpose.msra.mxu0 %v1249
      %1763 = vmatprep.subr.bf16.mxu0 %v1252
      %1764 = vmatpush1.bf16.xpose.msra.mxu0 %v1251
      %1765 = vmatprep.subr.bf16.mxu0 %v1254
      %1766 = vmatpush1.bf16.xpose.msra.mxu0 %v1253
      %1767 = vmatprep.subr.bf16.mxu0 %v1256
      %1768 = vmatpush1.bf16.xpose.msra.mxu0 %v1255
      %1769 = vmatprep.subr.bf16.mxu0 %v1258
      %1770 = vmatpush1.bf16.xpose.msra.mxu0 %v1257
      %1771 = vmatprep.subr.bf16.mxu0 %v1260
      %1772 = vmatpush1.bf16.xpose.msra.mxu0 %v1259
      %1773 = vmatprep.mubr.bf16.mxu0 %v458
      %1774 = vmatmul.mubr.bf16.gmra.mrb[0].mxu0 %v457
      %v1775 = vpop.f32.mrb[0].mxu0
      %v1776 = vadd.f32 0.0, %v1775
      %v1777 = vpop.f32.mrb[0].mxu0
      %v1778 = vadd.f32 0.0, %v1777
      %v1779 = vpop.f32.mrb[0].mxu0
      %v1780 = vpop.f32.mrb[0].mxu0
      %1781 = vdwg.mxu0
      %1782 = vmatprep.subr.bf16.mxu0 %v1262
      %1783 = vmatpush1.bf16.xpose.msra.mxu0 %v1261
      %1784 = vmatprep.subr.bf16.mxu0 %v1264
      %1785 = vmatpush1.bf16.xpose.msra.mxu0 %v1263
      %1786 = vmatprep.subr.bf16.mxu0 %v1266
      %1787 = vmatpush1.bf16.xpose.msra.mxu0 %v1265
      %1788 = vmatprep.subr.bf16.mxu0 %v1268
      %1789 = vmatpush1.bf16.xpose.msra.mxu0 %v1267
      %1790 = vmatprep.subr.bf16.mxu0 %v1270
      %1791 = vmatpush1.bf16.xpose.msra.mxu0 %v1269
      %1792 = vmatprep.subr.bf16.mxu0 %v1272
      %1793 = vmatpush1.bf16.xpose.msra.mxu0 %v1271
      %1794 = vmatprep.subr.bf16.mxu0 %v1274
      %1795 = vmatpush1.bf16.xpose.msra.mxu0 %v1273
      %1796 = vmatprep.subr.bf16.mxu0 %v1276
      %1797 = vmatpush1.bf16.xpose.msra.mxu0 %v1275
      %1798 = vmatprep.subr.bf16.mxu0 %v1278
      %1799 = vmatpush1.bf16.xpose.msra.mxu0 %v1277
      %1800 = vmatprep.subr.bf16.mxu0 %v1280
      %1801 = vmatpush1.bf16.xpose.msra.mxu0 %v1279
      %1802 = vmatprep.subr.bf16.mxu0 %v1282
      %1803 = vmatpush1.bf16.xpose.msra.mxu0 %v1281
      %1804 = vmatprep.subr.bf16.mxu0 %v1284
      %1805 = vmatpush1.bf16.xpose.msra.mxu0 %v1283
      %1806 = vmatprep.subr.bf16.mxu0 %v1286
      %1807 = vmatpush1.bf16.xpose.msra.mxu0 %v1285
      %1808 = vmatprep.subr.bf16.mxu0 %v1288
      %1809 = vmatpush1.bf16.xpose.msra.mxu0 %v1287
      %1810 = vmatprep.subr.bf16.mxu0 %v1290
      %1811 = vmatpush1.bf16.xpose.msra.mxu0 %v1289
      %1812 = vmatprep.subr.bf16.mxu0 %v1292
      %1813 = vmatpush1.bf16.xpose.msra.mxu0 %v1291
      %1814 = vmatprep.mubr.bf16.mxu0 %v458
      %1815 = vmatmul.mubr.bf16.gmra.mrb[0].mxu0 %v457
      %v1816 = vpop.f32.mrb[0].mxu0
      %v1817 = vadd.f32 0.0, %v1816
      %v1818 = vpop.f32.mrb[0].mxu0
      %v1819 = vadd.f32 0.0, %v1818
      %v1820 = vpop.f32.mrb[0].mxu0
      %v1821 = vpop.f32.mrb[0].mxu0
      %1822 = vdwg.mxu0
      %1823 = vmatprep.subr.bf16.mxu0 %v1294
      %1824 = vmatpush1.bf16.xpose.msra.mxu0 %v1293
      %1825 = vmatprep.subr.bf16.mxu0 %v1296
      %1826 = vmatpush1.bf16.xpose.msra.mxu0 %v1295
      %1827 = vmatprep.subr.bf16.mxu0 %v1298
      %1828 = vmatpush1.bf16.xpose.msra.mxu0 %v1297
      %1829 = vmatprep.subr.bf16.mxu0 %v1300
      %1830 = vmatpush1.bf16.xpose.msra.mxu0 %v1299
      %1831 = vmatprep.subr.bf16.mxu0 %v1302
      %1832 = vmatpush1.bf16.xpose.msra.mxu0 %v1301
      %1833 = vmatprep.subr.bf16.mxu0 %v1304
      %1834 = vmatpush1.bf16.xpose.msra.mxu0 %v1303
      %1835 = vmatprep.subr.bf16.mxu0 %v1306
      %1836 = vmatpush1.bf16.xpose.msra.mxu0 %v1305
      %1837 = vmatprep.subr.bf16.mxu0 %v1308
      %1838 = vmatpush1.bf16.xpose.msra.mxu0 %v1307
      %1839 = vmatprep.subr.bf16.mxu0 %v1310
      %1840 = vmatpush1.bf16.xpose.msra.mxu0 %v1309
      %1841 = vmatprep.subr.bf16.mxu0 %v1312
      %1842 = vmatpush1.bf16.xpose.msra.mxu0 %v1311
      %1843 = vmatprep.subr.bf16.mxu0 %v1314
      %1844 = vmatpush1.bf16.xpose.msra.mxu0 %v1313
      %1845 = vmatprep.subr.bf16.mxu0 %v1316
      %1846 = vmatpush1.bf16.xpose.msra.mxu0 %v1315
      %1847 = vmatprep.subr.bf16.mxu0 %v1318
      %1848 = vmatpush1.bf16.xpose.msra.mxu0 %v1317
      %1849 = vmatprep.subr.bf16.mxu0 %v1320
      %1850 = vmatpush1.bf16.xpose.msra.mxu0 %v1319
      %1851 = vmatprep.subr.bf16.mxu0 %v1322
      %1852 = vmatpush1.bf16.xpose.msra.mxu0 %v1321
      %1853 = vmatprep.subr.bf16.mxu0 %v1324
      %1854 = vmatpush1.bf16.xpose.msra.mxu0 %v1323
      %1855 = vmatprep.mubr.bf16.mxu0 %v458
      %1856 = vmatmul.mubr.bf16.gmra.mrb[0].mxu0 %v457
      %v1857 = vpop.f32.mrb[0].mxu0
      %v1858 = vadd.f32 0.0, %v1857
      %v1859 = vpop.f32.mrb[0].mxu0
      %v1860 = vadd.f32 0.0, %v1859
      %v1861 = vpop.f32.mrb[0].mxu0
      %v1862 = vpop.f32.mrb[0].mxu0
      %1863 = vdwg.mxu0
      %1864 = vmatprep.subr.bf16.mxu0 %v1326
      %1865 = vmatpush1.bf16.xpose.msra.mxu0 %v1325
      %1866 = vmatprep.subr.bf16.mxu0 %v1328
      %1867 = vmatpush1.bf16.xpose.msra.mxu0 %v1327
      %1868 = vmatprep.subr.bf16.mxu0 %v1330
      %1869 = vmatpush1.bf16.xpose.msra.mxu0 %v1329
      %1870 = vmatprep.subr.bf16.mxu0 %v1332
      %1871 = vmatpush1.bf16.xpose.msra.mxu0 %v1331
      %1872 = vmatprep.subr.bf16.mxu0 %v1334
      %1873 = vmatpush1.bf16.xpose.msra.mxu0 %v1333
      %1874 = vmatprep.subr.bf16.mxu0 %v1336
      %1875 = vmatpush1.bf16.xpose.msra.mxu0 %v1335
      %1876 = vmatprep.subr.bf16.mxu0 %v1338
      %1877 = vmatpush1.bf16.xpose.msra.mxu0 %v1337
      %1878 = vmatprep.subr.bf16.mxu0 %v1340
      %1879 = vmatpush1.bf16.xpose.msra.mxu0 %v1339
      %1880 = vmatprep.subr.bf16.mxu0 %v1342
      %1881 = vmatpush1.bf16.xpose.msra.mxu0 %v1341
      %1882 = vmatprep.subr.bf16.mxu0 %v1344
      %1883 = vmatpush1.bf16.xpose.msra.mxu0 %v1343
      %1884 = vmatprep.subr.bf16.mxu0 %v1346
      %1885 = vmatpush1.bf16.xpose.msra.mxu0 %v1345
      %1886 = vmatprep.subr.bf16.mxu0 %v1348
      %1887 = vmatpush1.bf16.xpose.msra.mxu0 %v1347
      %1888 = vmatprep.subr.bf16.mxu0 %v1350
      %1889 = vmatpush1.bf16.xpose.msra.mxu0 %v1349
      %1890 = vmatprep.subr.bf16.mxu0 %v1352
      %1891 = vmatpush1.bf16.xpose.msra.mxu0 %v1351
      %1892 = vmatprep.subr.bf16.mxu0 %v1354
      %1893 = vmatpush1.bf16.xpose.msra.mxu0 %v1353
      %1894 = vmatprep.subr.bf16.mxu0 %v1356
      %1895 = vmatpush1.bf16.xpose.msra.mxu0 %v1355
      %1896 = vmatprep.mubr.bf16.mxu0 %v458
      %1897 = vmatmul.mubr.bf16.gmra.mrb[0].mxu0 %v457
      %v1898 = vpop.f32.mrb[0].mxu0
      %v1899 = vadd.f32 0.0, %v1898
      %v1900 = vpop.f32.mrb[0].mxu0
      %v1901 = vadd.f32 0.0, %v1900
      %v1902 = vpop.f32.mrb[0].mxu0
      %v1903 = vpop.f32.mrb[0].mxu0
      %1904 = vdwg.mxu0
      %1905 = vmatprep.subr.bf16.mxu0 %v1358
      %1906 = vmatpush1.bf16.xpose.msra.mxu0 %v1357
      %1907 = vmatprep.subr.bf16.mxu0 %v1360
      %1908 = vmatpush1.bf16.xpose.msra.mxu0 %v1359
      %1909 = vmatprep.subr.bf16.mxu0 %v1362
      %1910 = vmatpush1.bf16.xpose.msra.mxu0 %v1361
      %1911 = vmatprep.subr.bf16.mxu0 %v1364
      %1912 = vmatpush1.bf16.xpose.msra.mxu0 %v1363
      %1913 = vmatprep.subr.bf16.mxu0 %v1366
      %1914 = vmatpush1.bf16.xpose.msra.mxu0 %v1365
      %1915 = vmatprep.subr.bf16.mxu0 %v1368
      %1916 = vmatpush1.bf16.xpose.msra.mxu0 %v1367
      %1917 = vmatprep.subr.bf16.mxu0 %v1370
      %1918 = vmatpush1.bf16.xpose.msra.mxu0 %v1369
      %1919 = vmatprep.subr.bf16.mxu0 %v1372
      %1920 = vmatpush1.bf16.xpose.msra.mxu0 %v1371
      %1921 = vmatprep.subr.bf16.mxu0 %v1374
      %1922 = vmatpush1.bf16.xpose.msra.mxu0 %v1373
      %1923 = vmatprep.subr.bf16.mxu0 %v1376
      %1924 = vmatpush1.bf16.xpose.msra.mxu0 %v1375
      %1925 = vmatprep.subr.bf16.mxu0 %v1378
      %1926 = vmatpush1.bf16.xpose.msra.mxu0 %v1377
      %1927 = vmatprep.subr.bf16.mxu0 %v1380
      %1928 = vmatpush1.bf16.xpose.msra.mxu0 %v1379
      %1929 = vmatprep.subr.bf16.mxu0 %v1382
      %1930 = vmatpush1.bf16.xpose.msra.mxu0 %v1381
      %1931 = vmatprep.subr.bf16.mxu0 %v1384
      %1932 = vmatpush1.bf16.xpose.msra.mxu0 %v1383
      %1933 = vmatprep.subr.bf16.mxu0 %v1386
      %1934 = vmatpush1.bf16.xpose.msra.mxu0 %v1385
      %1935 = vmatprep.subr.bf16.mxu0 %v1388
      %1936 = vmatpush1.bf16.xpose.msra.mxu0 %v1387
      %1937 = vmatprep.mubr.bf16.mxu0 %v458
      %1938 = vmatmul.mubr.bf16.gmra.mrb[0].mxu0 %v457
      %v1939 = vpop.f32.mrb[0].mxu0
      %v1940 = vadd.f32 0.0, %v1939
      %v1941 = vpop.f32.mrb[0].mxu0
      %v1942 = vadd.f32 0.0, %v1941
      %v1943 = vpop.f32.mrb[0].mxu0
      %v1944 = vpop.f32.mrb[0].mxu0
      %1945 = vdwg.mxu0
      %1946 = vmatprep.subr.bf16.mxu0 %v1390
      %1947 = vmatpush1.bf16.xpose.msra.mxu0 %v1389
      %1948 = vmatprep.subr.bf16.mxu0 %v1392
      %1949 = vmatpush1.bf16.xpose.msra.mxu0 %v1391
      %1950 = vmatprep.subr.bf16.mxu0 %v1394
      %1951 = vmatpush1.bf16.xpose.msra.mxu0 %v1393
      %1952 = vmatprep.subr.bf16.mxu0 %v1396
      %1953 = vmatpush1.bf16.xpose.msra.mxu0 %v1395
      %1954 = vmatprep.subr.bf16.mxu0 %v1398
      %1955 = vmatpush1.bf16.xpose.msra.mxu0 %v1397
      %1956 = vmatprep.subr.bf16.mxu0 %v1400
      %1957 = vmatpush1.bf16.xpose.msra.mxu0 %v1399
      %1958 = vmatprep.subr.bf16.mxu0 %v1402
      %1959 = vmatpush1.bf16.xpose.msra.mxu0 %v1401
      %1960 = vmatprep.subr.bf16.mxu0 %v1404
      %1961 = vmatpush1.bf16.xpose.msra.mxu0 %v1403
      %1962 = vmatprep.subr.bf16.mxu0 %v1406
      %1963 = vmatpush1.bf16.xpose.msra.mxu0 %v1405
      %1964 = vmatprep.subr.bf16.mxu0 %v1408
      %1965 = vmatpush1.bf16.xpose.msra.mxu0 %v1407
      %1966 = vmatprep.subr.bf16.mxu0 %v1410
      %1967 = vmatpush1.bf16.xpose.msra.mxu0 %v1409
      %1968 = vmatprep.subr.bf16.mxu0 %v1412
      %1969 = vmatpush1.bf16.xpose.msra.mxu0 %v1411
      %1970 = vmatprep.subr.bf16.mxu0 %v1414
      %1971 = vmatpush1.bf16.xpose.msra.mxu0 %v1413
      %1972 = vmatprep.subr.bf16.mxu0 %v1416
      %1973 = vmatpush1.bf16.xpose.msra.mxu0 %v1415
      %1974 = vmatprep.subr.bf16.mxu0 %v1418
      %1975 = vmatpush1.bf16.xpose.msra.mxu0 %v1417
      %1976 = vmatprep.subr.bf16.mxu0 %v1420
      %1977 = vmatpush1.bf16.xpose.msra.mxu0 %v1419
      %1978 = vmatprep.mubr.bf16.mxu0 %v458
      %1979 = vmatmul.mubr.bf16.gmra.mrb[0].mxu0 %v457
      %v1980 = vpop.f32.mrb[0].mxu0
      %v1981 = vadd.f32 0.0, %v1980
      %v1982 = vpop.f32.mrb[0].mxu0
      %v1983 = vadd.f32 0.0, %v1982
      %v1984 = vpop.f32.mrb[0].mxu0
      %v1985 = vpop.f32.mrb[0].mxu0
      %1986 = vdwg.mxu0
      %1987 = vmatprep.subr.bf16.mxu0 %v1422
      %1988 = vmatpush1.bf16.xpose.msra.mxu0 %v1421
      %1989 = vmatprep.subr.bf16.mxu0 %v1424
      %1990 = vmatpush1.bf16.xpose.msra.mxu0 %v1423
      %1991 = vmatprep.subr.bf16.mxu0 %v1426
      %1992 = vmatpush1.bf16.xpose.msra.mxu0 %v1425
      %1993 = vmatprep.subr.bf16.mxu0 %v1428
      %1994 = vmatpush1.bf16.xpose.msra.mxu0 %v1427
      %1995 = vmatprep.subr.bf16.mxu0 %v1430
      %1996 = vmatpush1.bf16.xpose.msra.mxu0 %v1429
      %1997 = vmatprep.subr.bf16.mxu0 %v1432
      %1998 = vmatpush1.bf16.xpose.msra.mxu0 %v1431
      %1999 = vmatprep.subr.bf16.mxu0 %v1434
      %2000 = vmatpush1.bf16.xpose.msra.mxu0 %v1433
      %2001 = vmatprep.subr.bf16.mxu0 %v1436
      %2002 = vmatpush1.bf16.xpose.msra.mxu0 %v1435
      %2003 = vmatprep.subr.bf16.mxu0 %v1438
      %2004 = vmatpush1.bf16.xpose.msra.mxu0 %v1437
      %2005 = vmatprep.subr.bf16.mxu0 %v1440
      %2006 = vmatpush1.bf16.xpose.msra.mxu0 %v1439
      %2007 = vmatprep.subr.bf16.mxu0 %v1442
      %2008 = vmatpush1.bf16.xpose.msra.mxu0 %v1441
      %2009 = vmatprep.subr.bf16.mxu0 %v1444
      %2010 = vmatpush1.bf16.xpose.msra.mxu0 %v1443
      %2011 = vmatprep.subr.bf16.mxu0 %v1446
      %2012 = vmatpush1.bf16.xpose.msra.mxu0 %v1445
      %2013 = vmatprep.subr.bf16.mxu0 %v1448
      %2014 = vmatpush1.bf16.xpose.msra.mxu0 %v1447
      %2015 = vmatprep.subr.bf16.mxu0 %v1450
      %2016 = vmatpush1.bf16.xpose.msra.mxu0 %v1449
      %2017 = vmatprep.subr.bf16.mxu0 %v1452
      %2018 = vmatpush1.bf16.xpose.msra.mxu0 %v1451
      %2019 = vmatprep.mubr.bf16.mxu0 %v458
      %2020 = vmatmul.mubr.bf16.gmra.mrb[0].mxu0 %v457
      %v2021 = vpop.f32.mrb[0].mxu0
      %v2022 = vadd.f32 0.0, %v2021
      %v2023 = vpop.f32.mrb[0].mxu0
      %v2024 = vadd.f32 0.0, %v2023
      %v2025 = vpop.f32.mrb[0].mxu0
      %v2026 = vpop.f32.mrb[0].mxu0
      %2027 = vdwg.mxu0
      %2028 = vmatprep.subr.bf16.mxu0 %v1454
      %2029 = vmatpush1.bf16.xpose.msra.mxu0 %v1453
      %2030 = vmatprep.subr.bf16.mxu0 %v1456
      %2031 = vmatpush1.bf16.xpose.msra.mxu0 %v1455
      %2032 = vmatprep.subr.bf16.mxu0 %v1458
      %2033 = vmatpush1.bf16.xpose.msra.mxu0 %v1457
      %2034 = vmatprep.subr.bf16.mxu0 %v1460
      %2035 = vmatpush1.bf16.xpose.msra.mxu0 %v1459
      %2036 = vmatprep.subr.bf16.mxu0 %v1462
      %2037 = vmatpush1.bf16.xpose.msra.mxu0 %v1461
      %2038 = vmatprep.subr.bf16.mxu0 %v1464
      %2039 = vmatpush1.bf16.xpose.msra.mxu0 %v1463
      %2040 = vmatprep.subr.bf16.mxu0 %v1466
      %2041 = vmatpush1.bf16.xpose.msra.mxu0 %v1465
      %2042 = vmatprep.subr.bf16.mxu0 %v1468
      %2043 = vmatpush1.bf16.xpose.msra.mxu0 %v1467
      %2044 = vmatprep.subr.bf16.mxu0 %v1470
      %2045 = vmatpush1.bf16.xpose.msra.mxu0 %v1469
      %2046 = vmatprep.subr.bf16.mxu0 %v1472
      %2047 = vmatpush1.bf16.xpose.msra.mxu0 %v1471
      %2048 = vmatprep.subr.bf16.mxu0 %v1474
      %2049 = vmatpush1.bf16.xpose.msra.mxu0 %v1473
      %2050 = vmatprep.subr.bf16.mxu0 %v1476
      %2051 = vmatpush1.bf16.xpose.msra.mxu0 %v1475
      %2052 = vmatprep.subr.bf16.mxu0 %v1478
      %2053 = vmatpush1.bf16.xpose.msra.mxu0 %v1477
      %2054 = vmatprep.subr.bf16.mxu0 %v1480
      %2055 = vmatpush1.bf16.xpose.msra.mxu0 %v1479
      %2056 = vmatprep.subr.bf16.mxu0 %v1482
      %2057 = vmatpush1.bf16.xpose.msra.mxu0 %v1481
      %2058 = vmatprep.subr.bf16.mxu0 %v1484
      %2059 = vmatpush1.bf16.xpose.msra.mxu0 %v1483
      %2060 = vmatprep.mubr.bf16.mxu0 %v458
      %2061 = vmatmul.mubr.bf16.gmra.mrb[0].mxu0 %v457
      %v2062 = vpop.f32.mrb[0].mxu0
      %v2063 = vadd.f32 0.0, %v2062
      %v2064 = vpop.f32.mrb[0].mxu0
      %v2065 = vadd.f32 0.0, %v2064
      %v2066 = vpop.f32.mrb[0].mxu0
      %v2067 = vpop.f32.mrb[0].mxu0
      %2068 = vdwg.mxu0
      %v2069 = vpack.c.bf16 %v1776, %v1776
      %v2070 = vpack.c.bf16 %v1778, %v1778
      %v2071 = vpack.c.bf16 %v1817, %v1817
      %v2072 = vpack.c.bf16 %v1819, %v1819
      %v2073 = vpack.c.bf16 %v1858, %v1858
      %v2074 = vpack.c.bf16 %v1860, %v1860
      %v2075 = vpack.c.bf16 %v1899, %v1899
      %v2076 = vpack.c.bf16 %v1901, %v1901
      %v2077 = vpack.c.bf16 %v1940, %v1940
      %v2078 = vpack.c.bf16 %v1942, %v1942
      %v2079 = vpack.c.bf16 %v1981, %v1981
      %v2080 = vpack.c.bf16 %v1983, %v1983
      %v2081 = vpack.c.bf16 %v2022, %v2022
      %v2082 = vpack.c.bf16 %v2024, %v2024
      %v2083 = vpack.c.bf16 %v2063, %v2063
      %v2084 = vpack.c.bf16 %v2065, %v2065
      %v2085 = vld [vmem:[%s2] sm:$0xf]
      %v2086 = vld [vmem:[%s2 + $0x4] sm:$0xf]
      %v2087 = vld [vmem:[%s2 + $0x8] sm:$0xf]
      %v2088 = vld [vmem:[%s2 + $0xc] sm:$0xf]
      %v2089 = vld [vmem:[%s2 + $0x10] sm:$0xf]
      %v2090 = vld [vmem:[%s2 + $0x14] sm:$0xf]
      %v2091 = vld [vmem:[%s2 + $0x18] sm:$0xf]
      %v2092 = vld [vmem:[%s2 + $0x1c] sm:$0xf]
      %v2093 = vld [vmem:[%s2 + $0x20] sm:$0xf]
      %v2094 = vld [vmem:[%s2 + $0x24] sm:$0xf]
      %v2095 = vld [vmem:[%s2 + $0x28] sm:$0xf]
      %v2096 = vld [vmem:[%s2 + $0x2c] sm:$0xf]
      %v2097 = vld [vmem:[%s2 + $0x30] sm:$0xf]
      %v2098 = vld [vmem:[%s2 + $0x34] sm:$0xf]
      %v2099 = vld [vmem:[%s2 + $0x38] sm:$0xf]
      %v2100 = vld [vmem:[%s2 + $0x3c] sm:$0xf]
      %v2101 = vld [vmem:[%s2 + $0x40] sm:$0xf]
      %v2102 = vld [vmem:[%s2 + $0x44] sm:$0xf]
      %v2103 = vld [vmem:[%s2 + $0x48] sm:$0xf]
      %v2104 = vld [vmem:[%s2 + $0x4c] sm:$0xf]
      %v2105 = vld [vmem:[%s2 + $0x50] sm:$0xf]
      %v2106 = vld [vmem:[%s2 + $0x54] sm:$0xf]
      %v2107 = vld [vmem:[%s2 + $0x58] sm:$0xf]
      %v2108 = vld [vmem:[%s2 + $0x5c] sm:$0xf]
      %v2109 = vld [vmem:[%s2 + $0x60] sm:$0xf]
      %v2110 = vld [vmem:[%s2 + $0x64] sm:$0xf]
      %v2111 = vld [vmem:[%s2 + $0x68] sm:$0xf]
      %v2112 = vld [vmem:[%s2 + $0x6c] sm:$0xf]
      %v2113 = vld [vmem:[%s2 + $0x70] sm:$0xf]
      %v2114 = vld [vmem:[%s2 + $0x74] sm:$0xf]
      %v2115 = vld [vmem:[%s2 + $0x78] sm:$0xf]
      %v2116 = vld [vmem:[%s2 + $0x7c] sm:$0xf]
      %v2117 = vld [vmem:[%s2 + $0x80] sm:$0xf]
      %v2118 = vld [vmem:[%s2 + $0x84] sm:$0xf]
      %v2119 = vld [vmem:[%s2 + $0x88] sm:$0xf]
      %v2120 = vld [vmem:[%s2 + $0x8c] sm:$0xf]
      %v2121 = vld [vmem:[%s2 + $0x90] sm:$0xf]
      %v2122 = vld [vmem:[%s2 + $0x94] sm:$0xf]
      %v2123 = vld [vmem:[%s2 + $0x98] sm:$0xf]
      %v2124 = vld [vmem:[%s2 + $0x9c] sm:$0xf]
      %v2125 = vld [vmem:[%s2 + $0xa0] sm:$0xf]
      %v2126 = vld [vmem:[%s2 + $0xa4] sm:$0xf]
      %v2127 = vld [vmem:[%s2 + $0xa8] sm:$0xf]
      %v2128 = vld [vmem:[%s2 + $0xac] sm:$0xf]
      %v2129 = vld [vmem:[%s2 + $0xb0] sm:$0xf]
      %v2130 = vld [vmem:[%s2 + $0xb4] sm:$0xf]
      %v2131 = vld [vmem:[%s2 + $0xb8] sm:$0xf]
      %v2132 = vld [vmem:[%s2 + $0xbc] sm:$0xf]
      %v2133 = vld [vmem:[%s2 + $0xc0] sm:$0xf]
      %v2134 = vld [vmem:[%s2 + $0xc4] sm:$0xf]
      %v2135 = vld [vmem:[%s2 + $0xc8] sm:$0xf]
      %v2136 = vld [vmem:[%s2 + $0xcc] sm:$0xf]
      %v2137 = vld [vmem:[%s2 + $0xd0] sm:$0xf]
      %v2138 = vld [vmem:[%s2 + $0xd4] sm:$0xf]
      %v2139 = vld [vmem:[%s2 + $0xd8] sm:$0xf]
      %v2140 = vld [vmem:[%s2 + $0xdc] sm:$0xf]
      %v2141 = vld [vmem:[%s2 + $0xe0] sm:$0xf]
      %v2142 = vld [vmem:[%s2 + $0xe4] sm:$0xf]
      %v2143 = vld [vmem:[%s2 + $0xe8] sm:$0xf]
      %v2144 = vld [vmem:[%s2 + $0xec] sm:$0xf]
      %v2145 = vld [vmem:[%s2 + $0xf0] sm:$0xf]
      %v2146 = vld [vmem:[%s2 + $0xf4] sm:$0xf]
      %v2147 = vld [vmem:[%s2 + $0xf8] sm:$0xf]
      %v2148 = vld [vmem:[%s2 + $0xfc] sm:$0xf]
      %v2149 = vld [vmem:[%s2 + $0x100] sm:$0xf]
      %v2150 = vld [vmem:[%s2 + $0x104] sm:$0xf]
      %v2151 = vld [vmem:[%s2 + $0x108] sm:$0xf]
      %v2152 = vld [vmem:[%s2 + $0x10c] sm:$0xf]
      %v2153 = vld [vmem:[%s2 + $0x110] sm:$0xf]
      %v2154 = vld [vmem:[%s2 + $0x114] sm:$0xf]
      %v2155 = vld [vmem:[%s2 + $0x118] sm:$0xf]
      %v2156 = vld [vmem:[%s2 + $0x11c] sm:$0xf]
      %v2157 = vld [vmem:[%s2 + $0x120] sm:$0xf]
      %v2158 = vld [vmem:[%s2 + $0x124] sm:$0xf]
      %v2159 = vld [vmem:[%s2 + $0x128] sm:$0xf]
      %v2160 = vld [vmem:[%s2 + $0x12c] sm:$0xf]
      %v2161 = vld [vmem:[%s2 + $0x130] sm:$0xf]
      %v2162 = vld [vmem:[%s2 + $0x134] sm:$0xf]
      %v2163 = vld [vmem:[%s2 + $0x138] sm:$0xf]
      %v2164 = vld [vmem:[%s2 + $0x13c] sm:$0xf]
      %v2165 = vld [vmem:[%s2 + $0x140] sm:$0xf]
      %v2166 = vld [vmem:[%s2 + $0x144] sm:$0xf]
      %v2167 = vld [vmem:[%s2 + $0x148] sm:$0xf]
      %v2168 = vld [vmem:[%s2 + $0x14c] sm:$0xf]
      %v2169 = vld [vmem:[%s2 + $0x150] sm:$0xf]
      %v2170 = vld [vmem:[%s2 + $0x154] sm:$0xf]
      %v2171 = vld [vmem:[%s2 + $0x158] sm:$0xf]
      %v2172 = vld [vmem:[%s2 + $0x15c] sm:$0xf]
      %v2173 = vld [vmem:[%s2 + $0x160] sm:$0xf]
      %v2174 = vld [vmem:[%s2 + $0x164] sm:$0xf]
      %v2175 = vld [vmem:[%s2 + $0x168] sm:$0xf]
      %v2176 = vld [vmem:[%s2 + $0x16c] sm:$0xf]
      %v2177 = vld [vmem:[%s2 + $0x170] sm:$0xf]
      %v2178 = vld [vmem:[%s2 + $0x174] sm:$0xf]
      %v2179 = vld [vmem:[%s2 + $0x178] sm:$0xf]
      %v2180 = vld [vmem:[%s2 + $0x17c] sm:$0xf]
      %v2181 = vld [vmem:[%s2 + $0x180] sm:$0xf]
      %v2182 = vld [vmem:[%s2 + $0x184] sm:$0xf]
      %v2183 = vld [vmem:[%s2 + $0x188] sm:$0xf]
      %v2184 = vld [vmem:[%s2 + $0x18c] sm:$0xf]
      %v2185 = vld [vmem:[%s2 + $0x190] sm:$0xf]
      %v2186 = vld [vmem:[%s2 + $0x194] sm:$0xf]
      %v2187 = vld [vmem:[%s2 + $0x198] sm:$0xf]
      %v2188 = vld [vmem:[%s2 + $0x19c] sm:$0xf]
      %v2189 = vld [vmem:[%s2 + $0x1a0] sm:$0xf]
      %v2190 = vld [vmem:[%s2 + $0x1a4] sm:$0xf]
      %v2191 = vld [vmem:[%s2 + $0x1a8] sm:$0xf]
      %v2192 = vld [vmem:[%s2 + $0x1ac] sm:$0xf]
      %v2193 = vld [vmem:[%s2 + $0x1b0] sm:$0xf]
      %v2194 = vld [vmem:[%s2 + $0x1b4] sm:$0xf]
      %v2195 = vld [vmem:[%s2 + $0x1b8] sm:$0xf]
      %v2196 = vld [vmem:[%s2 + $0x1bc] sm:$0xf]
      %v2197 = vld [vmem:[%s2 + $0x1c0] sm:$0xf]
      %v2198 = vld [vmem:[%s2 + $0x1c4] sm:$0xf]
      %v2199 = vld [vmem:[%s2 + $0x1c8] sm:$0xf]
      %v2200 = vld [vmem:[%s2 + $0x1cc] sm:$0xf]
      %v2201 = vld [vmem:[%s2 + $0x1d0] sm:$0xf]
      %v2202 = vld [vmem:[%s2 + $0x1d4] sm:$0xf]
      %v2203 = vld [vmem:[%s2 + $0x1d8] sm:$0xf]
      %v2204 = vld [vmem:[%s2 + $0x1dc] sm:$0xf]
      %v2205 = vld [vmem:[%s2 + $0x1e0] sm:$0xf]
      %v2206 = vld [vmem:[%s2 + $0x1e4] sm:$0xf]
      %v2207 = vld [vmem:[%s2 + $0x1e8] sm:$0xf]
      %v2208 = vld [vmem:[%s2 + $0x1ec] sm:$0xf]
      %v2209 = vld [vmem:[%s2 + $0x1f0] sm:$0xf]
      %v2210 = vld [vmem:[%s2 + $0x1f4] sm:$0xf]
      %v2211 = vld [vmem:[%s2 + $0x1f8] sm:$0xf]
      %v2212 = vld [vmem:[%s2 + $0x1fc] sm:$0xf]
      %v2213 = vld [vmem:[%s2 + $0x200] sm:$0xf]
      %v2214 = vld [vmem:[%s2 + $0x204] sm:$0xf]
      %v2215 = vld [vmem:[%s2 + $0x208] sm:$0xf]
      %v2216 = vld [vmem:[%s2 + $0x20c] sm:$0xf]
      %v2217 = vld [vmem:[%s2 + $0x210] sm:$0xf]
      %v2218 = vld [vmem:[%s2 + $0x214] sm:$0xf]
      %v2219 = vld [vmem:[%s2 + $0x218] sm:$0xf]
      %v2220 = vld [vmem:[%s2 + $0x21c] sm:$0xf]
      %v2221 = vld [vmem:[%s2 + $0x220] sm:$0xf]
      %v2222 = vld [vmem:[%s2 + $0x224] sm:$0xf]
      %v2223 = vld [vmem:[%s2 + $0x228] sm:$0xf]
      %v2224 = vld [vmem:[%s2 + $0x22c] sm:$0xf]
      %v2225 = vld [vmem:[%s2 + $0x230] sm:$0xf]
      %v2226 = vld [vmem:[%s2 + $0x234] sm:$0xf]
      %v2227 = vld [vmem:[%s2 + $0x238] sm:$0xf]
      %v2228 = vld [vmem:[%s2 + $0x23c] sm:$0xf]
      %v2229 = vld [vmem:[%s2 + $0x240] sm:$0xf]
      %v2230 = vld [vmem:[%s2 + $0x244] sm:$0xf]
      %v2231 = vld [vmem:[%s2 + $0x248] sm:$0xf]
      %v2232 = vld [vmem:[%s2 + $0x24c] sm:$0xf]
      %v2233 = vld [vmem:[%s2 + $0x250] sm:$0xf]
      %v2234 = vld [vmem:[%s2 + $0x254] sm:$0xf]
      %v2235 = vld [vmem:[%s2 + $0x258] sm:$0xf]
      %v2236 = vld [vmem:[%s2 + $0x25c] sm:$0xf]
      %v2237 = vld [vmem:[%s2 + $0x260] sm:$0xf]
      %v2238 = vld [vmem:[%s2 + $0x264] sm:$0xf]
      %v2239 = vld [vmem:[%s2 + $0x268] sm:$0xf]
      %v2240 = vld [vmem:[%s2 + $0x26c] sm:$0xf]
      %v2241 = vld [vmem:[%s2 + $0x270] sm:$0xf]
      %v2242 = vld [vmem:[%s2 + $0x274] sm:$0xf]
      %v2243 = vld [vmem:[%s2 + $0x278] sm:$0xf]
      %v2244 = vld [vmem:[%s2 + $0x27c] sm:$0xf]
      %v2245 = vld [vmem:[%s2 + $0x280] sm:$0xf]
      %v2246 = vld [vmem:[%s2 + $0x284] sm:$0xf]
      %v2247 = vld [vmem:[%s2 + $0x288] sm:$0xf]
      %v2248 = vld [vmem:[%s2 + $0x28c] sm:$0xf]
      %v2249 = vld [vmem:[%s2 + $0x290] sm:$0xf]
      %v2250 = vld [vmem:[%s2 + $0x294] sm:$0xf]
      %v2251 = vld [vmem:[%s2 + $0x298] sm:$0xf]
      %v2252 = vld [vmem:[%s2 + $0x29c] sm:$0xf]
      %v2253 = vld [vmem:[%s2 + $0x2a0] sm:$0xf]
      %v2254 = vld [vmem:[%s2 + $0x2a4] sm:$0xf]
      %v2255 = vld [vmem:[%s2 + $0x2a8] sm:$0xf]
      %v2256 = vld [vmem:[%s2 + $0x2ac] sm:$0xf]
      %v2257 = vld [vmem:[%s2 + $0x2b0] sm:$0xf]
      %v2258 = vld [vmem:[%s2 + $0x2b4] sm:$0xf]
      %v2259 = vld [vmem:[%s2 + $0x2b8] sm:$0xf]
      %v2260 = vld [vmem:[%s2 + $0x2bc] sm:$0xf]
      %v2261 = vld [vmem:[%s2 + $0x2c0] sm:$0xf]
      %v2262 = vld [vmem:[%s2 + $0x2c4] sm:$0xf]
      %v2263 = vld [vmem:[%s2 + $0x2c8] sm:$0xf]
      %v2264 = vld [vmem:[%s2 + $0x2cc] sm:$0xf]
      %v2265 = vld [vmem:[%s2 + $0x2d0] sm:$0xf]
      %v2266 = vld [vmem:[%s2 + $0x2d4] sm:$0xf]
      %v2267 = vld [vmem:[%s2 + $0x2d8] sm:$0xf]
      %v2268 = vld [vmem:[%s2 + $0x2dc] sm:$0xf]
      %v2269 = vld [vmem:[%s2 + $0x2e0] sm:$0xf]
      %v2270 = vld [vmem:[%s2 + $0x2e4] sm:$0xf]
      %v2271 = vld [vmem:[%s2 + $0x2e8] sm:$0xf]
      %v2272 = vld [vmem:[%s2 + $0x2ec] sm:$0xf]
      %v2273 = vld [vmem:[%s2 + $0x2f0] sm:$0xf]
      %v2274 = vld [vmem:[%s2 + $0x2f4] sm:$0xf]
      %v2275 = vld [vmem:[%s2 + $0x2f8] sm:$0xf]
      %v2276 = vld [vmem:[%s2 + $0x2fc] sm:$0xf]
      %v2277 = vld [vmem:[%s2 + $0x300] sm:$0xf]
      %v2278 = vld [vmem:[%s2 + $0x304] sm:$0xf]
      %v2279 = vld [vmem:[%s2 + $0x308] sm:$0xf]
      %v2280 = vld [vmem:[%s2 + $0x30c] sm:$0xf]
      %v2281 = vld [vmem:[%s2 + $0x310] sm:$0xf]
      %v2282 = vld [vmem:[%s2 + $0x314] sm:$0xf]
      %v2283 = vld [vmem:[%s2 + $0x318] sm:$0xf]
      %v2284 = vld [vmem:[%s2 + $0x31c] sm:$0xf]
      %v2285 = vld [vmem:[%s2 + $0x320] sm:$0xf]
      %v2286 = vld [vmem:[%s2 + $0x324] sm:$0xf]
      %v2287 = vld [vmem:[%s2 + $0x328] sm:$0xf]
      %v2288 = vld [vmem:[%s2 + $0x32c] sm:$0xf]
      %v2289 = vld [vmem:[%s2 + $0x330] sm:$0xf]
      %v2290 = vld [vmem:[%s2 + $0x334] sm:$0xf]
      %v2291 = vld [vmem:[%s2 + $0x338] sm:$0xf]
      %v2292 = vld [vmem:[%s2 + $0x33c] sm:$0xf]
      %v2293 = vld [vmem:[%s2 + $0x340] sm:$0xf]
      %v2294 = vld [vmem:[%s2 + $0x344] sm:$0xf]
      %v2295 = vld [vmem:[%s2 + $0x348] sm:$0xf]
      %v2296 = vld [vmem:[%s2 + $0x34c] sm:$0xf]
      %v2297 = vld [vmem:[%s2 + $0x350] sm:$0xf]
      %v2298 = vld [vmem:[%s2 + $0x354] sm:$0xf]
      %v2299 = vld [vmem:[%s2 + $0x358] sm:$0xf]
      %v2300 = vld [vmem:[%s2 + $0x35c] sm:$0xf]
      %v2301 = vld [vmem:[%s2 + $0x360] sm:$0xf]
      %v2302 = vld [vmem:[%s2 + $0x364] sm:$0xf]
      %v2303 = vld [vmem:[%s2 + $0x368] sm:$0xf]
      %v2304 = vld [vmem:[%s2 + $0x36c] sm:$0xf]
      %v2305 = vld [vmem:[%s2 + $0x370] sm:$0xf]
      %v2306 = vld [vmem:[%s2 + $0x374] sm:$0xf]
      %v2307 = vld [vmem:[%s2 + $0x378] sm:$0xf]
      %v2308 = vld [vmem:[%s2 + $0x37c] sm:$0xf]
      %v2309 = vld [vmem:[%s2 + $0x380] sm:$0xf]
      %v2310 = vld [vmem:[%s2 + $0x384] sm:$0xf]
      %v2311 = vld [vmem:[%s2 + $0x388] sm:$0xf]
      %v2312 = vld [vmem:[%s2 + $0x38c] sm:$0xf]
      %v2313 = vld [vmem:[%s2 + $0x390] sm:$0xf]
      %v2314 = vld [vmem:[%s2 + $0x394] sm:$0xf]
      %v2315 = vld [vmem:[%s2 + $0x398] sm:$0xf]
      %v2316 = vld [vmem:[%s2 + $0x39c] sm:$0xf]
      %v2317 = vld [vmem:[%s2 + $0x3a0] sm:$0xf]
      %v2318 = vld [vmem:[%s2 + $0x3a4] sm:$0xf]
      %v2319 = vld [vmem:[%s2 + $0x3a8] sm:$0xf]
      %v2320 = vld [vmem:[%s2 + $0x3ac] sm:$0xf]
      %v2321 = vld [vmem:[%s2 + $0x3b0] sm:$0xf]
      %v2322 = vld [vmem:[%s2 + $0x3b4] sm:$0xf]
      %v2323 = vld [vmem:[%s2 + $0x3b8] sm:$0xf]
      %v2324 = vld [vmem:[%s2 + $0x3bc] sm:$0xf]
      %v2325 = vld [vmem:[%s2 + $0x3c0] sm:$0xf]
      %v2326 = vld [vmem:[%s2 + $0x3c4] sm:$0xf]
      %v2327 = vld [vmem:[%s2 + $0x3c8] sm:$0xf]
      %v2328 = vld [vmem:[%s2 + $0x3cc] sm:$0xf]
      %v2329 = vld [vmem:[%s2 + $0x3d0] sm:$0xf]
      %v2330 = vld [vmem:[%s2 + $0x3d4] sm:$0xf]
      %v2331 = vld [vmem:[%s2 + $0x3d8] sm:$0xf]
      %v2332 = vld [vmem:[%s2 + $0x3dc] sm:$0xf]
      %v2333 = vld [vmem:[%s2 + $0x3e0] sm:$0xf]
      %v2334 = vld [vmem:[%s2 + $0x3e4] sm:$0xf]
      %v2335 = vld [vmem:[%s2 + $0x3e8] sm:$0xf]
      %v2336 = vld [vmem:[%s2 + $0x3ec] sm:$0xf]
      %v2337 = vld [vmem:[%s2 + $0x3f0] sm:$0xf]
      %v2338 = vld [vmem:[%s2 + $0x3f4] sm:$0xf]
      %v2339 = vld [vmem:[%s2 + $0x3f8] sm:$0xf]
      %v2340 = vld [vmem:[%s2 + $0x3fc] sm:$0xf]
      %v2341 = vld [vmem:[%s3] sm:$0x1]
      %v2598 = vunpack.c.l.b16 %v2085
      %v2599 = vunpack.c.l.b16 %v2086
      %v2600 = vunpack.c.l.b16 %v2087
      %v2601 = vunpack.c.l.b16 %v2088
      %v2602 = vunpack.c.l.b16 %v2089
      %v2603 = vunpack.c.l.b16 %v2090
      %v2604 = vunpack.c.l.b16 %v2091
      %v2605 = vunpack.c.l.b16 %v2092
      %v2606 = vunpack.c.l.b16 %v2093
      %v2607 = vunpack.c.l.b16 %v2094
      %v2608 = vunpack.c.l.b16 %v2095
      %v2609 = vunpack.c.l.b16 %v2096
      %v2610 = vunpack.c.l.b16 %v2097
      %v2611 = vunpack.c.l.b16 %v2098
      %v2612 = vunpack.c.l.b16 %v2099
      %v2613 = vunpack.c.l.b16 %v2100
      %v2614 = vunpack.c.l.b16 %v2101
      %v2615 = vunpack.c.l.b16 %v2102
      %v2616 = vunpack.c.l.b16 %v2103
      %v2617 = vunpack.c.l.b16 %v2104
      %v2618 = vunpack.c.l.b16 %v2105
      %v2619 = vunpack.c.l.b16 %v2106
      %v2620 = vunpack.c.l.b16 %v2107
      %v2621 = vunpack.c.l.b16 %v2108
      %v2622 = vunpack.c.l.b16 %v2109
      %v2623 = vunpack.c.l.b16 %v2110
      %v2624 = vunpack.c.l.b16 %v2111
      %v2625 = vunpack.c.l.b16 %v2112
      %v2626 = vunpack.c.l.b16 %v2113
      %v2627 = vunpack.c.l.b16 %v2114
      %v2628 = vunpack.c.l.b16 %v2115
      %v2629 = vunpack.c.l.b16 %v2116
      %v2630 = vunpack.c.l.b16 %v2117
      %v2631 = vunpack.c.l.b16 %v2118
      %v2632 = vunpack.c.l.b16 %v2119
      %v2633 = vunpack.c.l.b16 %v2120
      %v2634 = vunpack.c.l.b16 %v2121
      %v2635 = vunpack.c.l.b16 %v2122
      %v2636 = vunpack.c.l.b16 %v2123
      %v2637 = vunpack.c.l.b16 %v2124
      %v2638 = vunpack.c.l.b16 %v2125
      %v2639 = vunpack.c.l.b16 %v2126
      %v2640 = vunpack.c.l.b16 %v2127
      %v2641 = vunpack.c.l.b16 %v2128
      %v2642 = vunpack.c.l.b16 %v2129
      %v2643 = vunpack.c.l.b16 %v2130
      %v2644 = vunpack.c.l.b16 %v2131
      %v2645 = vunpack.c.l.b16 %v2132
      %v2646 = vunpack.c.l.b16 %v2133
      %v2647 = vunpack.c.l.b16 %v2134
      %v2648 = vunpack.c.l.b16 %v2135
      %v2649 = vunpack.c.l.b16 %v2136
      %v2650 = vunpack.c.l.b16 %v2137
      %v2651 = vunpack.c.l.b16 %v2138
      %v2652 = vunpack.c.l.b16 %v2139
      %v2653 = vunpack.c.l.b16 %v2140
      %v2654 = vunpack.c.l.b16 %v2141
      %v2655 = vunpack.c.l.b16 %v2142
      %v2656 = vunpack.c.l.b16 %v2143
      %v2657 = vunpack.c.l.b16 %v2144
      %v2658 = vunpack.c.l.b16 %v2145
      %v2659 = vunpack.c.l.b16 %v2146
      %v2660 = vunpack.c.l.b16 %v2147
      %v2661 = vunpack.c.l.b16 %v2148
      %v2662 = vunpack.c.l.b16 %v2149
      %v2663 = vunpack.c.l.b16 %v2150
      %v2664 = vunpack.c.l.b16 %v2151
      %v2665 = vunpack.c.l.b16 %v2152
      %v2666 = vunpack.c.l.b16 %v2153
      %v2667 = vunpack.c.l.b16 %v2154
      %v2668 = vunpack.c.l.b16 %v2155
      %v2669 = vunpack.c.l.b16 %v2156
      %v2670 = vunpack.c.l.b16 %v2157
      %v2671 = vunpack.c.l.b16 %v2158
      %v2672 = vunpack.c.l.b16 %v2159
      %v2673 = vunpack.c.l.b16 %v2160
      %v2674 = vunpack.c.l.b16 %v2161
      %v2675 = vunpack.c.l.b16 %v2162
      %v2676 = vunpack.c.l.b16 %v2163
      %v2677 = vunpack.c.l.b16 %v2164
      %v2678 = vunpack.c.l.b16 %v2165
      %v2679 = vunpack.c.l.b16 %v2166
      %v2680 = vunpack.c.l.b16 %v2167
      %v2681 = vunpack.c.l.b16 %v2168
      %v2682 = vunpack.c.l.b16 %v2169
      %v2683 = vunpack.c.l.b16 %v2170
      %v2684 = vunpack.c.l.b16 %v2171
      %v2685 = vunpack.c.l.b16 %v2172
      %v2686 = vunpack.c.l.b16 %v2173
      %v2687 = vunpack.c.l.b16 %v2174
      %v2688 = vunpack.c.l.b16 %v2175
      %v2689 = vunpack.c.l.b16 %v2176
      %v2690 = vunpack.c.l.b16 %v2177
      %v2691 = vunpack.c.l.b16 %v2178
      %v2692 = vunpack.c.l.b16 %v2179
      %v2693 = vunpack.c.l.b16 %v2180
      %v2694 = vunpack.c.l.b16 %v2181
      %v2695 = vunpack.c.l.b16 %v2182
      %v2696 = vunpack.c.l.b16 %v2183
      %v2697 = vunpack.c.l.b16 %v2184
      %v2698 = vunpack.c.l.b16 %v2185
      %v2699 = vunpack.c.l.b16 %v2186
      %v2700 = vunpack.c.l.b16 %v2187
      %v2701 = vunpack.c.l.b16 %v2188
      %v2702 = vunpack.c.l.b16 %v2189
      %v2703 = vunpack.c.l.b16 %v2190
      %v2704 = vunpack.c.l.b16 %v2191
      %v2705 = vunpack.c.l.b16 %v2192
      %v2706 = vunpack.c.l.b16 %v2193
      %v2707 = vunpack.c.l.b16 %v2194
      %v2708 = vunpack.c.l.b16 %v2195
      %v2709 = vunpack.c.l.b16 %v2196
      %v2710 = vunpack.c.l.b16 %v2197
      %v2711 = vunpack.c.l.b16 %v2198
      %v2712 = vunpack.c.l.b16 %v2199
      %v2713 = vunpack.c.l.b16 %v2200
      %v2714 = vunpack.c.l.b16 %v2201
      %v2715 = vunpack.c.l.b16 %v2202
      %v2716 = vunpack.c.l.b16 %v2203
      %v2717 = vunpack.c.l.b16 %v2204
      %v2718 = vunpack.c.l.b16 %v2205
      %v2719 = vunpack.c.l.b16 %v2206
      %v2720 = vunpack.c.l.b16 %v2207
      %v2721 = vunpack.c.l.b16 %v2208
      %v2722 = vunpack.c.l.b16 %v2209
      %v2723 = vunpack.c.l.b16 %v2210
      %v2724 = vunpack.c.l.b16 %v2211
      %v2725 = vunpack.c.l.b16 %v2212
      %v2726 = vunpack.c.l.b16 %v2213
      %v2727 = vunpack.c.l.b16 %v2214
      %v2728 = vunpack.c.l.b16 %v2215
      %v2729 = vunpack.c.l.b16 %v2216
      %v2730 = vunpack.c.l.b16 %v2217
      %v2731 = vunpack.c.l.b16 %v2218
      %v2732 = vunpack.c.l.b16 %v2219
      %v2733 = vunpack.c.l.b16 %v2220
      %v2734 = vunpack.c.l.b16 %v2221
      %v2735 = vunpack.c.l.b16 %v2222
      %v2736 = vunpack.c.l.b16 %v2223
      %v2737 = vunpack.c.l.b16 %v2224
      %v2738 = vunpack.c.l.b16 %v2225
      %v2739 = vunpack.c.l.b16 %v2226
      %v2740 = vunpack.c.l.b16 %v2227
      %v2741 = vunpack.c.l.b16 %v2228
      %v2742 = vunpack.c.l.b16 %v2229
      %v2743 = vunpack.c.l.b16 %v2230
      %v2744 = vunpack.c.l.b16 %v2231
      %v2745 = vunpack.c.l.b16 %v2232
      %v2746 = vunpack.c.l.b16 %v2233
      %v2747 = vunpack.c.l.b16 %v2234
      %v2748 = vunpack.c.l.b16 %v2235
      %v2749 = vunpack.c.l.b16 %v2236
      %v2750 = vunpack.c.l.b16 %v2237
      %v2751 = vunpack.c.l.b16 %v2238
      %v2752 = vunpack.c.l.b16 %v2239
      %v2753 = vunpack.c.l.b16 %v2240
      %v2754 = vunpack.c.l.b16 %v2241
      %v2755 = vunpack.c.l.b16 %v2242
      %v2756 = vunpack.c.l.b16 %v2243
      %v2757 = vunpack.c.l.b16 %v2244
      %v2758 = vunpack.c.l.b16 %v2245
      %v2759 = vunpack.c.l.b16 %v2246
      %v2760 = vunpack.c.l.b16 %v2247
      %v2761 = vunpack.c.l.b16 %v2248
      %v2762 = vunpack.c.l.b16 %v2249
      %v2763 = vunpack.c.l.b16 %v2250
      %v2764 = vunpack.c.l.b16 %v2251
      %v2765 = vunpack.c.l.b16 %v2252
      %v2766 = vunpack.c.l.b16 %v2253
      %v2767 = vunpack.c.l.b16 %v2254
      %v2768 = vunpack.c.l.b16 %v2255
      %v2769 = vunpack.c.l.b16 %v2256
      %v2770 = vunpack.c.l.b16 %v2257
      %v2771 = vunpack.c.l.b16 %v2258
      %v2772 = vunpack.c.l.b16 %v2259
      %v2773 = vunpack.c.l.b16 %v2260
      %v2774 = vunpack.c.l.b16 %v2261
      %v2775 = vunpack.c.l.b16 %v2262
      %v2776 = vunpack.c.l.b16 %v2263
      %v2777 = vunpack.c.l.b16 %v2264
      %v2778 = vunpack.c.l.b16 %v2265
      %v2779 = vunpack.c.l.b16 %v2266
      %v2780 = vunpack.c.l.b16 %v2267
      %v2781 = vunpack.c.l.b16 %v2268
      %v2782 = vunpack.c.l.b16 %v2269
      %v2783 = vunpack.c.l.b16 %v2270
      %v2784 = vunpack.c.l.b16 %v2271
      %v2785 = vunpack.c.l.b16 %v2272
      %v2786 = vunpack.c.l.b16 %v2273
      %v2787 = vunpack.c.l.b16 %v2274
      %v2788 = vunpack.c.l.b16 %v2275
      %v2789 = vunpack.c.l.b16 %v2276
      %v2790 = vunpack.c.l.b16 %v2277
      %v2791 = vunpack.c.l.b16 %v2278
      %v2792 = vunpack.c.l.b16 %v2279
      %v2793 = vunpack.c.l.b16 %v2280
      %v2794 = vunpack.c.l.b16 %v2281
      %v2795 = vunpack.c.l.b16 %v2282
      %v2796 = vunpack.c.l.b16 %v2283
      %v2797 = vunpack.c.l.b16 %v2284
      %v2798 = vunpack.c.l.b16 %v2285
      %v2799 = vunpack.c.l.b16 %v2286
      %v2800 = vunpack.c.l.b16 %v2287
      %v2801 = vunpack.c.l.b16 %v2288
      %v2802 = vunpack.c.l.b16 %v2289
      %v2803 = vunpack.c.l.b16 %v2290
      %v2804 = vunpack.c.l.b16 %v2291
      %v2805 = vunpack.c.l.b16 %v2292
      %v2806 = vunpack.c.l.b16 %v2293
      %v2807 = vunpack.c.l.b16 %v2294
      %v2808 = vunpack.c.l.b16 %v2295
      %v2809 = vunpack.c.l.b16 %v2296
      %v2810 = vunpack.c.l.b16 %v2297
      %v2811 = vunpack.c.l.b16 %v2298
      %v2812 = vunpack.c.l.b16 %v2299
      %v2813 = vunpack.c.l.b16 %v2300
      %v2814 = vunpack.c.l.b16 %v2301
      %v2815 = vunpack.c.l.b16 %v2302
      %v2816 = vunpack.c.l.b16 %v2303
      %v2817 = vunpack.c.l.b16 %v2304
      %v2818 = vunpack.c.l.b16 %v2305
      %v2819 = vunpack.c.l.b16 %v2306
      %v2820 = vunpack.c.l.b16 %v2307
      %v2821 = vunpack.c.l.b16 %v2308
      %v2822 = vunpack.c.l.b16 %v2309
      %v2823 = vunpack.c.l.b16 %v2310
      %v2824 = vunpack.c.l.b16 %v2311
      %v2825 = vunpack.c.l.b16 %v2312
      %v2826 = vunpack.c.l.b16 %v2313
      %v2827 = vunpack.c.l.b16 %v2314
      %v2828 = vunpack.c.l.b16 %v2315
      %v2829 = vunpack.c.l.b16 %v2316
      %v2830 = vunpack.c.l.b16 %v2317
      %v2831 = vunpack.c.l.b16 %v2318
      %v2832 = vunpack.c.l.b16 %v2319
      %v2833 = vunpack.c.l.b16 %v2320
      %v2834 = vunpack.c.l.b16 %v2321
      %v2835 = vunpack.c.l.b16 %v2322
      %v2836 = vunpack.c.l.b16 %v2323
      %v2837 = vunpack.c.l.b16 %v2324
      %v2838 = vunpack.c.l.b16 %v2325
      %v2839 = vunpack.c.l.b16 %v2326
      %v2840 = vunpack.c.l.b16 %v2327
      %v2841 = vunpack.c.l.b16 %v2328
      %v2842 = vunpack.c.l.b16 %v2329
      %v2843 = vunpack.c.l.b16 %v2330
      %v2844 = vunpack.c.l.b16 %v2331
      %v2845 = vunpack.c.l.b16 %v2332
      %v2846 = vunpack.c.l.b16 %v2333
      %v2847 = vunpack.c.l.b16 %v2334
      %v2848 = vunpack.c.l.b16 %v2335
      %v2849 = vunpack.c.l.b16 %v2336
      %v2850 = vunpack.c.l.b16 %v2337
      %v2851 = vunpack.c.l.b16 %v2338
      %v2852 = vunpack.c.l.b16 %v2339
      %v2853 = vunpack.c.l.b16 %v2340
      %v2854 = vpack.c.b16 %v2599, %v2598
      %v2855 = vpack.c.b16 %v2601, %v2600
      %v2856 = vpack.c.b16 %v2603, %v2602
      %v2857 = vpack.c.b16 %v2605, %v2604
      %v2858 = vpack.c.b16 %v2607, %v2606
      %v2859 = vpack.c.b16 %v2609, %v2608
      %v2860 = vpack.c.b16 %v2611, %v2610
      %v2861 = vpack.c.b16 %v2613, %v2612
      %v2862 = vpack.c.b16 %v2615, %v2614
      %v2863 = vpack.c.b16 %v2617, %v2616
      %v2864 = vpack.c.b16 %v2619, %v2618
      %v2865 = vpack.c.b16 %v2621, %v2620
      %v2866 = vpack.c.b16 %v2623, %v2622
      %v2867 = vpack.c.b16 %v2625, %v2624
      %v2868 = vpack.c.b16 %v2627, %v2626
      %v2869 = vpack.c.b16 %v2629, %v2628
      %v2870 = vpack.c.b16 %v2631, %v2630
      %v2871 = vpack.c.b16 %v2633, %v2632
      %v2872 = vpack.c.b16 %v2635, %v2634
      %v2873 = vpack.c.b16 %v2637, %v2636
      %v2874 = vpack.c.b16 %v2639, %v2638
      %v2875 = vpack.c.b16 %v2641, %v2640
      %v2876 = vpack.c.b16 %v2643, %v2642
      %v2877 = vpack.c.b16 %v2645, %v2644
      %v2878 = vpack.c.b16 %v2647, %v2646
      %v2879 = vpack.c.b16 %v2649, %v2648
      %v2880 = vpack.c.b16 %v2651, %v2650
      %v2881 = vpack.c.b16 %v2653, %v2652
      %v2882 = vpack.c.b16 %v2655, %v2654
      %v2883 = vpack.c.b16 %v2657, %v2656
      %v2884 = vpack.c.b16 %v2659, %v2658
      %v2885 = vpack.c.b16 %v2661, %v2660
      %v2886 = vpack.c.b16 %v2663, %v2662
      %v2887 = vpack.c.b16 %v2665, %v2664
      %v2888 = vpack.c.b16 %v2667, %v2666
      %v2889 = vpack.c.b16 %v2669, %v2668
      %v2890 = vpack.c.b16 %v2671, %v2670
      %v2891 = vpack.c.b16 %v2673, %v2672
      %v2892 = vpack.c.b16 %v2675, %v2674
      %v2893 = vpack.c.b16 %v2677, %v2676
      %v2894 = vpack.c.b16 %v2679, %v2678
      %v2895 = vpack.c.b16 %v2681, %v2680
      %v2896 = vpack.c.b16 %v2683, %v2682
      %v2897 = vpack.c.b16 %v2685, %v2684
      %v2898 = vpack.c.b16 %v2687, %v2686
      %v2899 = vpack.c.b16 %v2689, %v2688
      %v2900 = vpack.c.b16 %v2691, %v2690
      %v2901 = vpack.c.b16 %v2693, %v2692
      %v2902 = vpack.c.b16 %v2695, %v2694
      %v2903 = vpack.c.b16 %v2697, %v2696
      %v2904 = vpack.c.b16 %v2699, %v2698
      %v2905 = vpack.c.b16 %v2701, %v2700
      %v2906 = vpack.c.b16 %v2703, %v2702
      %v2907 = vpack.c.b16 %v2705, %v2704
      %v2908 = vpack.c.b16 %v2707, %v2706
      %v2909 = vpack.c.b16 %v2709, %v2708
      %v2910 = vpack.c.b16 %v2711, %v2710
      %v2911 = vpack.c.b16 %v2713, %v2712
      %v2912 = vpack.c.b16 %v2715, %v2714
      %v2913 = vpack.c.b16 %v2717, %v2716
      %v2914 = vpack.c.b16 %v2719, %v2718
      %v2915 = vpack.c.b16 %v2721, %v2720
      %v2916 = vpack.c.b16 %v2723, %v2722
      %v2917 = vpack.c.b16 %v2725, %v2724
      %v2918 = vpack.c.b16 %v2727, %v2726
      %v2919 = vpack.c.b16 %v2729, %v2728
      %v2920 = vpack.c.b16 %v2731, %v2730
      %v2921 = vpack.c.b16 %v2733, %v2732
      %v2922 = vpack.c.b16 %v2735, %v2734
      %v2923 = vpack.c.b16 %v2737, %v2736
      %v2924 = vpack.c.b16 %v2739, %v2738
      %v2925 = vpack.c.b16 %v2741, %v2740
      %v2926 = vpack.c.b16 %v2743, %v2742
      %v2927 = vpack.c.b16 %v2745, %v2744
      %v2928 = vpack.c.b16 %v2747, %v2746
      %v2929 = vpack.c.b16 %v2749, %v2748
      %v2930 = vpack.c.b16 %v2751, %v2750
      %v2931 = vpack.c.b16 %v2753, %v2752
      %v2932 = vpack.c.b16 %v2755, %v2754
      %v2933 = vpack.c.b16 %v2757, %v2756
      %v2934 = vpack.c.b16 %v2759, %v2758
      %v2935 = vpack.c.b16 %v2761, %v2760
      %v2936 = vpack.c.b16 %v2763, %v2762
      %v2937 = vpack.c.b16 %v2765, %v2764
      %v2938 = vpack.c.b16 %v2767, %v2766
      %v2939 = vpack.c.b16 %v2769, %v2768
      %v2940 = vpack.c.b16 %v2771, %v2770
      %v2941 = vpack.c.b16 %v2773, %v2772
      %v2942 = vpack.c.b16 %v2775, %v2774
      %v2943 = vpack.c.b16 %v2777, %v2776
      %v2944 = vpack.c.b16 %v2779, %v2778
      %v2945 = vpack.c.b16 %v2781, %v2780
      %v2946 = vpack.c.b16 %v2783, %v2782
      %v2947 = vpack.c.b16 %v2785, %v2784
      %v2948 = vpack.c.b16 %v2787, %v2786
      %v2949 = vpack.c.b16 %v2789, %v2788
      %v2950 = vpack.c.b16 %v2791, %v2790
      %v2951 = vpack.c.b16 %v2793, %v2792
      %v2952 = vpack.c.b16 %v2795, %v2794
      %v2953 = vpack.c.b16 %v2797, %v2796
      %v2954 = vpack.c.b16 %v2799, %v2798
      %v2955 = vpack.c.b16 %v2801, %v2800
      %v2956 = vpack.c.b16 %v2803, %v2802
      %v2957 = vpack.c.b16 %v2805, %v2804
      %v2958 = vpack.c.b16 %v2807, %v2806
      %v2959 = vpack.c.b16 %v2809, %v2808
      %v2960 = vpack.c.b16 %v2811, %v2810
      %v2961 = vpack.c.b16 %v2813, %v2812
      %v2962 = vpack.c.b16 %v2815, %v2814
      %v2963 = vpack.c.b16 %v2817, %v2816
      %v2964 = vpack.c.b16 %v2819, %v2818
      %v2965 = vpack.c.b16 %v2821, %v2820
      %v2966 = vpack.c.b16 %v2823, %v2822
      %v2967 = vpack.c.b16 %v2825, %v2824
      %v2968 = vpack.c.b16 %v2827, %v2826
      %v2969 = vpack.c.b16 %v2829, %v2828
      %v2970 = vpack.c.b16 %v2831, %v2830
      %v2971 = vpack.c.b16 %v2833, %v2832
      %v2972 = vpack.c.b16 %v2835, %v2834
      %v2973 = vpack.c.b16 %v2837, %v2836
      %v2974 = vpack.c.b16 %v2839, %v2838
      %v2975 = vpack.c.b16 %v2841, %v2840
      %v2976 = vpack.c.b16 %v2843, %v2842
      %v2977 = vpack.c.b16 %v2845, %v2844
      %v2978 = vpack.c.b16 %v2847, %v2846
      %v2979 = vpack.c.b16 %v2849, %v2848
      %v2980 = vpack.c.b16 %v2851, %v2850
      %v2981 = vpack.c.b16 %v2853, %v2852
      %3110 = vmatprep.subr.bf16.mxu0 0
      %3111 = vmatpush1.bf16.msra.mxu0 %v2854
      %3112 = vmatprep.subr.bf16.mxu0 0
      %3113 = vmatpush1.bf16.msra.mxu0 %v2855
      %3114 = vmatprep.subr.bf16.mxu0 0
      %3115 = vmatpush1.bf16.msra.mxu0 %v2856
      %3116 = vmatprep.subr.bf16.mxu0 0
      %3117 = vmatpush1.bf16.msra.mxu0 %v2857
      %3118 = vmatprep.subr.bf16.mxu0 0
      %3119 = vmatpush1.bf16.msra.mxu0 %v2858
      %3120 = vmatprep.subr.bf16.mxu0 0
      %3121 = vmatpush1.bf16.msra.mxu0 %v2859
      %3122 = vmatprep.subr.bf16.mxu0 0
      %3123 = vmatpush1.bf16.msra.mxu0 %v2860
      %3124 = vmatprep.subr.bf16.mxu0 0
      %3125 = vmatpush1.bf16.msra.mxu0 %v2861
      %3126 = vmatprep.subr.bf16.mxu0 0
      %3127 = vmatpush1.bf16.msra.mxu0 %v2862
      %3128 = vmatprep.subr.bf16.mxu0 0
      %3129 = vmatpush1.bf16.msra.mxu0 %v2863
      %3130 = vmatprep.subr.bf16.mxu0 0
      %3131 = vmatpush1.bf16.msra.mxu0 %v2864
      %3132 = vmatprep.subr.bf16.mxu0 0
      %3133 = vmatpush1.bf16.msra.mxu0 %v2865
      %3134 = vmatprep.subr.bf16.mxu0 0
      %3135 = vmatpush1.bf16.msra.mxu0 %v2866
      %3136 = vmatprep.subr.bf16.mxu0 0
      %3137 = vmatpush1.bf16.msra.mxu0 %v2867
      %3138 = vmatprep.subr.bf16.mxu0 0
      %3139 = vmatpush1.bf16.msra.mxu0 %v2868
      %3140 = vmatprep.subr.bf16.mxu0 0
      %3141 = vmatpush1.bf16.msra.mxu0 %v2869
      %3142 = vmatprep.mubr.bf16.mxu0 %v2070
      %3143 = vmatmul.mubr.bf16.gmra.mrb[0].mxu0 %v2069
      %v3144 = vpop.f32.mrb[0].mxu0
      %v3145 = vadd.f32 %v2341, %v3144
      %v3146 = vpop.f32.mrb[0].mxu0
      %v3147 = vpop.f32.mrb[0].mxu0
      %v3148 = vpop.f32.mrb[0].mxu0
      %3149 = vdwg.mxu0
      %3150 = vmatprep.subr.bf16.mxu0 0
      %3151 = vmatpush1.bf16.msra.mxu0 %v2870
      %3152 = vmatprep.subr.bf16.mxu0 0
      %3153 = vmatpush1.bf16.msra.mxu0 %v2871
      %3154 = vmatprep.subr.bf16.mxu0 0
      %3155 = vmatpush1.bf16.msra.mxu0 %v2872
      %3156 = vmatprep.subr.bf16.mxu0 0
      %3157 = vmatpush1.bf16.msra.mxu0 %v2873
      %3158 = vmatprep.subr.bf16.mxu0 0
      %3159 = vmatpush1.bf16.msra.mxu0 %v2874
      %3160 = vmatprep.subr.bf16.mxu0 0
      %3161 = vmatpush1.bf16.msra.mxu0 %v2875
      %3162 = vmatprep.subr.bf16.mxu0 0
      %3163 = vmatpush1.bf16.msra.mxu0 %v2876
      %3164 = vmatprep.subr.bf16.mxu0 0
      %3165 = vmatpush1.bf16.msra.mxu0 %v2877
      %3166 = vmatprep.subr.bf16.mxu0 0
      %3167 = vmatpush1.bf16.msra.mxu0 %v2878
      %3168 = vmatprep.subr.bf16.mxu0 0
      %3169 = vmatpush1.bf16.msra.mxu0 %v2879
      %3170 = vmatprep.subr.bf16.mxu0 0
      %3171 = vmatpush1.bf16.msra.mxu0 %v2880
      %3172 = vmatprep.subr.bf16.mxu0 0
      %3173 = vmatpush1.bf16.msra.mxu0 %v2881
      %3174 = vmatprep.subr.bf16.mxu0 0
      %3175 = vmatpush1.bf16.msra.mxu0 %v2882
      %3176 = vmatprep.subr.bf16.mxu0 0
      %3177 = vmatpush1.bf16.msra.mxu0 %v2883
      %3178 = vmatprep.subr.bf16.mxu0 0
      %3179 = vmatpush1.bf16.msra.mxu0 %v2884
      %3180 = vmatprep.subr.bf16.mxu0 0
      %3181 = vmatpush1.bf16.msra.mxu0 %v2885
      %3182 = vmatprep.mubr.bf16.mxu0 %v2072
      %3183 = vmatmul.mubr.bf16.gmra.mrb[0].mxu0 %v2071
      %v3184 = vpop.f32.mrb[0].mxu0
      %v3185 = vadd.f32 %v3145, %v3184
      %v3186 = vpop.f32.mrb[0].mxu0
      %v3187 = vpop.f32.mrb[0].mxu0
      %v3188 = vpop.f32.mrb[0].mxu0
      %3189 = vdwg.mxu0
      %3190 = vmatprep.subr.bf16.mxu0 0
      %3191 = vmatpush1.bf16.msra.mxu0 %v2886
      %3192 = vmatprep.subr.bf16.mxu0 0
      %3193 = vmatpush1.bf16.msra.mxu0 %v2887
      %3194 = vmatprep.subr.bf16.mxu0 0
      %3195 = vmatpush1.bf16.msra.mxu0 %v2888
      %3196 = vmatprep.subr.bf16.mxu0 0
      %3197 = vmatpush1.bf16.msra.mxu0 %v2889
      %3198 = vmatprep.subr.bf16.mxu0 0
      %3199 = vmatpush1.bf16.msra.mxu0 %v2890
      %3200 = vmatprep.subr.bf16.mxu0 0
      %3201 = vmatpush1.bf16.msra.mxu0 %v2891
      %3202 = vmatprep.subr.bf16.mxu0 0
      %3203 = vmatpush1.bf16.msra.mxu0 %v2892
      %3204 = vmatprep.subr.bf16.mxu0 0
      %3205 = vmatpush1.bf16.msra.mxu0 %v2893
      %3206 = vmatprep.subr.bf16.mxu0 0
      %3207 = vmatpush1.bf16.msra.mxu0 %v2894
      %3208 = vmatprep.subr.bf16.mxu0 0
      %3209 = vmatpush1.bf16.msra.mxu0 %v2895
      %3210 = vmatprep.subr.bf16.mxu0 0
      %3211 = vmatpush1.bf16.msra.mxu0 %v2896
      %3212 = vmatprep.subr.bf16.mxu0 0
      %3213 = vmatpush1.bf16.msra.mxu0 %v2897
      %3214 = vmatprep.subr.bf16.mxu0 0
      %3215 = vmatpush1.bf16.msra.mxu0 %v2898
      %3216 = vmatprep.subr.bf16.mxu0 0
      %3217 = vmatpush1.bf16.msra.mxu0 %v2899
      %3218 = vmatprep.subr.bf16.mxu0 0
      %3219 = vmatpush1.bf16.msra.mxu0 %v2900
      %3220 = vmatprep.subr.bf16.mxu0 0
      %3221 = vmatpush1.bf16.msra.mxu0 %v2901
      %3222 = vmatprep.mubr.bf16.mxu0 %v2074
      %3223 = vmatmul.mubr.bf16.gmra.mrb[0].mxu0 %v2073
      %v3224 = vpop.f32.mrb[0].mxu0
      %v3225 = vadd.f32 %v3185, %v3224
      %v3226 = vpop.f32.mrb[0].mxu0
      %v3227 = vpop.f32.mrb[0].mxu0
      %v3228 = vpop.f32.mrb[0].mxu0
      %3229 = vdwg.mxu0
      %3230 = vmatprep.subr.bf16.mxu0 0
      %3231 = vmatpush1.bf16.msra.mxu0 %v2902
      %3232 = vmatprep.subr.bf16.mxu0 0
      %3233 = vmatpush1.bf16.msra.mxu0 %v2903
      %3234 = vmatprep.subr.bf16.mxu0 0
      %3235 = vmatpush1.bf16.msra.mxu0 %v2904
      %3236 = vmatprep.subr.bf16.mxu0 0
      %3237 = vmatpush1.bf16.msra.mxu0 %v2905
      %3238 = vmatprep.subr.bf16.mxu0 0
      %3239 = vmatpush1.bf16.msra.mxu0 %v2906
      %3240 = vmatprep.subr.bf16.mxu0 0
      %3241 = vmatpush1.bf16.msra.mxu0 %v2907
      %3242 = vmatprep.subr.bf16.mxu0 0
      %3243 = vmatpush1.bf16.msra.mxu0 %v2908
      %3244 = vmatprep.subr.bf16.mxu0 0
      %3245 = vmatpush1.bf16.msra.mxu0 %v2909
      %3246 = vmatprep.subr.bf16.mxu0 0
      %3247 = vmatpush1.bf16.msra.mxu0 %v2910
      %3248 = vmatprep.subr.bf16.mxu0 0
      %3249 = vmatpush1.bf16.msra.mxu0 %v2911
      %3250 = vmatprep.subr.bf16.mxu0 0
      %3251 = vmatpush1.bf16.msra.mxu0 %v2912
      %3252 = vmatprep.subr.bf16.mxu0 0
      %3253 = vmatpush1.bf16.msra.mxu0 %v2913
      %3254 = vmatprep.subr.bf16.mxu0 0
      %3255 = vmatpush1.bf16.msra.mxu0 %v2914
      %3256 = vmatprep.subr.bf16.mxu0 0
      %3257 = vmatpush1.bf16.msra.mxu0 %v2915
      %3258 = vmatprep.subr.bf16.mxu0 0
      %3259 = vmatpush1.bf16.msra.mxu0 %v2916
      %3260 = vmatprep.subr.bf16.mxu0 0
      %3261 = vmatpush1.bf16.msra.mxu0 %v2917
      %3262 = vmatprep.mubr.bf16.mxu0 %v2076
      %3263 = vmatmul.mubr.bf16.gmra.mrb[0].mxu0 %v2075
      %v3264 = vpop.f32.mrb[0].mxu0
      %v3265 = vadd.f32 %v3225, %v3264
      %v3266 = vpop.f32.mrb[0].mxu0
      %v3267 = vpop.f32.mrb[0].mxu0
      %v3268 = vpop.f32.mrb[0].mxu0
      %3269 = vdwg.mxu0
      %3270 = vmatprep.subr.bf16.mxu0 0
      %3271 = vmatpush1.bf16.msra.mxu0 %v2918
      %3272 = vmatprep.subr.bf16.mxu0 0
      %3273 = vmatpush1.bf16.msra.mxu0 %v2919
      %3274 = vmatprep.subr.bf16.mxu0 0
      %3275 = vmatpush1.bf16.msra.mxu0 %v2920
      %3276 = vmatprep.subr.bf16.mxu0 0
      %3277 = vmatpush1.bf16.msra.mxu0 %v2921
      %3278 = vmatprep.subr.bf16.mxu0 0
      %3279 = vmatpush1.bf16.msra.mxu0 %v2922
      %3280 = vmatprep.subr.bf16.mxu0 0
      %3281 = vmatpush1.bf16.msra.mxu0 %v2923
      %3282 = vmatprep.subr.bf16.mxu0 0
      %3283 = vmatpush1.bf16.msra.mxu0 %v2924
      %3284 = vmatprep.subr.bf16.mxu0 0
      %3285 = vmatpush1.bf16.msra.mxu0 %v2925
      %3286 = vmatprep.subr.bf16.mxu0 0
      %3287 = vmatpush1.bf16.msra.mxu0 %v2926
      %3288 = vmatprep.subr.bf16.mxu0 0
      %3289 = vmatpush1.bf16.msra.mxu0 %v2927
      %3290 = vmatprep.subr.bf16.mxu0 0
      %3291 = vmatpush1.bf16.msra.mxu0 %v2928
      %3292 = vmatprep.subr.bf16.mxu0 0
      %3293 = vmatpush1.bf16.msra.mxu0 %v2929
      %3294 = vmatprep.subr.bf16.mxu0 0
      %3295 = vmatpush1.bf16.msra.mxu0 %v2930
      %3296 = vmatprep.subr.bf16.mxu0 0
      %3297 = vmatpush1.bf16.msra.mxu0 %v2931
      %3298 = vmatprep.subr.bf16.mxu0 0
      %3299 = vmatpush1.bf16.msra.mxu0 %v2932
      %3300 = vmatprep.subr.bf16.mxu0 0
      %3301 = vmatpush1.bf16.msra.mxu0 %v2933
      %3302 = vmatprep.mubr.bf16.mxu0 %v2078
      %3303 = vmatmul.mubr.bf16.gmra.mrb[0].mxu0 %v2077
      %v3304 = vpop.f32.mrb[0].mxu0
      %v3305 = vadd.f32 %v3265, %v3304
      %v3306 = vpop.f32.mrb[0].mxu0
      %v3307 = vpop.f32.mrb[0].mxu0
      %v3308 = vpop.f32.mrb[0].mxu0
      %3309 = vdwg.mxu0
      %3310 = vmatprep.subr.bf16.mxu0 0
      %3311 = vmatpush1.bf16.msra.mxu0 %v2934
      %3312 = vmatprep.subr.bf16.mxu0 0
      %3313 = vmatpush1.bf16.msra.mxu0 %v2935
      %3314 = vmatprep.subr.bf16.mxu0 0
      %3315 = vmatpush1.bf16.msra.mxu0 %v2936
      %3316 = vmatprep.subr.bf16.mxu0 0
      %3317 = vmatpush1.bf16.msra.mxu0 %v2937
      %3318 = vmatprep.subr.bf16.mxu0 0
      %3319 = vmatpush1.bf16.msra.mxu0 %v2938
      %3320 = vmatprep.subr.bf16.mxu0 0
      %3321 = vmatpush1.bf16.msra.mxu0 %v2939
      %3322 = vmatprep.subr.bf16.mxu0 0
      %3323 = vmatpush1.bf16.msra.mxu0 %v2940
      %3324 = vmatprep.subr.bf16.mxu0 0
      %3325 = vmatpush1.bf16.msra.mxu0 %v2941
      %3326 = vmatprep.subr.bf16.mxu0 0
      %3327 = vmatpush1.bf16.msra.mxu0 %v2942
      %3328 = vmatprep.subr.bf16.mxu0 0
      %3329 = vmatpush1.bf16.msra.mxu0 %v2943
      %3330 = vmatprep.subr.bf16.mxu0 0
      %3331 = vmatpush1.bf16.msra.mxu0 %v2944
      %3332 = vmatprep.subr.bf16.mxu0 0
      %3333 = vmatpush1.bf16.msra.mxu0 %v2945
      %3334 = vmatprep.subr.bf16.mxu0 0
      %3335 = vmatpush1.bf16.msra.mxu0 %v2946
      %3336 = vmatprep.subr.bf16.mxu0 0
      %3337 = vmatpush1.bf16.msra.mxu0 %v2947
      %3338 = vmatprep.subr.bf16.mxu0 0
      %3339 = vmatpush1.bf16.msra.mxu0 %v2948
      %3340 = vmatprep.subr.bf16.mxu0 0
      %3341 = vmatpush1.bf16.msra.mxu0 %v2949
      %3342 = vmatprep.mubr.bf16.mxu0 %v2080
      %3343 = vmatmul.mubr.bf16.gmra.mrb[0].mxu0 %v2079
      %v3344 = vpop.f32.mrb[0].mxu0
      %v3345 = vadd.f32 %v3305, %v3344
      %v3346 = vpop.f32.mrb[0].mxu0
      %v3347 = vpop.f32.mrb[0].mxu0
      %v3348 = vpop.f32.mrb[0].mxu0
      %3349 = vdwg.mxu0
      %3350 = vmatprep.subr.bf16.mxu0 0
      %3351 = vmatpush1.bf16.msra.mxu0 %v2950
      %3352 = vmatprep.subr.bf16.mxu0 0
      %3353 = vmatpush1.bf16.msra.mxu0 %v2951
      %3354 = vmatprep.subr.bf16.mxu0 0
      %3355 = vmatpush1.bf16.msra.mxu0 %v2952
      %3356 = vmatprep.subr.bf16.mxu0 0
      %3357 = vmatpush1.bf16.msra.mxu0 %v2953
      %3358 = vmatprep.subr.bf16.mxu0 0
      %3359 = vmatpush1.bf16.msra.mxu0 %v2954
      %3360 = vmatprep.subr.bf16.mxu0 0
      %3361 = vmatpush1.bf16.msra.mxu0 %v2955
      %3362 = vmatprep.subr.bf16.mxu0 0
      %3363 = vmatpush1.bf16.msra.mxu0 %v2956
      %3364 = vmatprep.subr.bf16.mxu0 0
      %3365 = vmatpush1.bf16.msra.mxu0 %v2957
      %3366 = vmatprep.subr.bf16.mxu0 0
      %3367 = vmatpush1.bf16.msra.mxu0 %v2958
      %3368 = vmatprep.subr.bf16.mxu0 0
      %3369 = vmatpush1.bf16.msra.mxu0 %v2959
      %3370 = vmatprep.subr.bf16.mxu0 0
      %3371 = vmatpush1.bf16.msra.mxu0 %v2960
      %3372 = vmatprep.subr.bf16.mxu0 0
      %3373 = vmatpush1.bf16.msra.mxu0 %v2961
      %3374 = vmatprep.subr.bf16.mxu0 0
      %3375 = vmatpush1.bf16.msra.mxu0 %v2962
      %3376 = vmatprep.subr.bf16.mxu0 0
      %3377 = vmatpush1.bf16.msra.mxu0 %v2963
      %3378 = vmatprep.subr.bf16.mxu0 0
      %3379 = vmatpush1.bf16.msra.mxu0 %v2964
      %3380 = vmatprep.subr.bf16.mxu0 0
      %3381 = vmatpush1.bf16.msra.mxu0 %v2965
      %3382 = vmatprep.mubr.bf16.mxu0 %v2082
      %3383 = vmatmul.mubr.bf16.gmra.mrb[0].mxu0 %v2081
      %v3384 = vpop.f32.mrb[0].mxu0
      %v3385 = vadd.f32 %v3345, %v3384
      %v3386 = vpop.f32.mrb[0].mxu0
      %v3387 = vpop.f32.mrb[0].mxu0
      %v3388 = vpop.f32.mrb[0].mxu0
      %3389 = vdwg.mxu0
      %3390 = vmatprep.subr.bf16.mxu0 0
      %3391 = vmatpush1.bf16.msra.mxu0 %v2966
      %3392 = vmatprep.subr.bf16.mxu0 0
      %3393 = vmatpush1.bf16.msra.mxu0 %v2967
      %3394 = vmatprep.subr.bf16.mxu0 0
      %3395 = vmatpush1.bf16.msra.mxu0 %v2968
      %3396 = vmatprep.subr.bf16.mxu0 0
      %3397 = vmatpush1.bf16.msra.mxu0 %v2969
      %3398 = vmatprep.subr.bf16.mxu0 0
      %3399 = vmatpush1.bf16.msra.mxu0 %v2970
      %3400 = vmatprep.subr.bf16.mxu0 0
      %3401 = vmatpush1.bf16.msra.mxu0 %v2971
      %3402 = vmatprep.subr.bf16.mxu0 0
      %3403 = vmatpush1.bf16.msra.mxu0 %v2972
      %3404 = vmatprep.subr.bf16.mxu0 0
      %3405 = vmatpush1.bf16.msra.mxu0 %v2973
      %3406 = vmatprep.subr.bf16.mxu0 0
      %3407 = vmatpush1.bf16.msra.mxu0 %v2974
      %3408 = vmatprep.subr.bf16.mxu0 0
      %3409 = vmatpush1.bf16.msra.mxu0 %v2975
      %3410 = vmatprep.subr.bf16.mxu0 0
      %3411 = vmatpush1.bf16.msra.mxu0 %v2976
      %3412 = vmatprep.subr.bf16.mxu0 0
      %3413 = vmatpush1.bf16.msra.mxu0 %v2977
      %3414 = vmatprep.subr.bf16.mxu0 0
      %3415 = vmatpush1.bf16.msra.mxu0 %v2978
      %3416 = vmatprep.subr.bf16.mxu0 0
      %3417 = vmatpush1.bf16.msra.mxu0 %v2979
      %3418 = vmatprep.subr.bf16.mxu0 0
      %3419 = vmatpush1.bf16.msra.mxu0 %v2980
      %3420 = vmatprep.subr.bf16.mxu0 0
      %3421 = vmatpush1.bf16.msra.mxu0 %v2981
      %3422 = vmatprep.mubr.bf16.mxu0 %v2084
      %3423 = vmatmul.mubr.bf16.gmra.mrb[0].mxu0 %v2083
      %v3424 = vpop.f32.mrb[0].mxu0
      %v3425 = vadd.f32 %v3385, %v3424
      %v3426 = vpop.f32.mrb[0].mxu0
      %v3427 = vpop.f32.mrb[0].mxu0
      %v3428 = vpop.f32.mrb[0].mxu0
      %3429 = vdwg.mxu0
      %3430 = vst [vmem:[%s195] sm:$0x1] %v3425
      %s3431 = scalar_lea.vmem %s2, 1024
      %v3432 = vld [vmem:[%s3431] sm:$0xf]
      %v3433 = vld [vmem:[%s3431 + $0x4] sm:$0xf]
      %v3434 = vld [vmem:[%s3431 + $0x8] sm:$0xf]
      %v3435 = vld [vmem:[%s3431 + $0xc] sm:$0xf]
      %v3436 = vld [vmem:[%s3431 + $0x10] sm:$0xf]
      %v3437 = vld [vmem:[%s3431 + $0x14] sm:$0xf]
      %v3438 = vld [vmem:[%s3431 + $0x18] sm:$0xf]
      %v3439 = vld [vmem:[%s3431 + $0x1c] sm:$0xf]
      %v3440 = vld [vmem:[%s3431 + $0x20] sm:$0xf]
      %v3441 = vld [vmem:[%s3431 + $0x24] sm:$0xf]
      %v3442 = vld [vmem:[%s3431 + $0x28] sm:$0xf]
      %v3443 = vld [vmem:[%s3431 + $0x2c] sm:$0xf]
      %v3444 = vld [vmem:[%s3431 + $0x30] sm:$0xf]
      %v3445 = vld [vmem:[%s3431 + $0x34] sm:$0xf]
      %v3446 = vld [vmem:[%s3431 + $0x38] sm:$0xf]
      %v3447 = vld [vmem:[%s3431 + $0x3c] sm:$0xf]
      %v3448 = vld [vmem:[%s3431 + $0x40] sm:$0xf]
      %v3449 = vld [vmem:[%s3431 + $0x44] sm:$0xf]
      %v3450 = vld [vmem:[%s3431 + $0x48] sm:$0xf]
      %v3451 = vld [vmem:[%s3431 + $0x4c] sm:$0xf]
      %v3452 = vld [vmem:[%s3431 + $0x50] sm:$0xf]
      %v3453 = vld [vmem:[%s3431 + $0x54] sm:$0xf]
      %v3454 = vld [vmem:[%s3431 + $0x58] sm:$0xf]
      %v3455 = vld [vmem:[%s3431 + $0x5c] sm:$0xf]
      %v3456 = vld [vmem:[%s3431 + $0x60] sm:$0xf]
      %v3457 = vld [vmem:[%s3431 + $0x64] sm:$0xf]
      %v3458 = vld [vmem:[%s3431 + $0x68] sm:$0xf]
      %v3459 = vld [vmem:[%s3431 + $0x6c] sm:$0xf]
      %v3460 = vld [vmem:[%s3431 + $0x70] sm:$0xf]
      %v3461 = vld [vmem:[%s3431 + $0x74] sm:$0xf]
      %v3462 = vld [vmem:[%s3431 + $0x78] sm:$0xf]
      %v3463 = vld [vmem:[%s3431 + $0x7c] sm:$0xf]
      %v3464 = vld [vmem:[%s3431 + $0x80] sm:$0xf]
      %v3465 = vld [vmem:[%s3431 + $0x84] sm:$0xf]
      %v3466 = vld [vmem:[%s3431 + $0x88] sm:$0xf]
      %v3467 = vld [vmem:[%s3431 + $0x8c] sm:$0xf]
      %v3468 = vld [vmem:[%s3431 + $0x90] sm:$0xf]
      %v3469 = vld [vmem:[%s3431 + $0x94] sm:$0xf]
      %v3470 = vld [vmem:[%s3431 + $0x98] sm:$0xf]
      %v3471 = vld [vmem:[%s3431 + $0x9c] sm:$0xf]
      %v3472 = vld [vmem:[%s3431 + $0xa0] sm:$0xf]
      %v3473 = vld [vmem:[%s3431 + $0xa4] sm:$0xf]
      %v3474 = vld [vmem:[%s3431 + $0xa8] sm:$0xf]
      %v3475 = vld [vmem:[%s3431 + $0xac] sm:$0xf]
      %v3476 = vld [vmem:[%s3431 + $0xb0] sm:$0xf]
      %v3477 = vld [vmem:[%s3431 + $0xb4] sm:$0xf]
      %v3478 = vld [vmem:[%s3431 + $0xb8] sm:$0xf]
      %v3479 = vld [vmem:[%s3431 + $0xbc] sm:$0xf]
      %v3480 = vld [vmem:[%s3431 + $0xc0] sm:$0xf]
      %v3481 = vld [vmem:[%s3431 + $0xc4] sm:$0xf]
      %v3482 = vld [vmem:[%s3431 + $0xc8] sm:$0xf]
      %v3483 = vld [vmem:[%s3431 + $0xcc] sm:$0xf]
      %v3484 = vld [vmem:[%s3431 + $0xd0] sm:$0xf]
      %v3485 = vld [vmem:[%s3431 + $0xd4] sm:$0xf]
      %v3486 = vld [vmem:[%s3431 + $0xd8] sm:$0xf]
      %v3487 = vld [vmem:[%s3431 + $0xdc] sm:$0xf]
      %v3488 = vld [vmem:[%s3431 + $0xe0] sm:$0xf]
      %v3489 = vld [vmem:[%s3431 + $0xe4] sm:$0xf]
      %v3490 = vld [vmem:[%s3431 + $0xe8] sm:$0xf]
      %v3491 = vld [vmem:[%s3431 + $0xec] sm:$0xf]
      %v3492 = vld [vmem:[%s3431 + $0xf0] sm:$0xf]
      %v3493 = vld [vmem:[%s3431 + $0xf4] sm:$0xf]
      %v3494 = vld [vmem:[%s3431 + $0xf8] sm:$0xf]
      %v3495 = vld [vmem:[%s3431 + $0xfc] sm:$0xf]
      %v3496 = vld [vmem:[%s3431 + $0x100] sm:$0xf]
      %v3497 = vld [vmem:[%s3431 + $0x104] sm:$0xf]
      %v3498 = vld [vmem:[%s3431 + $0x108] sm:$0xf]
      %v3499 = vld [vmem:[%s3431 + $0x10c] sm:$0xf]
      %v3500 = vld [vmem:[%s3431 + $0x110] sm:$0xf]
      %v3501 = vld [vmem:[%s3431 + $0x114] sm:$0xf]
      %v3502 = vld [vmem:[%s3431 + $0x118] sm:$0xf]
      %v3503 = vld [vmem:[%s3431 + $0x11c] sm:$0xf]
      %v3504 = vld [vmem:[%s3431 + $0x120] sm:$0xf]
      %v3505 = vld [vmem:[%s3431 + $0x124] sm:$0xf]
      %v3506 = vld [vmem:[%s3431 + $0x128] sm:$0xf]
      %v3507 = vld [vmem:[%s3431 + $0x12c] sm:$0xf]
      %v3508 = vld [vmem:[%s3431 + $0x130] sm:$0xf]
      %v3509 = vld [vmem:[%s3431 + $0x134] sm:$0xf]
      %v3510 = vld [vmem:[%s3431 + $0x138] sm:$0xf]
      %v3511 = vld [vmem:[%s3431 + $0x13c] sm:$0xf]
      %v3512 = vld [vmem:[%s3431 + $0x140] sm:$0xf]
      %v3513 = vld [vmem:[%s3431 + $0x144] sm:$0xf]
      %v3514 = vld [vmem:[%s3431 + $0x148] sm:$0xf]
      %v3515 = vld [vmem:[%s3431 + $0x14c] sm:$0xf]
      %v3516 = vld [vmem:[%s3431 + $0x150] sm:$0xf]
      %v3517 = vld [vmem:[%s3431 + $0x154] sm:$0xf]
      %v3518 = vld [vmem:[%s3431 + $0x158] sm:$0xf]
      %v3519 = vld [vmem:[%s3431 + $0x15c] sm:$0xf]
      %v3520 = vld [vmem:[%s3431 + $0x160] sm:$0xf]
      %v3521 = vld [vmem:[%s3431 + $0x164] sm:$0xf]
      %v3522 = vld [vmem:[%s3431 + $0x168] sm:$0xf]
      %v3523 = vld [vmem:[%s3431 + $0x16c] sm:$0xf]
      %v3524 = vld [vmem:[%s3431 + $0x170] sm:$0xf]
      %v3525 = vld [vmem:[%s3431 + $0x174] sm:$0xf]
      %v3526 = vld [vmem:[%s3431 + $0x178] sm:$0xf]
      %v3527 = vld [vmem:[%s3431 + $0x17c] sm:$0xf]
      %v3528 = vld [vmem:[%s3431 + $0x180] sm:$0xf]
      %v3529 = vld [vmem:[%s3431 + $0x184] sm:$0xf]
      %v3530 = vld [vmem:[%s3431 + $0x188] sm:$0xf]
      %v3531 = vld [vmem:[%s3431 + $0x18c] sm:$0xf]
      %v3532 = vld [vmem:[%s3431 + $0x190] sm:$0xf]
      %v3533 = vld [vmem:[%s3431 + $0x194] sm:$0xf]
      %v3534 = vld [vmem:[%s3431 + $0x198] sm:$0xf]
      %v3535 = vld [vmem:[%s3431 + $0x19c] sm:$0xf]
      %v3536 = vld [vmem:[%s3431 + $0x1a0] sm:$0xf]
      %v3537 = vld [vmem:[%s3431 + $0x1a4] sm:$0xf]
      %v3538 = vld [vmem:[%s3431 + $0x1a8] sm:$0xf]
      %v3539 = vld [vmem:[%s3431 + $0x1ac] sm:$0xf]
      %v3540 = vld [vmem:[%s3431 + $0x1b0] sm:$0xf]
      %v3541 = vld [vmem:[%s3431 + $0x1b4] sm:$0xf]
      %v3542 = vld [vmem:[%s3431 + $0x1b8] sm:$0xf]
      %v3543 = vld [vmem:[%s3431 + $0x1bc] sm:$0xf]
      %v3544 = vld [vmem:[%s3431 + $0x1c0] sm:$0xf]
      %v3545 = vld [vmem:[%s3431 + $0x1c4] sm:$0xf]
      %v3546 = vld [vmem:[%s3431 + $0x1c8] sm:$0xf]
      %v3547 = vld [vmem:[%s3431 + $0x1cc] sm:$0xf]
      %v3548 = vld [vmem:[%s3431 + $0x1d0] sm:$0xf]
      %v3549 = vld [vmem:[%s3431 + $0x1d4] sm:$0xf]
      %v3550 = vld [vmem:[%s3431 + $0x1d8] sm:$0xf]
      %v3551 = vld [vmem:[%s3431 + $0x1dc] sm:$0xf]
      %v3552 = vld [vmem:[%s3431 + $0x1e0] sm:$0xf]
      %v3553 = vld [vmem:[%s3431 + $0x1e4] sm:$0xf]
      %v3554 = vld [vmem:[%s3431 + $0x1e8] sm:$0xf]
      %v3555 = vld [vmem:[%s3431 + $0x1ec] sm:$0xf]
      %v3556 = vld [vmem:[%s3431 + $0x1f0] sm:$0xf]
      %v3557 = vld [vmem:[%s3431 + $0x1f4] sm:$0xf]
      %v3558 = vld [vmem:[%s3431 + $0x1f8] sm:$0xf]
      %v3559 = vld [vmem:[%s3431 + $0x1fc] sm:$0xf]
      %v3560 = vld [vmem:[%s3431 + $0x200] sm:$0xf]
      %v3561 = vld [vmem:[%s3431 + $0x204] sm:$0xf]
      %v3562 = vld [vmem:[%s3431 + $0x208] sm:$0xf]
      %v3563 = vld [vmem:[%s3431 + $0x20c] sm:$0xf]
      %v3564 = vld [vmem:[%s3431 + $0x210] sm:$0xf]
      %v3565 = vld [vmem:[%s3431 + $0x214] sm:$0xf]
      %v3566 = vld [vmem:[%s3431 + $0x218] sm:$0xf]
      %v3567 = vld [vmem:[%s3431 + $0x21c] sm:$0xf]
      %v3568 = vld [vmem:[%s3431 + $0x220] sm:$0xf]
      %v3569 = vld [vmem:[%s3431 + $0x224] sm:$0xf]
      %v3570 = vld [vmem:[%s3431 + $0x228] sm:$0xf]
      %v3571 = vld [vmem:[%s3431 + $0x22c] sm:$0xf]
      %v3572 = vld [vmem:[%s3431 + $0x230] sm:$0xf]
      %v3573 = vld [vmem:[%s3431 + $0x234] sm:$0xf]
      %v3574 = vld [vmem:[%s3431 + $0x238] sm:$0xf]
      %v3575 = vld [vmem:[%s3431 + $0x23c] sm:$0xf]
      %v3576 = vld [vmem:[%s3431 + $0x240] sm:$0xf]
      %v3577 = vld [vmem:[%s3431 + $0x244] sm:$0xf]
      %v3578 = vld [vmem:[%s3431 + $0x248] sm:$0xf]
      %v3579 = vld [vmem:[%s3431 + $0x24c] sm:$0xf]
      %v3580 = vld [vmem:[%s3431 + $0x250] sm:$0xf]
      %v3581 = vld [vmem:[%s3431 + $0x254] sm:$0xf]
      %v3582 = vld [vmem:[%s3431 + $0x258] sm:$0xf]
      %v3583 = vld [vmem:[%s3431 + $0x25c] sm:$0xf]
      %v3584 = vld [vmem:[%s3431 + $0x260] sm:$0xf]
      %v3585 = vld [vmem:[%s3431 + $0x264] sm:$0xf]
      %v3586 = vld [vmem:[%s3431 + $0x268] sm:$0xf]
      %v3587 = vld [vmem:[%s3431 + $0x26c] sm:$0xf]
      %v3588 = vld [vmem:[%s3431 + $0x270] sm:$0xf]
      %v3589 = vld [vmem:[%s3431 + $0x274] sm:$0xf]
      %v3590 = vld [vmem:[%s3431 + $0x278] sm:$0xf]
      %v3591 = vld [vmem:[%s3431 + $0x27c] sm:$0xf]
      %v3592 = vld [vmem:[%s3431 + $0x280] sm:$0xf]
      %v3593 = vld [vmem:[%s3431 + $0x284] sm:$0xf]
      %v3594 = vld [vmem:[%s3431 + $0x288] sm:$0xf]
      %v3595 = vld [vmem:[%s3431 + $0x28c] sm:$0xf]
      %v3596 = vld [vmem:[%s3431 + $0x290] sm:$0xf]
      %v3597 = vld [vmem:[%s3431 + $0x294] sm:$0xf]
      %v3598 = vld [vmem:[%s3431 + $0x298] sm:$0xf]
      %v3599 = vld [vmem:[%s3431 + $0x29c] sm:$0xf]
      %v3600 = vld [vmem:[%s3431 + $0x2a0] sm:$0xf]
      %v3601 = vld [vmem:[%s3431 + $0x2a4] sm:$0xf]
      %v3602 = vld [vmem:[%s3431 + $0x2a8] sm:$0xf]
      %v3603 = vld [vmem:[%s3431 + $0x2ac] sm:$0xf]
      %v3604 = vld [vmem:[%s3431 + $0x2b0] sm:$0xf]
      %v3605 = vld [vmem:[%s3431 + $0x2b4] sm:$0xf]
      %v3606 = vld [vmem:[%s3431 + $0x2b8] sm:$0xf]
      %v3607 = vld [vmem:[%s3431 + $0x2bc] sm:$0xf]
      %v3608 = vld [vmem:[%s3431 + $0x2c0] sm:$0xf]
      %v3609 = vld [vmem:[%s3431 + $0x2c4] sm:$0xf]
      %v3610 = vld [vmem:[%s3431 + $0x2c8] sm:$0xf]
      %v3611 = vld [vmem:[%s3431 + $0x2cc] sm:$0xf]
      %v3612 = vld [vmem:[%s3431 + $0x2d0] sm:$0xf]
      %v3613 = vld [vmem:[%s3431 + $0x2d4] sm:$0xf]
      %v3614 = vld [vmem:[%s3431 + $0x2d8] sm:$0xf]
      %v3615 = vld [vmem:[%s3431 + $0x2dc] sm:$0xf]
      %v3616 = vld [vmem:[%s3431 + $0x2e0] sm:$0xf]
      %v3617 = vld [vmem:[%s3431 + $0x2e4] sm:$0xf]
      %v3618 = vld [vmem:[%s3431 + $0x2e8] sm:$0xf]
      %v3619 = vld [vmem:[%s3431 + $0x2ec] sm:$0xf]
      %v3620 = vld [vmem:[%s3431 + $0x2f0] sm:$0xf]
      %v3621 = vld [vmem:[%s3431 + $0x2f4] sm:$0xf]
      %v3622 = vld [vmem:[%s3431 + $0x2f8] sm:$0xf]
      %v3623 = vld [vmem:[%s3431 + $0x2fc] sm:$0xf]
      %v3624 = vld [vmem:[%s3431 + $0x300] sm:$0xf]
      %v3625 = vld [vmem:[%s3431 + $0x304] sm:$0xf]
      %v3626 = vld [vmem:[%s3431 + $0x308] sm:$0xf]
      %v3627 = vld [vmem:[%s3431 + $0x30c] sm:$0xf]
      %v3628 = vld [vmem:[%s3431 + $0x310] sm:$0xf]
      %v3629 = vld [vmem:[%s3431 + $0x314] sm:$0xf]
      %v3630 = vld [vmem:[%s3431 + $0x318] sm:$0xf]
      %v3631 = vld [vmem:[%s3431 + $0x31c] sm:$0xf]
      %v3632 = vld [vmem:[%s3431 + $0x320] sm:$0xf]
      %v3633 = vld [vmem:[%s3431 + $0x324] sm:$0xf]
      %v3634 = vld [vmem:[%s3431 + $0x328] sm:$0xf]
      %v3635 = vld [vmem:[%s3431 + $0x32c] sm:$0xf]
      %v3636 = vld [vmem:[%s3431 + $0x330] sm:$0xf]
      %v3637 = vld [vmem:[%s3431 + $0x334] sm:$0xf]
      %v3638 = vld [vmem:[%s3431 + $0x338] sm:$0xf]
      %v3639 = vld [vmem:[%s3431 + $0x33c] sm:$0xf]
      %v3640 = vld [vmem:[%s3431 + $0x340] sm:$0xf]
      %v3641 = vld [vmem:[%s3431 + $0x344] sm:$0xf]
      %v3642 = vld [vmem:[%s3431 + $0x348] sm:$0xf]
      %v3643 = vld [vmem:[%s3431 + $0x34c] sm:$0xf]
      %v3644 = vld [vmem:[%s3431 + $0x350] sm:$0xf]
      %v3645 = vld [vmem:[%s3431 + $0x354] sm:$0xf]
      %v3646 = vld [vmem:[%s3431 + $0x358] sm:$0xf]
      %v3647 = vld [vmem:[%s3431 + $0x35c] sm:$0xf]
      %v3648 = vld [vmem:[%s3431 + $0x360] sm:$0xf]
      %v3649 = vld [vmem:[%s3431 + $0x364] sm:$0xf]
      %v3650 = vld [vmem:[%s3431 + $0x368] sm:$0xf]
      %v3651 = vld [vmem:[%s3431 + $0x36c] sm:$0xf]
      %v3652 = vld [vmem:[%s3431 + $0x370] sm:$0xf]
      %v3653 = vld [vmem:[%s3431 + $0x374] sm:$0xf]
      %v3654 = vld [vmem:[%s3431 + $0x378] sm:$0xf]
      %v3655 = vld [vmem:[%s3431 + $0x37c] sm:$0xf]
      %v3656 = vld [vmem:[%s3431 + $0x380] sm:$0xf]
      %v3657 = vld [vmem:[%s3431 + $0x384] sm:$0xf]
      %v3658 = vld [vmem:[%s3431 + $0x388] sm:$0xf]
      %v3659 = vld [vmem:[%s3431 + $0x38c] sm:$0xf]
      %v3660 = vld [vmem:[%s3431 + $0x390] sm:$0xf]
      %v3661 = vld [vmem:[%s3431 + $0x394] sm:$0xf]
      %v3662 = vld [vmem:[%s3431 + $0x398] sm:$0xf]
      %v3663 = vld [vmem:[%s3431 + $0x39c] sm:$0xf]
      %v3664 = vld [vmem:[%s3431 + $0x3a0] sm:$0xf]
      %v3665 = vld [vmem:[%s3431 + $0x3a4] sm:$0xf]
      %v3666 = vld [vmem:[%s3431 + $0x3a8] sm:$0xf]
      %v3667 = vld [vmem:[%s3431 + $0x3ac] sm:$0xf]
      %v3668 = vld [vmem:[%s3431 + $0x3b0] sm:$0xf]
      %v3669 = vld [vmem:[%s3431 + $0x3b4] sm:$0xf]
      %v3670 = vld [vmem:[%s3431 + $0x3b8] sm:$0xf]
      %v3671 = vld [vmem:[%s3431 + $0x3bc] sm:$0xf]
      %v3672 = vld [vmem:[%s3431 + $0x3c0] sm:$0xf]
      %v3673 = vld [vmem:[%s3431 + $0x3c4] sm:$0xf]
      %v3674 = vld [vmem:[%s3431 + $0x3c8] sm:$0xf]
      %v3675 = vld [vmem:[%s3431 + $0x3cc] sm:$0xf]
      %v3676 = vld [vmem:[%s3431 + $0x3d0] sm:$0xf]
      %v3677 = vld [vmem:[%s3431 + $0x3d4] sm:$0xf]
      %v3678 = vld [vmem:[%s3431 + $0x3d8] sm:$0xf]
      %v3679 = vld [vmem:[%s3431 + $0x3dc] sm:$0xf]
      %v3680 = vld [vmem:[%s3431 + $0x3e0] sm:$0xf]
      %v3681 = vld [vmem:[%s3431 + $0x3e4] sm:$0xf]
      %v3682 = vld [vmem:[%s3431 + $0x3e8] sm:$0xf]
      %v3683 = vld [vmem:[%s3431 + $0x3ec] sm:$0xf]
      %v3684 = vld [vmem:[%s3431 + $0x3f0] sm:$0xf]
      %v3685 = vld [vmem:[%s3431 + $0x3f4] sm:$0xf]
      %v3686 = vld [vmem:[%s3431 + $0x3f8] sm:$0xf]
      %v3687 = vld [vmem:[%s3431 + $0x3fc] sm:$0xf]
      %s3688 = scalar_lea.vmem %s3, 1
      %v3689 = vld [vmem:[%s3688] sm:$0x1]
      %v3691 = vshrl.u32 %v2069, 16
      %v3694 = vshrl.u32 %v2070, 16
      %v3697 = vshrl.u32 %v2071, 16
      %v3700 = vshrl.u32 %v2072, 16
      %v3703 = vshrl.u32 %v2073, 16
      %v3706 = vshrl.u32 %v2074, 16
      %v3709 = vshrl.u32 %v2075, 16
      %v3712 = vshrl.u32 %v2076, 16
      %v3715 = vshrl.u32 %v2077, 16
      %v3718 = vshrl.u32 %v2078, 16
      %v3721 = vshrl.u32 %v2079, 16
      %v3724 = vshrl.u32 %v2080, 16
      %v3727 = vshrl.u32 %v2081, 16
      %v3730 = vshrl.u32 %v2082, 16
      %v3733 = vshrl.u32 %v2083, 16
      %v3736 = vshrl.u32 %v2084, 16
      %v4010 = vunpack.c.l.b16 %v3432
      %v4011 = vunpack.c.l.b16 %v3433
      %v4012 = vunpack.c.l.b16 %v3434
      %v4013 = vunpack.c.l.b16 %v3435
      %v4014 = vunpack.c.l.b16 %v3436
      %v4015 = vunpack.c.l.b16 %v3437
      %v4016 = vunpack.c.l.b16 %v3438
      %v4017 = vunpack.c.l.b16 %v3439
      %v4018 = vunpack.c.l.b16 %v3440
      %v4019 = vunpack.c.l.b16 %v3441
      %v4020 = vunpack.c.l.b16 %v3442
      %v4021 = vunpack.c.l.b16 %v3443
      %v4022 = vunpack.c.l.b16 %v3444
      %v4023 = vunpack.c.l.b16 %v3445
      %v4024 = vunpack.c.l.b16 %v3446
      %v4025 = vunpack.c.l.b16 %v3447
      %v4026 = vunpack.c.l.b16 %v3448
      %v4027 = vunpack.c.l.b16 %v3449
      %v4028 = vunpack.c.l.b16 %v3450
      %v4029 = vunpack.c.l.b16 %v3451
      %v4030 = vunpack.c.l.b16 %v3452
      %v4031 = vunpack.c.l.b16 %v3453
      %v4032 = vunpack.c.l.b16 %v3454
      %v4033 = vunpack.c.l.b16 %v3455
      %v4034 = vunpack.c.l.b16 %v3456
      %v4035 = vunpack.c.l.b16 %v3457
      %v4036 = vunpack.c.l.b16 %v3458
      %v4037 = vunpack.c.l.b16 %v3459
      %v4038 = vunpack.c.l.b16 %v3460
      %v4039 = vunpack.c.l.b16 %v3461
      %v4040 = vunpack.c.l.b16 %v3462
      %v4041 = vunpack.c.l.b16 %v3463
      %v4042 = vunpack.c.l.b16 %v3464
      %v4043 = vunpack.c.l.b16 %v3465
      %v4044 = vunpack.c.l.b16 %v3466
      %v4045 = vunpack.c.l.b16 %v3467
      %v4046 = vunpack.c.l.b16 %v3468
      %v4047 = vunpack.c.l.b16 %v3469
      %v4048 = vunpack.c.l.b16 %v3470
      %v4049 = vunpack.c.l.b16 %v3471
      %v4050 = vunpack.c.l.b16 %v3472
      %v4051 = vunpack.c.l.b16 %v3473
      %v4052 = vunpack.c.l.b16 %v3474
      %v4053 = vunpack.c.l.b16 %v3475
      %v4054 = vunpack.c.l.b16 %v3476
      %v4055 = vunpack.c.l.b16 %v3477
      %v4056 = vunpack.c.l.b16 %v3478
      %v4057 = vunpack.c.l.b16 %v3479
      %v4058 = vunpack.c.l.b16 %v3480
      %v4059 = vunpack.c.l.b16 %v3481
      %v4060 = vunpack.c.l.b16 %v3482
      %v4061 = vunpack.c.l.b16 %v3483
      %v4062 = vunpack.c.l.b16 %v3484
      %v4063 = vunpack.c.l.b16 %v3485
      %v4064 = vunpack.c.l.b16 %v3486
      %v4065 = vunpack.c.l.b16 %v3487
      %v4066 = vunpack.c.l.b16 %v3488
      %v4067 = vunpack.c.l.b16 %v3489
      %v4068 = vunpack.c.l.b16 %v3490
      %v4069 = vunpack.c.l.b16 %v3491
      %v4070 = vunpack.c.l.b16 %v3492
      %v4071 = vunpack.c.l.b16 %v3493
      %v4072 = vunpack.c.l.b16 %v3494
      %v4073 = vunpack.c.l.b16 %v3495
      %v4074 = vunpack.c.l.b16 %v3496
      %v4075 = vunpack.c.l.b16 %v3497
      %v4076 = vunpack.c.l.b16 %v3498
      %v4077 = vunpack.c.l.b16 %v3499
      %v4078 = vunpack.c.l.b16 %v3500
      %v4079 = vunpack.c.l.b16 %v3501
      %v4080 = vunpack.c.l.b16 %v3502
      %v4081 = vunpack.c.l.b16 %v3503
      %v4082 = vunpack.c.l.b16 %v3504
      %v4083 = vunpack.c.l.b16 %v3505
      %v4084 = vunpack.c.l.b16 %v3506
      %v4085 = vunpack.c.l.b16 %v3507
      %v4086 = vunpack.c.l.b16 %v3508
      %v4087 = vunpack.c.l.b16 %v3509
      %v4088 = vunpack.c.l.b16 %v3510
      %v4089 = vunpack.c.l.b16 %v3511
      %v4090 = vunpack.c.l.b16 %v3512
      %v4091 = vunpack.c.l.b16 %v3513
      %v4092 = vunpack.c.l.b16 %v3514
      %v4093 = vunpack.c.l.b16 %v3515
      %v4094 = vunpack.c.l.b16 %v3516
      %v4095 = vunpack.c.l.b16 %v3517
      %v4096 = vunpack.c.l.b16 %v3518
      %v4097 = vunpack.c.l.b16 %v3519
      %v4098 = vunpack.c.l.b16 %v3520
      %v4099 = vunpack.c.l.b16 %v3521
      %v4100 = vunpack.c.l.b16 %v3522
      %v4101 = vunpack.c.l.b16 %v3523
      %v4102 = vunpack.c.l.b16 %v3524
      %v4103 = vunpack.c.l.b16 %v3525
      %v4104 = vunpack.c.l.b16 %v3526
      %v4105 = vunpack.c.l.b16 %v3527
      %v4106 = vunpack.c.l.b16 %v3528
      %v4107 = vunpack.c.l.b16 %v3529
      %v4108 = vunpack.c.l.b16 %v3530
      %v4109 = vunpack.c.l.b16 %v3531
      %v4110 = vunpack.c.l.b16 %v3532
      %v4111 = vunpack.c.l.b16 %v3533
      %v4112 = vunpack.c.l.b16 %v3534
      %v4113 = vunpack.c.l.b16 %v3535
      %v4114 = vunpack.c.l.b16 %v3536
      %v4115 = vunpack.c.l.b16 %v3537
      %v4116 = vunpack.c.l.b16 %v3538
      %v4117 = vunpack.c.l.b16 %v3539
      %v4118 = vunpack.c.l.b16 %v3540
      %v4119 = vunpack.c.l.b16 %v3541
      %v4120 = vunpack.c.l.b16 %v3542
      %v4121 = vunpack.c.l.b16 %v3543
      %v4122 = vunpack.c.l.b16 %v3544
      %v4123 = vunpack.c.l.b16 %v3545
      %v4124 = vunpack.c.l.b16 %v3546
      %v4125 = vunpack.c.l.b16 %v3547
      %v4126 = vunpack.c.l.b16 %v3548
      %v4127 = vunpack.c.l.b16 %v3549
      %v4128 = vunpack.c.l.b16 %v3550
      %v4129 = vunpack.c.l.b16 %v3551
      %v4130 = vunpack.c.l.b16 %v3552
      %v4131 = vunpack.c.l.b16 %v3553
      %v4132 = vunpack.c.l.b16 %v3554
      %v4133 = vunpack.c.l.b16 %v3555
      %v4134 = vunpack.c.l.b16 %v3556
      %v4135 = vunpack.c.l.b16 %v3557
      %v4136 = vunpack.c.l.b16 %v3558
      %v4137 = vunpack.c.l.b16 %v3559
      %v4138 = vunpack.c.l.b16 %v3560
      %v4139 = vunpack.c.l.b16 %v3561
      %v4140 = vunpack.c.l.b16 %v3562
      %v4141 = vunpack.c.l.b16 %v3563
      %v4142 = vunpack.c.l.b16 %v3564
      %v4143 = vunpack.c.l.b16 %v3565
      %v4144 = vunpack.c.l.b16 %v3566
      %v4145 = vunpack.c.l.b16 %v3567
      %v4146 = vunpack.c.l.b16 %v3568
      %v4147 = vunpack.c.l.b16 %v3569
      %v4148 = vunpack.c.l.b16 %v3570
      %v4149 = vunpack.c.l.b16 %v3571
      %v4150 = vunpack.c.l.b16 %v3572
      %v4151 = vunpack.c.l.b16 %v3573
      %v4152 = vunpack.c.l.b16 %v3574
      %v4153 = vunpack.c.l.b16 %v3575
      %v4154 = vunpack.c.l.b16 %v3576
      %v4155 = vunpack.c.l.b16 %v3577
      %v4156 = vunpack.c.l.b16 %v3578
      %v4157 = vunpack.c.l.b16 %v3579
      %v4158 = vunpack.c.l.b16 %v3580
      %v4159 = vunpack.c.l.b16 %v3581
      %v4160 = vunpack.c.l.b16 %v3582
      %v4161 = vunpack.c.l.b16 %v3583
      %v4162 = vunpack.c.l.b16 %v3584
      %v4163 = vunpack.c.l.b16 %v3585
      %v4164 = vunpack.c.l.b16 %v3586
      %v4165 = vunpack.c.l.b16 %v3587
      %v4166 = vunpack.c.l.b16 %v3588
      %v4167 = vunpack.c.l.b16 %v3589
      %v4168 = vunpack.c.l.b16 %v3590
      %v4169 = vunpack.c.l.b16 %v3591
      %v4170 = vunpack.c.l.b16 %v3592
      %v4171 = vunpack.c.l.b16 %v3593
      %v4172 = vunpack.c.l.b16 %v3594
      %v4173 = vunpack.c.l.b16 %v3595
      %v4174 = vunpack.c.l.b16 %v3596
      %v4175 = vunpack.c.l.b16 %v3597
      %v4176 = vunpack.c.l.b16 %v3598
      %v4177 = vunpack.c.l.b16 %v3599
      %v4178 = vunpack.c.l.b16 %v3600
      %v4179 = vunpack.c.l.b16 %v3601
      %v4180 = vunpack.c.l.b16 %v3602
      %v4181 = vunpack.c.l.b16 %v3603
      %v4182 = vunpack.c.l.b16 %v3604
      %v4183 = vunpack.c.l.b16 %v3605
      %v4184 = vunpack.c.l.b16 %v3606
      %v4185 = vunpack.c.l.b16 %v3607
      %v4186 = vunpack.c.l.b16 %v3608
      %v4187 = vunpack.c.l.b16 %v3609
      %v4188 = vunpack.c.l.b16 %v3610
      %v4189 = vunpack.c.l.b16 %v3611
      %v4190 = vunpack.c.l.b16 %v3612
      %v4191 = vunpack.c.l.b16 %v3613
      %v4192 = vunpack.c.l.b16 %v3614
      %v4193 = vunpack.c.l.b16 %v3615
      %v4194 = vunpack.c.l.b16 %v3616
      %v4195 = vunpack.c.l.b16 %v3617
      %v4196 = vunpack.c.l.b16 %v3618
      %v4197 = vunpack.c.l.b16 %v3619
      %v4198 = vunpack.c.l.b16 %v3620
      %v4199 = vunpack.c.l.b16 %v3621
      %v4200 = vunpack.c.l.b16 %v3622
      %v4201 = vunpack.c.l.b16 %v3623
      %v4202 = vunpack.c.l.b16 %v3624
      %v4203 = vunpack.c.l.b16 %v3625
      %v4204 = vunpack.c.l.b16 %v3626
      %v4205 = vunpack.c.l.b16 %v3627
      %v4206 = vunpack.c.l.b16 %v3628
      %v4207 = vunpack.c.l.b16 %v3629
      %v4208 = vunpack.c.l.b16 %v3630
      %v4209 = vunpack.c.l.b16 %v3631
      %v4210 = vunpack.c.l.b16 %v3632
      %v4211 = vunpack.c.l.b16 %v3633
      %v4212 = vunpack.c.l.b16 %v3634
      %v4213 = vunpack.c.l.b16 %v3635
      %v4214 = vunpack.c.l.b16 %v3636
      %v4215 = vunpack.c.l.b16 %v3637
      %v4216 = vunpack.c.l.b16 %v3638
      %v4217 = vunpack.c.l.b16 %v3639
      %v4218 = vunpack.c.l.b16 %v3640
      %v4219 = vunpack.c.l.b16 %v3641
      %v4220 = vunpack.c.l.b16 %v3642
      %v4221 = vunpack.c.l.b16 %v3643
      %v4222 = vunpack.c.l.b16 %v3644
      %v4223 = vunpack.c.l.b16 %v3645
      %v4224 = vunpack.c.l.b16 %v3646
      %v4225 = vunpack.c.l.b16 %v3647
      %v4226 = vunpack.c.l.b16 %v3648
      %v4227 = vunpack.c.l.b16 %v3649
      %v4228 = vunpack.c.l.b16 %v3650
      %v4229 = vunpack.c.l.b16 %v3651
      %v4230 = vunpack.c.l.b16 %v3652
      %v4231 = vunpack.c.l.b16 %v3653
      %v4232 = vunpack.c.l.b16 %v3654
      %v4233 = vunpack.c.l.b16 %v3655
      %v4234 = vunpack.c.l.b16 %v3656
      %v4235 = vunpack.c.l.b16 %v3657
      %v4236 = vunpack.c.l.b16 %v3658
      %v4237 = vunpack.c.l.b16 %v3659
      %v4238 = vunpack.c.l.b16 %v3660
      %v4239 = vunpack.c.l.b16 %v3661
      %v4240 = vunpack.c.l.b16 %v3662
      %v4241 = vunpack.c.l.b16 %v3663
      %v4242 = vunpack.c.l.b16 %v3664
      %v4243 = vunpack.c.l.b16 %v3665
      %v4244 = vunpack.c.l.b16 %v3666
      %v4245 = vunpack.c.l.b16 %v3667
      %v4246 = vunpack.c.l.b16 %v3668
      %v4247 = vunpack.c.l.b16 %v3669
      %v4248 = vunpack.c.l.b16 %v3670
      %v4249 = vunpack.c.l.b16 %v3671
      %v4250 = vunpack.c.l.b16 %v3672
      %v4251 = vunpack.c.l.b16 %v3673
      %v4252 = vunpack.c.l.b16 %v3674
      %v4253 = vunpack.c.l.b16 %v3675
      %v4254 = vunpack.c.l.b16 %v3676
      %v4255 = vunpack.c.l.b16 %v3677
      %v4256 = vunpack.c.l.b16 %v3678
      %v4257 = vunpack.c.l.b16 %v3679
      %v4258 = vunpack.c.l.b16 %v3680
      %v4259 = vunpack.c.l.b16 %v3681
      %v4260 = vunpack.c.l.b16 %v3682
      %v4261 = vunpack.c.l.b16 %v3683
      %v4262 = vunpack.c.l.b16 %v3684
      %v4263 = vunpack.c.l.b16 %v3685
      %v4264 = vunpack.c.l.b16 %v3686
      %v4265 = vunpack.c.l.b16 %v3687
      %v4266 = vpack.c.b16 %v4011, %v4010
      %v4267 = vpack.c.b16 %v4013, %v4012
      %v4268 = vpack.c.b16 %v4015, %v4014
      %v4269 = vpack.c.b16 %v4017, %v4016
      %v4270 = vpack.c.b16 %v4019, %v4018
      %v4271 = vpack.c.b16 %v4021, %v4020
      %v4272 = vpack.c.b16 %v4023, %v4022
      %v4273 = vpack.c.b16 %v4025, %v4024
      %v4274 = vpack.c.b16 %v4027, %v4026
      %v4275 = vpack.c.b16 %v4029, %v4028
      %v4276 = vpack.c.b16 %v4031, %v4030
      %v4277 = vpack.c.b16 %v4033, %v4032
      %v4278 = vpack.c.b16 %v4035, %v4034
      %v4279 = vpack.c.b16 %v4037, %v4036
      %v4280 = vpack.c.b16 %v4039, %v4038
      %v4281 = vpack.c.b16 %v4041, %v4040
      %v4282 = vpack.c.b16 %v4043, %v4042
      %v4283 = vpack.c.b16 %v4045, %v4044
      %v4284 = vpack.c.b16 %v4047, %v4046
      %v4285 = vpack.c.b16 %v4049, %v4048
      %v4286 = vpack.c.b16 %v4051, %v4050
      %v4287 = vpack.c.b16 %v4053, %v4052
      %v4288 = vpack.c.b16 %v4055, %v4054
      %v4289 = vpack.c.b16 %v4057, %v4056
      %v4290 = vpack.c.b16 %v4059, %v4058
      %v4291 = vpack.c.b16 %v4061, %v4060
      %v4292 = vpack.c.b16 %v4063, %v4062
      %v4293 = vpack.c.b16 %v4065, %v4064
      %v4294 = vpack.c.b16 %v4067, %v4066
      %v4295 = vpack.c.b16 %v4069, %v4068
      %v4296 = vpack.c.b16 %v4071, %v4070
      %v4297 = vpack.c.b16 %v4073, %v4072
      %v4298 = vpack.c.b16 %v4075, %v4074
      %v4299 = vpack.c.b16 %v4077, %v4076
      %v4300 = vpack.c.b16 %v4079, %v4078
      %v4301 = vpack.c.b16 %v4081, %v4080
      %v4302 = vpack.c.b16 %v4083, %v4082
      %v4303 = vpack.c.b16 %v4085, %v4084
      %v4304 = vpack.c.b16 %v4087, %v4086
      %v4305 = vpack.c.b16 %v4089, %v4088
      %v4306 = vpack.c.b16 %v4091, %v4090
      %v4307 = vpack.c.b16 %v4093, %v4092
      %v4308 = vpack.c.b16 %v4095, %v4094
      %v4309 = vpack.c.b16 %v4097, %v4096
      %v4310 = vpack.c.b16 %v4099, %v4098
      %v4311 = vpack.c.b16 %v4101, %v4100
      %v4312 = vpack.c.b16 %v4103, %v4102
      %v4313 = vpack.c.b16 %v4105, %v4104
      %v4314 = vpack.c.b16 %v4107, %v4106
      %v4315 = vpack.c.b16 %v4109, %v4108
      %v4316 = vpack.c.b16 %v4111, %v4110
      %v4317 = vpack.c.b16 %v4113, %v4112
      %v4318 = vpack.c.b16 %v4115, %v4114
      %v4319 = vpack.c.b16 %v4117, %v4116
      %v4320 = vpack.c.b16 %v4119, %v4118
      %v4321 = vpack.c.b16 %v4121, %v4120
      %v4322 = vpack.c.b16 %v4123, %v4122
      %v4323 = vpack.c.b16 %v4125, %v4124
      %v4324 = vpack.c.b16 %v4127, %v4126
      %v4325 = vpack.c.b16 %v4129, %v4128
      %v4326 = vpack.c.b16 %v4131, %v4130
      %v4327 = vpack.c.b16 %v4133, %v4132
      %v4328 = vpack.c.b16 %v4135, %v4134
      %v4329 = vpack.c.b16 %v4137, %v4136
      %v4330 = vpack.c.b16 %v4139, %v4138
      %v4331 = vpack.c.b16 %v4141, %v4140
      %v4332 = vpack.c.b16 %v4143, %v4142
      %v4333 = vpack.c.b16 %v4145, %v4144
      %v4334 = vpack.c.b16 %v4147, %v4146
      %v4335 = vpack.c.b16 %v4149, %v4148
      %v4336 = vpack.c.b16 %v4151, %v4150
      %v4337 = vpack.c.b16 %v4153, %v4152
      %v4338 = vpack.c.b16 %v4155, %v4154
      %v4339 = vpack.c.b16 %v4157, %v4156
      %v4340 = vpack.c.b16 %v4159, %v4158
      %v4341 = vpack.c.b16 %v4161, %v4160
      %v4342 = vpack.c.b16 %v4163, %v4162
      %v4343 = vpack.c.b16 %v4165, %v4164
      %v4344 = vpack.c.b16 %v4167, %v4166
      %v4345 = vpack.c.b16 %v4169, %v4168
      %v4346 = vpack.c.b16 %v4171, %v4170
      %v4347 = vpack.c.b16 %v4173, %v4172
      %v4348 = vpack.c.b16 %v4175, %v4174
      %v4349 = vpack.c.b16 %v4177, %v4176
      %v4350 = vpack.c.b16 %v4179, %v4178
      %v4351 = vpack.c.b16 %v4181, %v4180
      %v4352 = vpack.c.b16 %v4183, %v4182
      %v4353 = vpack.c.b16 %v4185, %v4184
      %v4354 = vpack.c.b16 %v4187, %v4186
      %v4355 = vpack.c.b16 %v4189, %v4188
      %v4356 = vpack.c.b16 %v4191, %v4190
      %v4357 = vpack.c.b16 %v4193, %v4192
      %v4358 = vpack.c.b16 %v4195, %v4194
      %v4359 = vpack.c.b16 %v4197, %v4196
      %v4360 = vpack.c.b16 %v4199, %v4198
      %v4361 = vpack.c.b16 %v4201, %v4200
      %v4362 = vpack.c.b16 %v4203, %v4202
      %v4363 = vpack.c.b16 %v4205, %v4204
      %v4364 = vpack.c.b16 %v4207, %v4206
      %v4365 = vpack.c.b16 %v4209, %v4208
      %v4366 = vpack.c.b16 %v4211, %v4210
      %v4367 = vpack.c.b16 %v4213, %v4212
      %v4368 = vpack.c.b16 %v4215, %v4214
      %v4369 = vpack.c.b16 %v4217, %v4216
      %v4370 = vpack.c.b16 %v4219, %v4218
      %v4371 = vpack.c.b16 %v4221, %v4220
      %v4372 = vpack.c.b16 %v4223, %v4222
      %v4373 = vpack.c.b16 %v4225, %v4224
      %v4374 = vpack.c.b16 %v4227, %v4226
      %v4375 = vpack.c.b16 %v4229, %v4228
      %v4376 = vpack.c.b16 %v4231, %v4230
      %v4377 = vpack.c.b16 %v4233, %v4232
      %v4378 = vpack.c.b16 %v4235, %v4234
      %v4379 = vpack.c.b16 %v4237, %v4236
      %v4380 = vpack.c.b16 %v4239, %v4238
      %v4381 = vpack.c.b16 %v4241, %v4240
      %v4382 = vpack.c.b16 %v4243, %v4242
      %v4383 = vpack.c.b16 %v4245, %v4244
      %v4384 = vpack.c.b16 %v4247, %v4246
      %v4385 = vpack.c.b16 %v4249, %v4248
      %v4386 = vpack.c.b16 %v4251, %v4250
      %v4387 = vpack.c.b16 %v4253, %v4252
      %v4388 = vpack.c.b16 %v4255, %v4254
      %v4389 = vpack.c.b16 %v4257, %v4256
      %v4390 = vpack.c.b16 %v4259, %v4258
      %v4391 = vpack.c.b16 %v4261, %v4260
      %v4392 = vpack.c.b16 %v4263, %v4262
      %v4393 = vpack.c.b16 %v4265, %v4264
      %4522 = vmatprep.subr.bf16.mxu0 0
      %4523 = vmatpush1.bf16.msra.mxu0 %v4266
      %4524 = vmatprep.subr.bf16.mxu0 0
      %4525 = vmatpush1.bf16.msra.mxu0 %v4267
      %4526 = vmatprep.subr.bf16.mxu0 0
      %4527 = vmatpush1.bf16.msra.mxu0 %v4268
      %4528 = vmatprep.subr.bf16.mxu0 0
      %4529 = vmatpush1.bf16.msra.mxu0 %v4269
      %4530 = vmatprep.subr.bf16.mxu0 0
      %4531 = vmatpush1.bf16.msra.mxu0 %v4270
      %4532 = vmatprep.subr.bf16.mxu0 0
      %4533 = vmatpush1.bf16.msra.mxu0 %v4271
      %4534 = vmatprep.subr.bf16.mxu0 0
      %4535 = vmatpush1.bf16.msra.mxu0 %v4272
      %4536 = vmatprep.subr.bf16.mxu0 0
      %4537 = vmatpush1.bf16.msra.mxu0 %v4273
      %4538 = vmatprep.subr.bf16.mxu0 0
      %4539 = vmatpush1.bf16.msra.mxu0 %v4274
      %4540 = vmatprep.subr.bf16.mxu0 0
      %4541 = vmatpush1.bf16.msra.mxu0 %v4275
      %4542 = vmatprep.subr.bf16.mxu0 0
      %4543 = vmatpush1.bf16.msra.mxu0 %v4276
      %4544 = vmatprep.subr.bf16.mxu0 0
      %4545 = vmatpush1.bf16.msra.mxu0 %v4277
      %4546 = vmatprep.subr.bf16.mxu0 0
      %4547 = vmatpush1.bf16.msra.mxu0 %v4278
      %4548 = vmatprep.subr.bf16.mxu0 0
      %4549 = vmatpush1.bf16.msra.mxu0 %v4279
      %4550 = vmatprep.subr.bf16.mxu0 0
      %4551 = vmatpush1.bf16.msra.mxu0 %v4280
      %4552 = vmatprep.subr.bf16.mxu0 0
      %4553 = vmatpush1.bf16.msra.mxu0 %v4281
      %4554 = vmatprep.mubr.bf16.mxu0 %v3694
      %4555 = vmatmul.mubr.bf16.gmra.mrb[0].mxu0 %v3691
      %v4556 = vpop.f32.mrb[0].mxu0
      %v4557 = vadd.f32 %v3689, %v4556
      %v4558 = vpop.f32.mrb[0].mxu0
      %v4559 = vpop.f32.mrb[0].mxu0
      %v4560 = vpop.f32.mrb[0].mxu0
      %4561 = vdwg.mxu0
      %4562 = vmatprep.subr.bf16.mxu0 0
      %4563 = vmatpush1.bf16.msra.mxu0 %v4282
      %4564 = vmatprep.subr.bf16.mxu0 0
      %4565 = vmatpush1.bf16.msra.mxu0 %v4283
      %4566 = vmatprep.subr.bf16.mxu0 0
      %4567 = vmatpush1.bf16.msra.mxu0 %v4284
      %4568 = vmatprep.subr.bf16.mxu0 0
      %4569 = vmatpush1.bf16.msra.mxu0 %v4285
      %4570 = vmatprep.subr.bf16.mxu0 0
      %4571 = vmatpush1.bf16.msra.mxu0 %v4286
      %4572 = vmatprep.subr.bf16.mxu0 0
      %4573 = vmatpush1.bf16.msra.mxu0 %v4287
      %4574 = vmatprep.subr.bf16.mxu0 0
      %4575 = vmatpush1.bf16.msra.mxu0 %v4288
      %4576 = vmatprep.subr.bf16.mxu0 0
      %4577 = vmatpush1.bf16.msra.mxu0 %v4289
      %4578 = vmatprep.subr.bf16.mxu0 0
      %4579 = vmatpush1.bf16.msra.mxu0 %v4290
      %4580 = vmatprep.subr.bf16.mxu0 0
      %4581 = vmatpush1.bf16.msra.mxu0 %v4291
      %4582 = vmatprep.subr.bf16.mxu0 0
      %4583 = vmatpush1.bf16.msra.mxu0 %v4292
      %4584 = vmatprep.subr.bf16.mxu0 0
      %4585 = vmatpush1.bf16.msra.mxu0 %v4293
      %4586 = vmatprep.subr.bf16.mxu0 0
      %4587 = vmatpush1.bf16.msra.mxu0 %v4294
      %4588 = vmatprep.subr.bf16.mxu0 0
      %4589 = vmatpush1.bf16.msra.mxu0 %v4295
      %4590 = vmatprep.subr.bf16.mxu0 0
      %4591 = vmatpush1.bf16.msra.mxu0 %v4296
      %4592 = vmatprep.subr.bf16.mxu0 0
      %4593 = vmatpush1.bf16.msra.mxu0 %v4297
      %4594 = vmatprep.mubr.bf16.mxu0 %v3700
      %4595 = vmatmul.mubr.bf16.gmra.mrb[0].mxu0 %v3697
      %v4596 = vpop.f32.mrb[0].mxu0
      %v4597 = vadd.f32 %v4557, %v4596
      %v4598 = vpop.f32.mrb[0].mxu0
      %v4599 = vpop.f32.mrb[0].mxu0
      %v4600 = vpop.f32.mrb[0].mxu0
      %4601 = vdwg.mxu0
      %4602 = vmatprep.subr.bf16.mxu0 0
      %4603 = vmatpush1.bf16.msra.mxu0 %v4298
      %4604 = vmatprep.subr.bf16.mxu0 0
      %4605 = vmatpush1.bf16.msra.mxu0 %v4299
      %4606 = vmatprep.subr.bf16.mxu0 0
      %4607 = vmatpush1.bf16.msra.mxu0 %v4300
      %4608 = vmatprep.subr.bf16.mxu0 0
      %4609 = vmatpush1.bf16.msra.mxu0 %v4301
      %4610 = vmatprep.subr.bf16.mxu0 0
      %4611 = vmatpush1.bf16.msra.mxu0 %v4302
      %4612 = vmatprep.subr.bf16.mxu0 0
      %4613 = vmatpush1.bf16.msra.mxu0 %v4303
      %4614 = vmatprep.subr.bf16.mxu0 0
      %4615 = vmatpush1.bf16.msra.mxu0 %v4304
      %4616 = vmatprep.subr.bf16.mxu0 0
      %4617 = vmatpush1.bf16.msra.mxu0 %v4305
      %4618 = vmatprep.subr.bf16.mxu0 0
      %4619 = vmatpush1.bf16.msra.mxu0 %v4306
      %4620 = vmatprep.subr.bf16.mxu0 0
      %4621 = vmatpush1.bf16.msra.mxu0 %v4307
      %4622 = vmatprep.subr.bf16.mxu0 0
      %4623 = vmatpush1.bf16.msra.mxu0 %v4308
      %4624 = vmatprep.subr.bf16.mxu0 0
      %4625 = vmatpush1.bf16.msra.mxu0 %v4309
      %4626 = vmatprep.subr.bf16.mxu0 0
      %4627 = vmatpush1.bf16.msra.mxu0 %v4310
      %4628 = vmatprep.subr.bf16.mxu0 0
      %4629 = vmatpush1.bf16.msra.mxu0 %v4311
      %4630 = vmatprep.subr.bf16.mxu0 0
      %4631 = vmatpush1.bf16.msra.mxu0 %v4312
      %4632 = vmatprep.subr.bf16.mxu0 0
      %4633 = vmatpush1.bf16.msra.mxu0 %v4313
      %4634 = vmatprep.mubr.bf16.mxu0 %v3706
      %4635 = vmatmul.mubr.bf16.gmra.mrb[0].mxu0 %v3703
      %v4636 = vpop.f32.mrb[0].mxu0
      %v4637 = vadd.f32 %v4597, %v4636
      %v4638 = vpop.f32.mrb[0].mxu0
      %v4639 = vpop.f32.mrb[0].mxu0
      %v4640 = vpop.f32.mrb[0].mxu0
      %4641 = vdwg.mxu0
      %4642 = vmatprep.subr.bf16.mxu0 0
      %4643 = vmatpush1.bf16.msra.mxu0 %v4314
      %4644 = vmatprep.subr.bf16.mxu0 0
      %4645 = vmatpush1.bf16.msra.mxu0 %v4315
      %4646 = vmatprep.subr.bf16.mxu0 0
      %4647 = vmatpush1.bf16.msra.mxu0 %v4316
      %4648 = vmatprep.subr.bf16.mxu0 0
      %4649 = vmatpush1.bf16.msra.mxu0 %v4317
      %4650 = vmatprep.subr.bf16.mxu0 0
      %4651 = vmatpush1.bf16.msra.mxu0 %v4318
      %4652 = vmatprep.subr.bf16.mxu0 0
      %4653 = vmatpush1.bf16.msra.mxu0 %v4319
      %4654 = vmatprep.subr.bf16.mxu0 0
      %4655 = vmatpush1.bf16.msra.mxu0 %v4320
      %4656 = vmatprep.subr.bf16.mxu0 0
      %4657 = vmatpush1.bf16.msra.mxu0 %v4321
      %4658 = vmatprep.subr.bf16.mxu0 0
      %4659 = vmatpush1.bf16.msra.mxu0 %v4322
      %4660 = vmatprep.subr.bf16.mxu0 0
      %4661 = vmatpush1.bf16.msra.mxu0 %v4323
      %4662 = vmatprep.subr.bf16.mxu0 0
      %4663 = vmatpush1.bf16.msra.mxu0 %v4324
      %4664 = vmatprep.subr.bf16.mxu0 0
      %4665 = vmatpush1.bf16.msra.mxu0 %v4325
      %4666 = vmatprep.subr.bf16.mxu0 0
      %4667 = vmatpush1.bf16.msra.mxu0 %v4326
      %4668 = vmatprep.subr.bf16.mxu0 0
      %4669 = vmatpush1.bf16.msra.mxu0 %v4327
      %4670 = vmatprep.subr.bf16.mxu0 0
      %4671 = vmatpush1.bf16.msra.mxu0 %v4328
      %4672 = vmatprep.subr.bf16.mxu0 0
      %4673 = vmatpush1.bf16.msra.mxu0 %v4329
      %4674 = vmatprep.mubr.bf16.mxu0 %v3712
      %4675 = vmatmul.mubr.bf16.gmra.mrb[0].mxu0 %v3709
      %v4676 = vpop.f32.mrb[0].mxu0
      %v4677 = vadd.f32 %v4637, %v4676
      %v4678 = vpop.f32.mrb[0].mxu0
      %v4679 = vpop.f32.mrb[0].mxu0
      %v4680 = vpop.f32.mrb[0].mxu0
      %4681 = vdwg.mxu0
      %4682 = vmatprep.subr.bf16.mxu0 0
      %4683 = vmatpush1.bf16.msra.mxu0 %v4330
      %4684 = vmatprep.subr.bf16.mxu0 0
      %4685 = vmatpush1.bf16.msra.mxu0 %v4331
      %4686 = vmatprep.subr.bf16.mxu0 0
      %4687 = vmatpush1.bf16.msra.mxu0 %v4332
      %4688 = vmatprep.subr.bf16.mxu0 0
      %4689 = vmatpush1.bf16.msra.mxu0 %v4333
      %4690 = vmatprep.subr.bf16.mxu0 0
      %4691 = vmatpush1.bf16.msra.mxu0 %v4334
      %4692 = vmatprep.subr.bf16.mxu0 0
      %4693 = vmatpush1.bf16.msra.mxu0 %v4335
      %4694 = vmatprep.subr.bf16.mxu0 0
      %4695 = vmatpush1.bf16.msra.mxu0 %v4336
      %4696 = vmatprep.subr.bf16.mxu0 0
      %4697 = vmatpush1.bf16.msra.mxu0 %v4337
      %4698 = vmatprep.subr.bf16.mxu0 0
      %4699 = vmatpush1.bf16.msra.mxu0 %v4338
      %4700 = vmatprep.subr.bf16.mxu0 0
      %4701 = vmatpush1.bf16.msra.mxu0 %v4339
      %4702 = vmatprep.subr.bf16.mxu0 0
      %4703 = vmatpush1.bf16.msra.mxu0 %v4340
      %4704 = vmatprep.subr.bf16.mxu0 0
      %4705 = vmatpush1.bf16.msra.mxu0 %v4341
      %4706 = vmatprep.subr.bf16.mxu0 0
      %4707 = vmatpush1.bf16.msra.mxu0 %v4342
      %4708 = vmatprep.subr.bf16.mxu0 0
      %4709 = vmatpush1.bf16.msra.mxu0 %v4343
      %4710 = vmatprep.subr.bf16.mxu0 0
      %4711 = vmatpush1.bf16.msra.mxu0 %v4344
      %4712 = vmatprep.subr.bf16.mxu0 0
      %4713 = vmatpush1.bf16.msra.mxu0 %v4345
      %4714 = vmatprep.mubr.bf16.mxu0 %v3718
      %4715 = vmatmul.mubr.bf16.gmra.mrb[0].mxu0 %v3715
      %v4716 = vpop.f32.mrb[0].mxu0
      %v4717 = vadd.f32 %v4677, %v4716
      %v4718 = vpop.f32.mrb[0].mxu0
      %v4719 = vpop.f32.mrb[0].mxu0
      %v4720 = vpop.f32.mrb[0].mxu0
      %4721 = vdwg.mxu0
      %4722 = vmatprep.subr.bf16.mxu0 0
      %4723 = vmatpush1.bf16.msra.mxu0 %v4346
      %4724 = vmatprep.subr.bf16.mxu0 0
      %4725 = vmatpush1.bf16.msra.mxu0 %v4347
      %4726 = vmatprep.subr.bf16.mxu0 0
      %4727 = vmatpush1.bf16.msra.mxu0 %v4348
      %4728 = vmatprep.subr.bf16.mxu0 0
      %4729 = vmatpush1.bf16.msra.mxu0 %v4349
      %4730 = vmatprep.subr.bf16.mxu0 0
      %4731 = vmatpush1.bf16.msra.mxu0 %v4350
      %4732 = vmatprep.subr.bf16.mxu0 0
      %4733 = vmatpush1.bf16.msra.mxu0 %v4351
      %4734 = vmatprep.subr.bf16.mxu0 0
      %4735 = vmatpush1.bf16.msra.mxu0 %v4352
      %4736 = vmatprep.subr.bf16.mxu0 0
      %4737 = vmatpush1.bf16.msra.mxu0 %v4353
      %4738 = vmatprep.subr.bf16.mxu0 0
      %4739 = vmatpush1.bf16.msra.mxu0 %v4354
      %4740 = vmatprep.subr.bf16.mxu0 0
      %4741 = vmatpush1.bf16.msra.mxu0 %v4355
      %4742 = vmatprep.subr.bf16.mxu0 0
      %4743 = vmatpush1.bf16.msra.mxu0 %v4356
      %4744 = vmatprep.subr.bf16.mxu0 0
      %4745 = vmatpush1.bf16.msra.mxu0 %v4357
      %4746 = vmatprep.subr.bf16.mxu0 0
      %4747 = vmatpush1.bf16.msra.mxu0 %v4358
      %4748 = vmatprep.subr.bf16.mxu0 0
      %4749 = vmatpush1.bf16.msra.mxu0 %v4359
      %4750 = vmatprep.subr.bf16.mxu0 0
      %4751 = vmatpush1.bf16.msra.mxu0 %v4360
      %4752 = vmatprep.subr.bf16.mxu0 0
      %4753 = vmatpush1.bf16.msra.mxu0 %v4361
      %4754 = vmatprep.mubr.bf16.mxu0 %v3724
      %4755 = vmatmul.mubr.bf16.gmra.mrb[0].mxu0 %v3721
      %v4756 = vpop.f32.mrb[0].mxu0
      %v4757 = vadd.f32 %v4717, %v4756
      %v4758 = vpop.f32.mrb[0].mxu0
      %v4759 = vpop.f32.mrb[0].mxu0
      %v4760 = vpop.f32.mrb[0].mxu0
      %4761 = vdwg.mxu0
      %4762 = vmatprep.subr.bf16.mxu0 0
      %4763 = vmatpush1.bf16.msra.mxu0 %v4362
      %4764 = vmatprep.subr.bf16.mxu0 0
      %4765 = vmatpush1.bf16.msra.mxu0 %v4363
      %4766 = vmatprep.subr.bf16.mxu0 0
      %4767 = vmatpush1.bf16.msra.mxu0 %v4364
      %4768 = vmatprep.subr.bf16.mxu0 0
      %4769 = vmatpush1.bf16.msra.mxu0 %v4365
      %4770 = vmatprep.subr.bf16.mxu0 0
      %4771 = vmatpush1.bf16.msra.mxu0 %v4366
      %4772 = vmatprep.subr.bf16.mxu0 0
      %4773 = vmatpush1.bf16.msra.mxu0 %v4367
      %4774 = vmatprep.subr.bf16.mxu0 0
      %4775 = vmatpush1.bf16.msra.mxu0 %v4368
      %4776 = vmatprep.subr.bf16.mxu0 0
      %4777 = vmatpush1.bf16.msra.mxu0 %v4369
      %4778 = vmatprep.subr.bf16.mxu0 0
      %4779 = vmatpush1.bf16.msra.mxu0 %v4370
      %4780 = vmatprep.subr.bf16.mxu0 0
      %4781 = vmatpush1.bf16.msra.mxu0 %v4371
      %4782 = vmatprep.subr.bf16.mxu0 0
      %4783 = vmatpush1.bf16.msra.mxu0 %v4372
      %4784 = vmatprep.subr.bf16.mxu0 0
      %4785 = vmatpush1.bf16.msra.mxu0 %v4373
      %4786 = vmatprep.subr.bf16.mxu0 0
      %4787 = vmatpush1.bf16.msra.mxu0 %v4374
      %4788 = vmatprep.subr.bf16.mxu0 0
      %4789 = vmatpush1.bf16.msra.mxu0 %v4375
      %4790 = vmatprep.subr.bf16.mxu0 0
      %4791 = vmatpush1.bf16.msra.mxu0 %v4376
      %4792 = vmatprep.subr.bf16.mxu0 0
      %4793 = vmatpush1.bf16.msra.mxu0 %v4377
      %4794 = vmatprep.mubr.bf16.mxu0 %v3730
      %4795 = vmatmul.mubr.bf16.gmra.mrb[0].mxu0 %v3727
      %v4796 = vpop.f32.mrb[0].mxu0
      %v4797 = vadd.f32 %v4757, %v4796
      %v4798 = vpop.f32.mrb[0].mxu0
      %v4799 = vpop.f32.mrb[0].mxu0
      %v4800 = vpop.f32.mrb[0].mxu0
      %4801 = vdwg.mxu0
      %4802 = vmatprep.subr.bf16.mxu0 0
      %4803 = vmatpush1.bf16.msra.mxu0 %v4378
      %4804 = vmatprep.subr.bf16.mxu0 0
      %4805 = vmatpush1.bf16.msra.mxu0 %v4379
      %4806 = vmatprep.subr.bf16.mxu0 0
      %4807 = vmatpush1.bf16.msra.mxu0 %v4380
      %4808 = vmatprep.subr.bf16.mxu0 0
      %4809 = vmatpush1.bf16.msra.mxu0 %v4381
      %4810 = vmatprep.subr.bf16.mxu0 0
      %4811 = vmatpush1.bf16.msra.mxu0 %v4382
      %4812 = vmatprep.subr.bf16.mxu0 0
      %4813 = vmatpush1.bf16.msra.mxu0 %v4383
      %4814 = vmatprep.subr.bf16.mxu0 0
      %4815 = vmatpush1.bf16.msra.mxu0 %v4384
      %4816 = vmatprep.subr.bf16.mxu0 0
      %4817 = vmatpush1.bf16.msra.mxu0 %v4385
      %4818 = vmatprep.subr.bf16.mxu0 0
      %4819 = vmatpush1.bf16.msra.mxu0 %v4386
      %4820 = vmatprep.subr.bf16.mxu0 0
      %4821 = vmatpush1.bf16.msra.mxu0 %v4387
      %4822 = vmatprep.subr.bf16.mxu0 0
      %4823 = vmatpush1.bf16.msra.mxu0 %v4388
      %4824 = vmatprep.subr.bf16.mxu0 0
      %4825 = vmatpush1.bf16.msra.mxu0 %v4389
      %4826 = vmatprep.subr.bf16.mxu0 0
      %4827 = vmatpush1.bf16.msra.mxu0 %v4390
      %4828 = vmatprep.subr.bf16.mxu0 0
      %4829 = vmatpush1.bf16.msra.mxu0 %v4391
      %4830 = vmatprep.subr.bf16.mxu0 0
      %4831 = vmatpush1.bf16.msra.mxu0 %v4392
      %4832 = vmatprep.subr.bf16.mxu0 0
      %4833 = vmatpush1.bf16.msra.mxu0 %v4393
      %4834 = vmatprep.mubr.bf16.mxu0 %v3736
      %4835 = vmatmul.mubr.bf16.gmra.mrb[0].mxu0 %v3733
      %v4836 = vpop.f32.mrb[0].mxu0
      %v4837 = vadd.f32 %v4797, %v4836
      %v4838 = vpop.f32.mrb[0].mxu0
      %v4839 = vpop.f32.mrb[0].mxu0
      %v4840 = vpop.f32.mrb[0].mxu0
      %4841 = vdwg.mxu0
      %4842 = vst [vmem:[%s195 + $0x1] sm:$0x1] %v4837
      %s4843 = scalar_lea.vmem %s2, 2048
      %v4844 = vld [vmem:[%s4843] sm:$0xf]
      %v4845 = vld [vmem:[%s4843 + $0x4] sm:$0xf]
      %v4846 = vld [vmem:[%s4843 + $0x8] sm:$0xf]
      %v4847 = vld [vmem:[%s4843 + $0xc] sm:$0xf]
      %v4848 = vld [vmem:[%s4843 + $0x10] sm:$0xf]
      %v4849 = vld [vmem:[%s4843 + $0x14] sm:$0xf]
      %v4850 = vld [vmem:[%s4843 + $0x18] sm:$0xf]
      %v4851 = vld [vmem:[%s4843 + $0x1c] sm:$0xf]
      %v4852 = vld [vmem:[%s4843 + $0x20] sm:$0xf]
      %v4853 = vld [vmem:[%s4843 + $0x24] sm:$0xf]
      %v4854 = vld [vmem:[%s4843 + $0x28] sm:$0xf]
      %v4855 = vld [vmem:[%s4843 + $0x2c] sm:$0xf]
      %v4856 = vld [vmem:[%s4843 + $0x30] sm:$0xf]
      %v4857 = vld [vmem:[%s4843 + $0x34] sm:$0xf]
      %v4858 = vld [vmem:[%s4843 + $0x38] sm:$0xf]
      %v4859 = vld [vmem:[%s4843 + $0x3c] sm:$0xf]
      %v4860 = vld [vmem:[%s4843 + $0x40] sm:$0xf]
      %v4861 = vld [vmem:[%s4843 + $0x44] sm:$0xf]
      %v4862 = vld [vmem:[%s4843 + $0x48] sm:$0xf]
      %v4863 = vld [vmem:[%s4843 + $0x4c] sm:$0xf]
      %v4864 = vld [vmem:[%s4843 + $0x50] sm:$0xf]
      %v4865 = vld [vmem:[%s4843 + $0x54] sm:$0xf]
      %v4866 = vld [vmem:[%s4843 + $0x58] sm:$0xf]
      %v4867 = vld [vmem:[%s4843 + $0x5c] sm:$0xf]
      %v4868 = vld [vmem:[%s4843 + $0x60] sm:$0xf]
      %v4869 = vld [vmem:[%s4843 + $0x64] sm:$0xf]
      %v4870 = vld [vmem:[%s4843 + $0x68] sm:$0xf]
      %v4871 = vld [vmem:[%s4843 + $0x6c] sm:$0xf]
      %v4872 = vld [vmem:[%s4843 + $0x70] sm:$0xf]
      %v4873 = vld [vmem:[%s4843 + $0x74] sm:$0xf]
      %v4874 = vld [vmem:[%s4843 + $0x78] sm:$0xf]
      %v4875 = vld [vmem:[%s4843 + $0x7c] sm:$0xf]
      %v4876 = vld [vmem:[%s4843 + $0x80] sm:$0xf]
      %v4877 = vld [vmem:[%s4843 + $0x84] sm:$0xf]
      %v4878 = vld [vmem:[%s4843 + $0x88] sm:$0xf]
      %v4879 = vld [vmem:[%s4843 + $0x8c] sm:$0xf]
      %v4880 = vld [vmem:[%s4843 + $0x90] sm:$0xf]
      %v4881 = vld [vmem:[%s4843 + $0x94] sm:$0xf]
      %v4882 = vld [vmem:[%s4843 + $0x98] sm:$0xf]
      %v4883 = vld [vmem:[%s4843 + $0x9c] sm:$0xf]
      %v4884 = vld [vmem:[%s4843 + $0xa0] sm:$0xf]
      %v4885 = vld [vmem:[%s4843 + $0xa4] sm:$0xf]
      %v4886 = vld [vmem:[%s4843 + $0xa8] sm:$0xf]
      %v4887 = vld [vmem:[%s4843 + $0xac] sm:$0xf]
      %v4888 = vld [vmem:[%s4843 + $0xb0] sm:$0xf]
      %v4889 = vld [vmem:[%s4843 + $0xb4] sm:$0xf]
      %v4890 = vld [vmem:[%s4843 + $0xb8] sm:$0xf]
      %v4891 = vld [vmem:[%s4843 + $0xbc] sm:$0xf]
      %v4892 = vld [vmem:[%s4843 + $0xc0] sm:$0xf]
      %v4893 = vld [vmem:[%s4843 + $0xc4] sm:$0xf]
      %v4894 = vld [vmem:[%s4843 + $0xc8] sm:$0xf]
      %v4895 = vld [vmem:[%s4843 + $0xcc] sm:$0xf]
      %v4896 = vld [vmem:[%s4843 + $0xd0] sm:$0xf]
      %v4897 = vld [vmem:[%s4843 + $0xd4] sm:$0xf]
      %v4898 = vld [vmem:[%s4843 + $0xd8] sm:$0xf]
      %v4899 = vld [vmem:[%s4843 + $0xdc] sm:$0xf]
      %v4900 = vld [vmem:[%s4843 + $0xe0] sm:$0xf]
      %v4901 = vld [vmem:[%s4843 + $0xe4] sm:$0xf]
      %v4902 = vld [vmem:[%s4843 + $0xe8] sm:$0xf]
      %v4903 = vld [vmem:[%s4843 + $0xec] sm:$0xf]
      %v4904 = vld [vmem:[%s4843 + $0xf0] sm:$0xf]
      %v4905 = vld [vmem:[%s4843 + $0xf4] sm:$0xf]
      %v4906 = vld [vmem:[%s4843 + $0xf8] sm:$0xf]
      %v4907 = vld [vmem:[%s4843 + $0xfc] sm:$0xf]
      %v4908 = vld [vmem:[%s4843 + $0x100] sm:$0xf]
      %v4909 = vld [vmem:[%s4843 + $0x104] sm:$0xf]
      %v4910 = vld [vmem:[%s4843 + $0x108] sm:$0xf]
      %v4911 = vld [vmem:[%s4843 + $0x10c] sm:$0xf]
      %v4912 = vld [vmem:[%s4843 + $0x110] sm:$0xf]
      %v4913 = vld [vmem:[%s4843 + $0x114] sm:$0xf]
      %v4914 = vld [vmem:[%s4843 + $0x118] sm:$0xf]
      %v4915 = vld [vmem:[%s4843 + $0x11c] sm:$0xf]
      %v4916 = vld [vmem:[%s4843 + $0x120] sm:$0xf]
      %v4917 = vld [vmem:[%s4843 + $0x124] sm:$0xf]
      %v4918 = vld [vmem:[%s4843 + $0x128] sm:$0xf]
      %v4919 = vld [vmem:[%s4843 + $0x12c] sm:$0xf]
      %v4920 = vld [vmem:[%s4843 + $0x130] sm:$0xf]
      %v4921 = vld [vmem:[%s4843 + $0x134] sm:$0xf]
      %v4922 = vld [vmem:[%s4843 + $0x138] sm:$0xf]
      %v4923 = vld [vmem:[%s4843 + $0x13c] sm:$0xf]
      %v4924 = vld [vmem:[%s4843 + $0x140] sm:$0xf]
      %v4925 = vld [vmem:[%s4843 + $0x144] sm:$0xf]
      %v4926 = vld [vmem:[%s4843 + $0x148] sm:$0xf]
      %v4927 = vld [vmem:[%s4843 + $0x14c] sm:$0xf]
      %v4928 = vld [vmem:[%s4843 + $0x150] sm:$0xf]
      %v4929 = vld [vmem:[%s4843 + $0x154] sm:$0xf]
      %v4930 = vld [vmem:[%s4843 + $0x158] sm:$0xf]
      %v4931 = vld [vmem:[%s4843 + $0x15c] sm:$0xf]
      %v4932 = vld [vmem:[%s4843 + $0x160] sm:$0xf]
      %v4933 = vld [vmem:[%s4843 + $0x164] sm:$0xf]
      %v4934 = vld [vmem:[%s4843 + $0x168] sm:$0xf]
      %v4935 = vld [vmem:[%s4843 + $0x16c] sm:$0xf]
      %v4936 = vld [vmem:[%s4843 + $0x170] sm:$0xf]
      %v4937 = vld [vmem:[%s4843 + $0x174] sm:$0xf]
      %v4938 = vld [vmem:[%s4843 + $0x178] sm:$0xf]
      %v4939 = vld [vmem:[%s4843 + $0x17c] sm:$0xf]
      %v4940 = vld [vmem:[%s4843 + $0x180] sm:$0xf]
      %v4941 = vld [vmem:[%s4843 + $0x184] sm:$0xf]
      %v4942 = vld [vmem:[%s4843 + $0x188] sm:$0xf]
      %v4943 = vld [vmem:[%s4843 + $0x18c] sm:$0xf]
      %v4944 = vld [vmem:[%s4843 + $0x190] sm:$0xf]
      %v4945 = vld [vmem:[%s4843 + $0x194] sm:$0xf]
      %v4946 = vld [vmem:[%s4843 + $0x198] sm:$0xf]
      %v4947 = vld [vmem:[%s4843 + $0x19c] sm:$0xf]
      %v4948 = vld [vmem:[%s4843 + $0x1a0] sm:$0xf]
      %v4949 = vld [vmem:[%s4843 + $0x1a4] sm:$0xf]
      %v4950 = vld [vmem:[%s4843 + $0x1a8] sm:$0xf]
      %v4951 = vld [vmem:[%s4843 + $0x1ac] sm:$0xf]
      %v4952 = vld [vmem:[%s4843 + $0x1b0] sm:$0xf]
      %v4953 = vld [vmem:[%s4843 + $0x1b4] sm:$0xf]
      %v4954 = vld [vmem:[%s4843 + $0x1b8] sm:$0xf]
      %v4955 = vld [vmem:[%s4843 + $0x1bc] sm:$0xf]
      %v4956 = vld [vmem:[%s4843 + $0x1c0] sm:$0xf]
      %v4957 = vld [vmem:[%s4843 + $0x1c4] sm:$0xf]
      %v4958 = vld [vmem:[%s4843 + $0x1c8] sm:$0xf]
      %v4959 = vld [vmem:[%s4843 + $0x1cc] sm:$0xf]
      %v4960 = vld [vmem:[%s4843 + $0x1d0] sm:$0xf]
      %v4961 = vld [vmem:[%s4843 + $0x1d4] sm:$0xf]
      %v4962 = vld [vmem:[%s4843 + $0x1d8] sm:$0xf]
      %v4963 = vld [vmem:[%s4843 + $0x1dc] sm:$0xf]
      %v4964 = vld [vmem:[%s4843 + $0x1e0] sm:$0xf]
      %v4965 = vld [vmem:[%s4843 + $0x1e4] sm:$0xf]
      %v4966 = vld [vmem:[%s4843 + $0x1e8] sm:$0xf]
      %v4967 = vld [vmem:[%s4843 + $0x1ec] sm:$0xf]
      %v4968 = vld [vmem:[%s4843 + $0x1f0] sm:$0xf]
      %v4969 = vld [vmem:[%s4843 + $0x1f4] sm:$0xf]
      %v4970 = vld [vmem:[%s4843 + $0x1f8] sm:$0xf]
      %v4971 = vld [vmem:[%s4843 + $0x1fc] sm:$0xf]
      %v4972 = vld [vmem:[%s4843 + $0x200] sm:$0xf]
      %v4973 = vld [vmem:[%s4843 + $0x204] sm:$0xf]
      %v4974 = vld [vmem:[%s4843 + $0x208] sm:$0xf]
      %v4975 = vld [vmem:[%s4843 + $0x20c] sm:$0xf]
      %v4976 = vld [vmem:[%s4843 + $0x210] sm:$0xf]
      %v4977 = vld [vmem:[%s4843 + $0x214] sm:$0xf]
      %v4978 = vld [vmem:[%s4843 + $0x218] sm:$0xf]
      %v4979 = vld [vmem:[%s4843 + $0x21c] sm:$0xf]
      %v4980 = vld [vmem:[%s4843 + $0x220] sm:$0xf]
      %v4981 = vld [vmem:[%s4843 + $0x224] sm:$0xf]
      %v4982 = vld [vmem:[%s4843 + $0x228] sm:$0xf]
      %v4983 = vld [vmem:[%s4843 + $0x22c] sm:$0xf]
      %v4984 = vld [vmem:[%s4843 + $0x230] sm:$0xf]
      %v4985 = vld [vmem:[%s4843 + $0x234] sm:$0xf]
      %v4986 = vld [vmem:[%s4843 + $0x238] sm:$0xf]
      %v4987 = vld [vmem:[%s4843 + $0x23c] sm:$0xf]
      %v4988 = vld [vmem:[%s4843 + $0x240] sm:$0xf]
      %v4989 = vld [vmem:[%s4843 + $0x244] sm:$0xf]
      %v4990 = vld [vmem:[%s4843 + $0x248] sm:$0xf]
      %v4991 = vld [vmem:[%s4843 + $0x24c] sm:$0xf]
      %v4992 = vld [vmem:[%s4843 + $0x250] sm:$0xf]
      %v4993 = vld [vmem:[%s4843 + $0x254] sm:$0xf]
      %v4994 = vld [vmem:[%s4843 + $0x258] sm:$0xf]
      %v4995 = vld [vmem:[%s4843 + $0x25c] sm:$0xf]
      %v4996 = vld [vmem:[%s4843 + $0x260] sm:$0xf]
      %v4997 = vld [vmem:[%s4843 + $0x264] sm:$0xf]
      %v4998 = vld [vmem:[%s4843 + $0x268] sm:$0xf]
      %v4999 = vld [vmem:[%s4843 + $0x26c] sm:$0xf]
      %v5000 = vld [vmem:[%s4843 + $0x270] sm:$0xf]
      %v5001 = vld [vmem:[%s4843 + $0x274] sm:$0xf]
      %v5002 = vld [vmem:[%s4843 + $0x278] sm:$0xf]
      %v5003 = vld [vmem:[%s4843 + $0x27c] sm:$0xf]
      %v5004 = vld [vmem:[%s4843 + $0x280] sm:$0xf]
      %v5005 = vld [vmem:[%s4843 + $0x284] sm:$0xf]
      %v5006 = vld [vmem:[%s4843 + $0x288] sm:$0xf]
      %v5007 = vld [vmem:[%s4843 + $0x28c] sm:$0xf]
      %v5008 = vld [vmem:[%s4843 + $0x290] sm:$0xf]
      %v5009 = vld [vmem:[%s4843 + $0x294] sm:$0xf]
      %v5010 = vld [vmem:[%s4843 + $0x298] sm:$0xf]
      %v5011 = vld [vmem:[%s4843 + $0x29c] sm:$0xf]
      %v5012 = vld [vmem:[%s4843 + $0x2a0] sm:$0xf]
      %v5013 = vld [vmem:[%s4843 + $0x2a4] sm:$0xf]
      %v5014 = vld [vmem:[%s4843 + $0x2a8] sm:$0xf]
      %v5015 = vld [vmem:[%s4843 + $0x2ac] sm:$0xf]
      %v5016 = vld [vmem:[%s4843 + $0x2b0] sm:$0xf]
      %v5017 = vld [vmem:[%s4843 + $0x2b4] sm:$0xf]
      %v5018 = vld [vmem:[%s4843 + $0x2b8] sm:$0xf]
      %v5019 = vld [vmem:[%s4843 + $0x2bc] sm:$0xf]
      %v5020 = vld [vmem:[%s4843 + $0x2c0] sm:$0xf]
      %v5021 = vld [vmem:[%s4843 + $0x2c4] sm:$0xf]
      %v5022 = vld [vmem:[%s4843 + $0x2c8] sm:$0xf]
      %v5023 = vld [vmem:[%s4843 + $0x2cc] sm:$0xf]
      %v5024 = vld [vmem:[%s4843 + $0x2d0] sm:$0xf]
      %v5025 = vld [vmem:[%s4843 + $0x2d4] sm:$0xf]
      %v5026 = vld [vmem:[%s4843 + $0x2d8] sm:$0xf]
      %v5027 = vld [vmem:[%s4843 + $0x2dc] sm:$0xf]
      %v5028 = vld [vmem:[%s4843 + $0x2e0] sm:$0xf]
      %v5029 = vld [vmem:[%s4843 + $0x2e4] sm:$0xf]
      %v5030 = vld [vmem:[%s4843 + $0x2e8] sm:$0xf]
      %v5031 = vld [vmem:[%s4843 + $0x2ec] sm:$0xf]
      %v5032 = vld [vmem:[%s4843 + $0x2f0] sm:$0xf]
      %v5033 = vld [vmem:[%s4843 + $0x2f4] sm:$0xf]
      %v5034 = vld [vmem:[%s4843 + $0x2f8] sm:$0xf]
      %v5035 = vld [vmem:[%s4843 + $0x2fc] sm:$0xf]
      %v5036 = vld [vmem:[%s4843 + $0x300] sm:$0xf]
      %v5037 = vld [vmem:[%s4843 + $0x304] sm:$0xf]
      %v5038 = vld [vmem:[%s4843 + $0x308] sm:$0xf]
      %v5039 = vld [vmem:[%s4843 + $0x30c] sm:$0xf]
      %v5040 = vld [vmem:[%s4843 + $0x310] sm:$0xf]
      %v5041 = vld [vmem:[%s4843 + $0x314] sm:$0xf]
      %v5042 = vld [vmem:[%s4843 + $0x318] sm:$0xf]
      %v5043 = vld [vmem:[%s4843 + $0x31c] sm:$0xf]
      %v5044 = vld [vmem:[%s4843 + $0x320] sm:$0xf]
      %v5045 = vld [vmem:[%s4843 + $0x324] sm:$0xf]
      %v5046 = vld [vmem:[%s4843 + $0x328] sm:$0xf]
      %v5047 = vld [vmem:[%s4843 + $0x32c] sm:$0xf]
      %v5048 = vld [vmem:[%s4843 + $0x330] sm:$0xf]
      %v5049 = vld [vmem:[%s4843 + $0x334] sm:$0xf]
      %v5050 = vld [vmem:[%s4843 + $0x338] sm:$0xf]
      %v5051 = vld [vmem:[%s4843 + $0x33c] sm:$0xf]
      %v5052 = vld [vmem:[%s4843 + $0x340] sm:$0xf]
      %v5053 = vld [vmem:[%s4843 + $0x344] sm:$0xf]
      %v5054 = vld [vmem:[%s4843 + $0x348] sm:$0xf]
      %v5055 = vld [vmem:[%s4843 + $0x34c] sm:$0xf]
      %v5056 = vld [vmem:[%s4843 + $0x350] sm:$0xf]
      %v5057 = vld [vmem:[%s4843 + $0x354] sm:$0xf]
      %v5058 = vld [vmem:[%s4843 + $0x358] sm:$0xf]
      %v5059 = vld [vmem:[%s4843 + $0x35c] sm:$0xf]
      %v5060 = vld [vmem:[%s4843 + $0x360] sm:$0xf]
      %v5061 = vld [vmem:[%s4843 + $0x364] sm:$0xf]
      %v5062 = vld [vmem:[%s4843 + $0x368] sm:$0xf]
      %v5063 = vld [vmem:[%s4843 + $0x36c] sm:$0xf]
      %v5064 = vld [vmem:[%s4843 + $0x370] sm:$0xf]
      %v5065 = vld [vmem:[%s4843 + $0x374] sm:$0xf]
      %v5066 = vld [vmem:[%s4843 + $0x378] sm:$0xf]
      %v5067 = vld [vmem:[%s4843 + $0x37c] sm:$0xf]
      %v5068 = vld [vmem:[%s4843 + $0x380] sm:$0xf]
      %v5069 = vld [vmem:[%s4843 + $0x384] sm:$0xf]
      %v5070 = vld [vmem:[%s4843 + $0x388] sm:$0xf]
      %v5071 = vld [vmem:[%s4843 + $0x38c] sm:$0xf]
      %v5072 = vld [vmem:[%s4843 + $0x390] sm:$0xf]
      %v5073 = vld [vmem:[%s4843 + $0x394] sm:$0xf]
      %v5074 = vld [vmem:[%s4843 + $0x398] sm:$0xf]
      %v5075 = vld [vmem:[%s4843 + $0x39c] sm:$0xf]
      %v5076 = vld [vmem:[%s4843 + $0x3a0] sm:$0xf]
      %v5077 = vld [vmem:[%s4843 + $0x3a4] sm:$0xf]
      %v5078 = vld [vmem:[%s4843 + $0x3a8] sm:$0xf]
      %v5079 = vld [vmem:[%s4843 + $0x3ac] sm:$0xf]
      %v5080 = vld [vmem:[%s4843 + $0x3b0] sm:$0xf]
      %v5081 = vld [vmem:[%s4843 + $0x3b4] sm:$0xf]
      %v5082 = vld [vmem:[%s4843 + $0x3b8] sm:$0xf]
      %v5083 = vld [vmem:[%s4843 + $0x3bc] sm:$0xf]
      %v5084 = vld [vmem:[%s4843 + $0x3c0] sm:$0xf]
      %v5085 = vld [vmem:[%s4843 + $0x3c4] sm:$0xf]
      %v5086 = vld [vmem:[%s4843 + $0x3c8] sm:$0xf]
      %v5087 = vld [vmem:[%s4843 + $0x3cc] sm:$0xf]
      %v5088 = vld [vmem:[%s4843 + $0x3d0] sm:$0xf]
      %v5089 = vld [vmem:[%s4843 + $0x3d4] sm:$0xf]
      %v5090 = vld [vmem:[%s4843 + $0x3d8] sm:$0xf]
      %v5091 = vld [vmem:[%s4843 + $0x3dc] sm:$0xf]
      %v5092 = vld [vmem:[%s4843 + $0x3e0] sm:$0xf]
      %v5093 = vld [vmem:[%s4843 + $0x3e4] sm:$0xf]
      %v5094 = vld [vmem:[%s4843 + $0x3e8] sm:$0xf]
      %v5095 = vld [vmem:[%s4843 + $0x3ec] sm:$0xf]
      %v5096 = vld [vmem:[%s4843 + $0x3f0] sm:$0xf]
      %v5097 = vld [vmem:[%s4843 + $0x3f4] sm:$0xf]
      %v5098 = vld [vmem:[%s4843 + $0x3f8] sm:$0xf]
      %v5099 = vld [vmem:[%s4843 + $0x3fc] sm:$0xf]
      %s5100 = scalar_lea.vmem %s3, 2
      %v5101 = vld [vmem:[%s5100] sm:$0x1]
      %v5118 = vrot.slane %v2069, 1
      %v5119 = vrot.slane %v2070, 1
      %v5120 = vrot.slane %v2071, 1
      %v5121 = vrot.slane %v2072, 1
      %v5122 = vrot.slane %v2073, 1
      %v5123 = vrot.slane %v2074, 1
      %v5124 = vrot.slane %v2075, 1
      %v5125 = vrot.slane %v2076, 1
      %v5126 = vrot.slane %v2077, 1
      %v5127 = vrot.slane %v2078, 1
      %v5128 = vrot.slane %v2079, 1
      %v5129 = vrot.slane %v2080, 1
      %v5130 = vrot.slane %v2081, 1
      %v5131 = vrot.slane %v2082, 1
      %v5132 = vrot.slane %v2083, 1
      %v5133 = vrot.slane %v2084, 1
      %v5406 = vunpack.c.l.b16 %v4844
      %v5407 = vunpack.c.l.b16 %v4845
      %v5408 = vunpack.c.l.b16 %v4846
      %v5409 = vunpack.c.l.b16 %v4847
      %v5410 = vunpack.c.l.b16 %v4848
      %v5411 = vunpack.c.l.b16 %v4849
      %v5412 = vunpack.c.l.b16 %v4850
      %v5413 = vunpack.c.l.b16 %v4851
      %v5414 = vunpack.c.l.b16 %v4852
      %v5415 = vunpack.c.l.b16 %v4853
      %v5416 = vunpack.c.l.b16 %v4854
      %v5417 = vunpack.c.l.b16 %v4855
      %v5418 = vunpack.c.l.b16 %v4856
      %v5419 = vunpack.c.l.b16 %v4857
      %v5420 = vunpack.c.l.b16 %v4858
      %v5421 = vunpack.c.l.b16 %v4859
      %v5422 = vunpack.c.l.b16 %v4860
      %v5423 = vunpack.c.l.b16 %v4861
      %v5424 = vunpack.c.l.b16 %v4862
      %v5425 = vunpack.c.l.b16 %v4863
      %v5426 = vunpack.c.l.b16 %v4864
      %v5427 = vunpack.c.l.b16 %v4865
      %v5428 = vunpack.c.l.b16 %v4866
      %v5429 = vunpack.c.l.b16 %v4867
      %v5430 = vunpack.c.l.b16 %v4868
      %v5431 = vunpack.c.l.b16 %v4869
      %v5432 = vunpack.c.l.b16 %v4870
      %v5433 = vunpack.c.l.b16 %v4871
      %v5434 = vunpack.c.l.b16 %v4872
      %v5435 = vunpack.c.l.b16 %v4873
      %v5436 = vunpack.c.l.b16 %v4874
      %v5437 = vunpack.c.l.b16 %v4875
      %v5438 = vunpack.c.l.b16 %v4876
      %v5439 = vunpack.c.l.b16 %v4877
      %v5440 = vunpack.c.l.b16 %v4878
      %v5441 = vunpack.c.l.b16 %v4879
      %v5442 = vunpack.c.l.b16 %v4880
      %v5443 = vunpack.c.l.b16 %v4881
      %v5444 = vunpack.c.l.b16 %v4882
      %v5445 = vunpack.c.l.b16 %v4883
      %v5446 = vunpack.c.l.b16 %v4884
      %v5447 = vunpack.c.l.b16 %v4885
      %v5448 = vunpack.c.l.b16 %v4886
      %v5449 = vunpack.c.l.b16 %v4887
      %v5450 = vunpack.c.l.b16 %v4888
      %v5451 = vunpack.c.l.b16 %v4889
      %v5452 = vunpack.c.l.b16 %v4890
      %v5453 = vunpack.c.l.b16 %v4891
      %v5454 = vunpack.c.l.b16 %v4892
      %v5455 = vunpack.c.l.b16 %v4893
      %v5456 = vunpack.c.l.b16 %v4894
      %v5457 = vunpack.c.l.b16 %v4895
      %v5458 = vunpack.c.l.b16 %v4896
      %v5459 = vunpack.c.l.b16 %v4897
      %v5460 = vunpack.c.l.b16 %v4898
      %v5461 = vunpack.c.l.b16 %v4899
      %v5462 = vunpack.c.l.b16 %v4900
      %v5463 = vunpack.c.l.b16 %v4901
      %v5464 = vunpack.c.l.b16 %v4902
      %v5465 = vunpack.c.l.b16 %v4903
      %v5466 = vunpack.c.l.b16 %v4904
      %v5467 = vunpack.c.l.b16 %v4905
      %v5468 = vunpack.c.l.b16 %v4906
      %v5469 = vunpack.c.l.b16 %v4907
      %v5470 = vunpack.c.l.b16 %v4908
      %v5471 = vunpack.c.l.b16 %v4909
      %v5472 = vunpack.c.l.b16 %v4910
      %v5473 = vunpack.c.l.b16 %v4911
      %v5474 = vunpack.c.l.b16 %v4912
      %v5475 = vunpack.c.l.b16 %v4913
      %v5476 = vunpack.c.l.b16 %v4914
      %v5477 = vunpack.c.l.b16 %v4915
      %v5478 = vunpack.c.l.b16 %v4916
      %v5479 = vunpack.c.l.b16 %v4917
      %v5480 = vunpack.c.l.b16 %v4918
      %v5481 = vunpack.c.l.b16 %v4919
      %v5482 = vunpack.c.l.b16 %v4920
      %v5483 = vunpack.c.l.b16 %v4921
      %v5484 = vunpack.c.l.b16 %v4922
      %v5485 = vunpack.c.l.b16 %v4923
      %v5486 = vunpack.c.l.b16 %v4924
      %v5487 = vunpack.c.l.b16 %v4925
      %v5488 = vunpack.c.l.b16 %v4926
      %v5489 = vunpack.c.l.b16 %v4927
      %v5490 = vunpack.c.l.b16 %v4928
      %v5491 = vunpack.c.l.b16 %v4929
      %v5492 = vunpack.c.l.b16 %v4930
      %v5493 = vunpack.c.l.b16 %v4931
      %v5494 = vunpack.c.l.b16 %v4932
      %v5495 = vunpack.c.l.b16 %v4933
      %v5496 = vunpack.c.l.b16 %v4934
      %v5497 = vunpack.c.l.b16 %v4935
      %v5498 = vunpack.c.l.b16 %v4936
      %v5499 = vunpack.c.l.b16 %v4937
      %v5500 = vunpack.c.l.b16 %v4938
      %v5501 = vunpack.c.l.b16 %v4939
      %v5502 = vunpack.c.l.b16 %v4940
      %v5503 = vunpack.c.l.b16 %v4941
      %v5504 = vunpack.c.l.b16 %v4942
      %v5505 = vunpack.c.l.b16 %v4943
      %v5506 = vunpack.c.l.b16 %v4944
      %v5507 = vunpack.c.l.b16 %v4945
      %v5508 = vunpack.c.l.b16 %v4946
      %v5509 = vunpack.c.l.b16 %v4947
      %v5510 = vunpack.c.l.b16 %v4948
      %v5511 = vunpack.c.l.b16 %v4949
      %v5512 = vunpack.c.l.b16 %v4950
      %v5513 = vunpack.c.l.b16 %v4951
      %v5514 = vunpack.c.l.b16 %v4952
      %v5515 = vunpack.c.l.b16 %v4953
      %v5516 = vunpack.c.l.b16 %v4954
      %v5517 = vunpack.c.l.b16 %v4955
      %v5518 = vunpack.c.l.b16 %v4956
      %v5519 = vunpack.c.l.b16 %v4957
      %v5520 = vunpack.c.l.b16 %v4958
      %v5521 = vunpack.c.l.b16 %v4959
      %v5522 = vunpack.c.l.b16 %v4960
      %v5523 = vunpack.c.l.b16 %v4961
      %v5524 = vunpack.c.l.b16 %v4962
      %v5525 = vunpack.c.l.b16 %v4963
      %v5526 = vunpack.c.l.b16 %v4964
      %v5527 = vunpack.c.l.b16 %v4965
      %v5528 = vunpack.c.l.b16 %v4966
      %v5529 = vunpack.c.l.b16 %v4967
      %v5530 = vunpack.c.l.b16 %v4968
      %v5531 = vunpack.c.l.b16 %v4969
      %v5532 = vunpack.c.l.b16 %v4970
      %v5533 = vunpack.c.l.b16 %v4971
      %v5534 = vunpack.c.l.b16 %v4972
      %v5535 = vunpack.c.l.b16 %v4973
      %v5536 = vunpack.c.l.b16 %v4974
      %v5537 = vunpack.c.l.b16 %v4975
      %v5538 = vunpack.c.l.b16 %v4976
      %v5539 = vunpack.c.l.b16 %v4977
      %v5540 = vunpack.c.l.b16 %v4978
      %v5541 = vunpack.c.l.b16 %v4979
      %v5542 = vunpack.c.l.b16 %v4980
      %v5543 = vunpack.c.l.b16 %v4981
      %v5544 = vunpack.c.l.b16 %v4982
      %v5545 = vunpack.c.l.b16 %v4983
      %v5546 = vunpack.c.l.b16 %v4984
      %v5547 = vunpack.c.l.b16 %v4985
      %v5548 = vunpack.c.l.b16 %v4986
      %v5549 = vunpack.c.l.b16 %v4987
      %v5550 = vunpack.c.l.b16 %v4988
      %v5551 = vunpack.c.l.b16 %v4989
      %v5552 = vunpack.c.l.b16 %v4990
      %v5553 = vunpack.c.l.b16 %v4991
      %v5554 = vunpack.c.l.b16 %v4992
      %v5555 = vunpack.c.l.b16 %v4993
      %v5556 = vunpack.c.l.b16 %v4994
      %v5557 = vunpack.c.l.b16 %v4995
      %v5558 = vunpack.c.l.b16 %v4996
      %v5559 = vunpack.c.l.b16 %v4997
      %v5560 = vunpack.c.l.b16 %v4998
      %v5561 = vunpack.c.l.b16 %v4999
      %v5562 = vunpack.c.l.b16 %v5000
      %v5563 = vunpack.c.l.b16 %v5001
      %v5564 = vunpack.c.l.b16 %v5002
      %v5565 = vunpack.c.l.b16 %v5003
      %v5566 = vunpack.c.l.b16 %v5004
      %v5567 = vunpack.c.l.b16 %v5005
      %v5568 = vunpack.c.l.b16 %v5006
      %v5569 = vunpack.c.l.b16 %v5007
      %v5570 = vunpack.c.l.b16 %v5008
      %v5571 = vunpack.c.l.b16 %v5009
      %v5572 = vunpack.c.l.b16 %v5010
      %v5573 = vunpack.c.l.b16 %v5011
      %v5574 = vunpack.c.l.b16 %v5012
      %v5575 = vunpack.c.l.b16 %v5013
      %v5576 = vunpack.c.l.b16 %v5014
      %v5577 = vunpack.c.l.b16 %v5015
      %v5578 = vunpack.c.l.b16 %v5016
      %v5579 = vunpack.c.l.b16 %v5017
      %v5580 = vunpack.c.l.b16 %v5018
      %v5581 = vunpack.c.l.b16 %v5019
      %v5582 = vunpack.c.l.b16 %v5020
      %v5583 = vunpack.c.l.b16 %v5021
      %v5584 = vunpack.c.l.b16 %v5022
      %v5585 = vunpack.c.l.b16 %v5023
      %v5586 = vunpack.c.l.b16 %v5024
      %v5587 = vunpack.c.l.b16 %v5025
      %v5588 = vunpack.c.l.b16 %v5026
      %v5589 = vunpack.c.l.b16 %v5027
      %v5590 = vunpack.c.l.b16 %v5028
      %v5591 = vunpack.c.l.b16 %v5029
      %v5592 = vunpack.c.l.b16 %v5030
      %v5593 = vunpack.c.l.b16 %v5031
      %v5594 = vunpack.c.l.b16 %v5032
      %v5595 = vunpack.c.l.b16 %v5033
      %v5596 = vunpack.c.l.b16 %v5034
      %v5597 = vunpack.c.l.b16 %v5035
      %v5598 = vunpack.c.l.b16 %v5036
      %v5599 = vunpack.c.l.b16 %v5037
      %v5600 = vunpack.c.l.b16 %v5038
      %v5601 = vunpack.c.l.b16 %v5039
      %v5602 = vunpack.c.l.b16 %v5040
      %v5603 = vunpack.c.l.b16 %v5041
      %v5604 = vunpack.c.l.b16 %v5042
      %v5605 = vunpack.c.l.b16 %v5043
      %v5606 = vunpack.c.l.b16 %v5044
      %v5607 = vunpack.c.l.b16 %v5045
      %v5608 = vunpack.c.l.b16 %v5046
      %v5609 = vunpack.c.l.b16 %v5047
      %v5610 = vunpack.c.l.b16 %v5048
      %v5611 = vunpack.c.l.b16 %v5049
      %v5612 = vunpack.c.l.b16 %v5050
      %v5613 = vunpack.c.l.b16 %v5051
      %v5614 = vunpack.c.l.b16 %v5052
      %v5615 = vunpack.c.l.b16 %v5053
      %v5616 = vunpack.c.l.b16 %v5054
      %v5617 = vunpack.c.l.b16 %v5055
      %v5618 = vunpack.c.l.b16 %v5056
      %v5619 = vunpack.c.l.b16 %v5057
      %v5620 = vunpack.c.l.b16 %v5058
      %v5621 = vunpack.c.l.b16 %v5059
      %v5622 = vunpack.c.l.b16 %v5060
      %v5623 = vunpack.c.l.b16 %v5061
      %v5624 = vunpack.c.l.b16 %v5062
      %v5625 = vunpack.c.l.b16 %v5063
      %v5626 = vunpack.c.l.b16 %v5064
      %v5627 = vunpack.c.l.b16 %v5065
      %v5628 = vunpack.c.l.b16 %v5066
      %v5629 = vunpack.c.l.b16 %v5067
      %v5630 = vunpack.c.l.b16 %v5068
      %v5631 = vunpack.c.l.b16 %v5069
      %v5632 = vunpack.c.l.b16 %v5070
      %v5633 = vunpack.c.l.b16 %v5071
      %v5634 = vunpack.c.l.b16 %v5072
      %v5635 = vunpack.c.l.b16 %v5073
      %v5636 = vunpack.c.l.b16 %v5074
      %v5637 = vunpack.c.l.b16 %v5075
      %v5638 = vunpack.c.l.b16 %v5076
      %v5639 = vunpack.c.l.b16 %v5077
      %v5640 = vunpack.c.l.b16 %v5078
      %v5641 = vunpack.c.l.b16 %v5079
      %v5642 = vunpack.c.l.b16 %v5080
      %v5643 = vunpack.c.l.b16 %v5081
      %v5644 = vunpack.c.l.b16 %v5082
      %v5645 = vunpack.c.l.b16 %v5083
      %v5646 = vunpack.c.l.b16 %v5084
      %v5647 = vunpack.c.l.b16 %v5085
      %v5648 = vunpack.c.l.b16 %v5086
      %v5649 = vunpack.c.l.b16 %v5087
      %v5650 = vunpack.c.l.b16 %v5088
      %v5651 = vunpack.c.l.b16 %v5089
      %v5652 = vunpack.c.l.b16 %v5090
      %v5653 = vunpack.c.l.b16 %v5091
      %v5654 = vunpack.c.l.b16 %v5092
      %v5655 = vunpack.c.l.b16 %v5093
      %v5656 = vunpack.c.l.b16 %v5094
      %v5657 = vunpack.c.l.b16 %v5095
      %v5658 = vunpack.c.l.b16 %v5096
      %v5659 = vunpack.c.l.b16 %v5097
      %v5660 = vunpack.c.l.b16 %v5098
      %v5661 = vunpack.c.l.b16 %v5099
      %v5662 = vpack.c.b16 %v5407, %v5406
      %v5663 = vpack.c.b16 %v5409, %v5408
      %v5664 = vpack.c.b16 %v5411, %v5410
      %v5665 = vpack.c.b16 %v5413, %v5412
      %v5666 = vpack.c.b16 %v5415, %v5414
      %v5667 = vpack.c.b16 %v5417, %v5416
      %v5668 = vpack.c.b16 %v5419, %v5418
      %v5669 = vpack.c.b16 %v5421, %v5420
      %v5670 = vpack.c.b16 %v5423, %v5422
      %v5671 = vpack.c.b16 %v5425, %v5424
      %v5672 = vpack.c.b16 %v5427, %v5426
      %v5673 = vpack.c.b16 %v5429, %v5428
      %v5674 = vpack.c.b16 %v5431, %v5430
      %v5675 = vpack.c.b16 %v5433, %v5432
      %v5676 = vpack.c.b16 %v5435, %v5434
      %v5677 = vpack.c.b16 %v5437, %v5436
      %v5678 = vpack.c.b16 %v5439, %v5438
      %v5679 = vpack.c.b16 %v5441, %v5440
      %v5680 = vpack.c.b16 %v5443, %v5442
      %v5681 = vpack.c.b16 %v5445, %v5444
      %v5682 = vpack.c.b16 %v5447, %v5446
      %v5683 = vpack.c.b16 %v5449, %v5448
      %v5684 = vpack.c.b16 %v5451, %v5450
      %v5685 = vpack.c.b16 %v5453, %v5452
      %v5686 = vpack.c.b16 %v5455, %v5454
      %v5687 = vpack.c.b16 %v5457, %v5456
      %v5688 = vpack.c.b16 %v5459, %v5458
      %v5689 = vpack.c.b16 %v5461, %v5460
      %v5690 = vpack.c.b16 %v5463, %v5462
      %v5691 = vpack.c.b16 %v5465, %v5464
      %v5692 = vpack.c.b16 %v5467, %v5466
      %v5693 = vpack.c.b16 %v5469, %v5468
      %v5694 = vpack.c.b16 %v5471, %v5470
      %v5695 = vpack.c.b16 %v5473, %v5472
      %v5696 = vpack.c.b16 %v5475, %v5474
      %v5697 = vpack.c.b16 %v5477, %v5476
      %v5698 = vpack.c.b16 %v5479, %v5478
      %v5699 = vpack.c.b16 %v5481, %v5480
      %v5700 = vpack.c.b16 %v5483, %v5482
      %v5701 = vpack.c.b16 %v5485, %v5484
      %v5702 = vpack.c.b16 %v5487, %v5486
      %v5703 = vpack.c.b16 %v5489, %v5488
      %v5704 = vpack.c.b16 %v5491, %v5490
      %v5705 = vpack.c.b16 %v5493, %v5492
      %v5706 = vpack.c.b16 %v5495, %v5494
      %v5707 = vpack.c.b16 %v5497, %v5496
      %v5708 = vpack.c.b16 %v5499, %v5498
      %v5709 = vpack.c.b16 %v5501, %v5500
      %v5710 = vpack.c.b16 %v5503, %v5502
      %v5711 = vpack.c.b16 %v5505, %v5504
      %v5712 = vpack.c.b16 %v5507, %v5506
      %v5713 = vpack.c.b16 %v5509, %v5508
      %v5714 = vpack.c.b16 %v5511, %v5510
      %v5715 = vpack.c.b16 %v5513, %v5512
      %v5716 = vpack.c.b16 %v5515, %v5514
      %v5717 = vpack.c.b16 %v5517, %v5516
      %v5718 = vpack.c.b16 %v5519, %v5518
      %v5719 = vpack.c.b16 %v5521, %v5520
      %v5720 = vpack.c.b16 %v5523, %v5522
      %v5721 = vpack.c.b16 %v5525, %v5524
      %v5722 = vpack.c.b16 %v5527, %v5526
      %v5723 = vpack.c.b16 %v5529, %v5528
      %v5724 = vpack.c.b16 %v5531, %v5530
      %v5725 = vpack.c.b16 %v5533, %v5532
      %v5726 = vpack.c.b16 %v5535, %v5534
      %v5727 = vpack.c.b16 %v5537, %v5536
      %v5728 = vpack.c.b16 %v5539, %v5538
      %v5729 = vpack.c.b16 %v5541, %v5540
      %v5730 = vpack.c.b16 %v5543, %v5542
      %v5731 = vpack.c.b16 %v5545, %v5544
      %v5732 = vpack.c.b16 %v5547, %v5546
      %v5733 = vpack.c.b16 %v5549, %v5548
      %v5734 = vpack.c.b16 %v5551, %v5550
      %v5735 = vpack.c.b16 %v5553, %v5552
      %v5736 = vpack.c.b16 %v5555, %v5554
      %v5737 = vpack.c.b16 %v5557, %v5556
      %v5738 = vpack.c.b16 %v5559, %v5558
      %v5739 = vpack.c.b16 %v5561, %v5560
      %v5740 = vpack.c.b16 %v5563, %v5562
      %v5741 = vpack.c.b16 %v5565, %v5564
      %v5742 = vpack.c.b16 %v5567, %v5566
      %v5743 = vpack.c.b16 %v5569, %v5568
      %v5744 = vpack.c.b16 %v5571, %v5570
      %v5745 = vpack.c.b16 %v5573, %v5572
      %v5746 = vpack.c.b16 %v5575, %v5574
      %v5747 = vpack.c.b16 %v5577, %v5576
      %v5748 = vpack.c.b16 %v5579, %v5578
      %v5749 = vpack.c.b16 %v5581, %v5580
      %v5750 = vpack.c.b16 %v5583, %v5582
      %v5751 = vpack.c.b16 %v5585, %v5584
      %v5752 = vpack.c.b16 %v5587, %v5586
      %v5753 = vpack.c.b16 %v5589, %v5588
      %v5754 = vpack.c.b16 %v5591, %v5590
      %v5755 = vpack.c.b16 %v5593, %v5592
      %v5756 = vpack.c.b16 %v5595, %v5594
      %v5757 = vpack.c.b16 %v5597, %v5596
      %v5758 = vpack.c.b16 %v5599, %v5598
      %v5759 = vpack.c.b16 %v5601, %v5600
      %v5760 = vpack.c.b16 %v5603, %v5602
      %v5761 = vpack.c.b16 %v5605, %v5604
      %v5762 = vpack.c.b16 %v5607, %v5606
      %v5763 = vpack.c.b16 %v5609, %v5608
      %v5764 = vpack.c.b16 %v5611, %v5610
      %v5765 = vpack.c.b16 %v5613, %v5612
      %v5766 = vpack.c.b16 %v5615, %v5614
      %v5767 = vpack.c.b16 %v5617, %v5616
      %v5768 = vpack.c.b16 %v5619, %v5618
      %v5769 = vpack.c.b16 %v5621, %v5620
      %v5770 = vpack.c.b16 %v5623, %v5622
      %v5771 = vpack.c.b16 %v5625, %v5624
      %v5772 = vpack.c.b16 %v5627, %v5626
      %v5773 = vpack.c.b16 %v5629, %v5628
      %v5774 = vpack.c.b16 %v5631, %v5630
      %v5775 = vpack.c.b16 %v5633, %v5632
      %v5776 = vpack.c.b16 %v5635, %v5634
      %v5777 = vpack.c.b16 %v5637, %v5636
      %v5778 = vpack.c.b16 %v5639, %v5638
      %v5779 = vpack.c.b16 %v5641, %v5640
      %v5780 = vpack.c.b16 %v5643, %v5642
      %v5781 = vpack.c.b16 %v5645, %v5644
      %v5782 = vpack.c.b16 %v5647, %v5646
      %v5783 = vpack.c.b16 %v5649, %v5648
      %v5784 = vpack.c.b16 %v5651, %v5650
      %v5785 = vpack.c.b16 %v5653, %v5652
      %v5786 = vpack.c.b16 %v5655, %v5654
      %v5787 = vpack.c.b16 %v5657, %v5656
      %v5788 = vpack.c.b16 %v5659, %v5658
      %v5789 = vpack.c.b16 %v5661, %v5660
      %5918 = vmatprep.subr.bf16.mxu0 0
      %5919 = vmatpush1.bf16.msra.mxu0 %v5662
      %5920 = vmatprep.subr.bf16.mxu0 0
      %5921 = vmatpush1.bf16.msra.mxu0 %v5663
      %5922 = vmatprep.subr.bf16.mxu0 0
      %5923 = vmatpush1.bf16.msra.mxu0 %v5664
      %5924 = vmatprep.subr.bf16.mxu0 0
      %5925 = vmatpush1.bf16.msra.mxu0 %v5665
      %5926 = vmatprep.subr.bf16.mxu0 0
      %5927 = vmatpush1.bf16.msra.mxu0 %v5666
      %5928 = vmatprep.subr.bf16.mxu0 0
      %5929 = vmatpush1.bf16.msra.mxu0 %v5667
      %5930 = vmatprep.subr.bf16.mxu0 0
      %5931 = vmatpush1.bf16.msra.mxu0 %v5668
      %5932 = vmatprep.subr.bf16.mxu0 0
      %5933 = vmatpush1.bf16.msra.mxu0 %v5669
      %5934 = vmatprep.subr.bf16.mxu0 0
      %5935 = vmatpush1.bf16.msra.mxu0 %v5670
      %5936 = vmatprep.subr.bf16.mxu0 0
      %5937 = vmatpush1.bf16.msra.mxu0 %v5671
      %5938 = vmatprep.subr.bf16.mxu0 0
      %5939 = vmatpush1.bf16.msra.mxu0 %v5672
      %5940 = vmatprep.subr.bf16.mxu0 0
      %5941 = vmatpush1.bf16.msra.mxu0 %v5673
      %5942 = vmatprep.subr.bf16.mxu0 0
      %5943 = vmatpush1.bf16.msra.mxu0 %v5674
      %5944 = vmatprep.subr.bf16.mxu0 0
      %5945 = vmatpush1.bf16.msra.mxu0 %v5675
      %5946 = vmatprep.subr.bf16.mxu0 0
      %5947 = vmatpush1.bf16.msra.mxu0 %v5676
      %5948 = vmatprep.subr.bf16.mxu0 0
      %5949 = vmatpush1.bf16.msra.mxu0 %v5677
      %5950 = vmatprep.mubr.bf16.mxu0 %v5119
      %5951 = vmatmul.mubr.bf16.gmra.mrb[0].mxu0 %v5118
      %v5952 = vpop.f32.mrb[0].mxu0
      %v5953 = vadd.f32 %v5101, %v5952
      %v5954 = vpop.f32.mrb[0].mxu0
      %v5955 = vpop.f32.mrb[0].mxu0
      %v5956 = vpop.f32.mrb[0].mxu0
      %5957 = vdwg.mxu0
      %5958 = vmatprep.subr.bf16.mxu0 0
      %5959 = vmatpush1.bf16.msra.mxu0 %v5678
      %5960 = vmatprep.subr.bf16.mxu0 0
      %5961 = vmatpush1.bf16.msra.mxu0 %v5679
      %5962 = vmatprep.subr.bf16.mxu0 0
      %5963 = vmatpush1.bf16.msra.mxu0 %v5680
      %5964 = vmatprep.subr.bf16.mxu0 0
      %5965 = vmatpush1.bf16.msra.mxu0 %v5681
      %5966 = vmatprep.subr.bf16.mxu0 0
      %5967 = vmatpush1.bf16.msra.mxu0 %v5682
      %5968 = vmatprep.subr.bf16.mxu0 0
      %5969 = vmatpush1.bf16.msra.mxu0 %v5683
      %5970 = vmatprep.subr.bf16.mxu0 0
      %5971 = vmatpush1.bf16.msra.mxu0 %v5684
      %5972 = vmatprep.subr.bf16.mxu0 0
      %5973 = vmatpush1.bf16.msra.mxu0 %v5685
      %5974 = vmatprep.subr.bf16.mxu0 0
      %5975 = vmatpush1.bf16.msra.mxu0 %v5686
      %5976 = vmatprep.subr.bf16.mxu0 0
      %5977 = vmatpush1.bf16.msra.mxu0 %v5687
      %5978 = vmatprep.subr.bf16.mxu0 0
      %5979 = vmatpush1.bf16.msra.mxu0 %v5688
      %5980 = vmatprep.subr.bf16.mxu0 0
      %5981 = vmatpush1.bf16.msra.mxu0 %v5689
      %5982 = vmatprep.subr.bf16.mxu0 0
      %5983 = vmatpush1.bf16.msra.mxu0 %v5690
      %5984 = vmatprep.subr.bf16.mxu0 0
      %5985 = vmatpush1.bf16.msra.mxu0 %v5691
      %5986 = vmatprep.subr.bf16.mxu0 0
      %5987 = vmatpush1.bf16.msra.mxu0 %v5692
      %5988 = vmatprep.subr.bf16.mxu0 0
      %5989 = vmatpush1.bf16.msra.mxu0 %v5693
      %5990 = vmatprep.mubr.bf16.mxu0 %v5121
      %5991 = vmatmul.mubr.bf16.gmra.mrb[0].mxu0 %v5120
      %v5992 = vpop.f32.mrb[0].mxu0
      %v5993 = vadd.f32 %v5953, %v5992
      %v5994 = vpop.f32.mrb[0].mxu0
      %v5995 = vpop.f32.mrb[0].mxu0
      %v5996 = vpop.f32.mrb[0].mxu0
      %5997 = vdwg.mxu0
      %5998 = vmatprep.subr.bf16.mxu0 0
      %5999 = vmatpush1.bf16.msra.mxu0 %v5694
      %6000 = vmatprep.subr.bf16.mxu0 0
      %6001 = vmatpush1.bf16.msra.mxu0 %v5695
      %6002 = vmatprep.subr.bf16.mxu0 0
      %6003 = vmatpush1.bf16.msra.mxu0 %v5696
      %6004 = vmatprep.subr.bf16.mxu0 0
      %6005 = vmatpush1.bf16.msra.mxu0 %v5697
      %6006 = vmatprep.subr.bf16.mxu0 0
      %6007 = vmatpush1.bf16.msra.mxu0 %v5698
      %6008 = vmatprep.subr.bf16.mxu0 0
      %6009 = vmatpush1.bf16.msra.mxu0 %v5699
      %6010 = vmatprep.subr.bf16.mxu0 0
      %6011 = vmatpush1.bf16.msra.mxu0 %v5700
      %6012 = vmatprep.subr.bf16.mxu0 0
      %6013 = vmatpush1.bf16.msra.mxu0 %v5701
      %6014 = vmatprep.subr.bf16.mxu0 0
      %6015 = vmatpush1.bf16.msra.mxu0 %v5702
      %6016 = vmatprep.subr.bf16.mxu0 0
      %6017 = vmatpush1.bf16.msra.mxu0 %v5703
      %6018 = vmatprep.subr.bf16.mxu0 0
      %6019 = vmatpush1.bf16.msra.mxu0 %v5704
      %6020 = vmatprep.subr.bf16.mxu0 0
      %6021 = vmatpush1.bf16.msra.mxu0 %v5705
      %6022 = vmatprep.subr.bf16.mxu0 0
      %6023 = vmatpush1.bf16.msra.mxu0 %v5706
      %6024 = vmatprep.subr.bf16.mxu0 0
      %6025 = vmatpush1.bf16.msra.mxu0 %v5707
      %6026 = vmatprep.subr.bf16.mxu0 0
      %6027 = vmatpush1.bf16.msra.mxu0 %v5708
      %6028 = vmatprep.subr.bf16.mxu0 0
      %6029 = vmatpush1.bf16.msra.mxu0 %v5709
      %6030 = vmatprep.mubr.bf16.mxu0 %v5123
      %6031 = vmatmul.mubr.bf16.gmra.mrb[0].mxu0 %v5122
      %v6032 = vpop.f32.mrb[0].mxu0
      %v6033 = vadd.f32 %v5993, %v6032
      %v6034 = vpop.f32.mrb[0].mxu0
      %v6035 = vpop.f32.mrb[0].mxu0
      %v6036 = vpop.f32.mrb[0].mxu0
      %6037 = vdwg.mxu0
      %6038 = vmatprep.subr.bf16.mxu0 0
      %6039 = vmatpush1.bf16.msra.mxu0 %v5710
      %6040 = vmatprep.subr.bf16.mxu0 0
      %6041 = vmatpush1.bf16.msra.mxu0 %v5711
      %6042 = vmatprep.subr.bf16.mxu0 0
      %6043 = vmatpush1.bf16.msra.mxu0 %v5712
      %6044 = vmatprep.subr.bf16.mxu0 0
      %6045 = vmatpush1.bf16.msra.mxu0 %v5713
      %6046 = vmatprep.subr.bf16.mxu0 0
      %6047 = vmatpush1.bf16.msra.mxu0 %v5714
      %6048 = vmatprep.subr.bf16.mxu0 0
      %6049 = vmatpush1.bf16.msra.mxu0 %v5715
      %6050 = vmatprep.subr.bf16.mxu0 0
      %6051 = vmatpush1.bf16.msra.mxu0 %v5716
      %6052 = vmatprep.subr.bf16.mxu0 0
      %6053 = vmatpush1.bf16.msra.mxu0 %v5717
      %6054 = vmatprep.subr.bf16.mxu0 0
      %6055 = vmatpush1.bf16.msra.mxu0 %v5718
      %6056 = vmatprep.subr.bf16.mxu0 0
      %6057 = vmatpush1.bf16.msra.mxu0 %v5719
      %6058 = vmatprep.subr.bf16.mxu0 0
      %6059 = vmatpush1.bf16.msra.mxu0 %v5720
      %6060 = vmatprep.subr.bf16.mxu0 0
      %6061 = vmatpush1.bf16.msra.mxu0 %v5721
      %6062 = vmatprep.subr.bf16.mxu0 0
      %6063 = vmatpush1.bf16.msra.mxu0 %v5722
      %6064 = vmatprep.subr.bf16.mxu0 0
      %6065 = vmatpush1.bf16.msra.mxu0 %v5723
      %6066 = vmatprep.subr.bf16.mxu0 0
      %6067 = vmatpush1.bf16.msra.mxu0 %v5724
      %6068 = vmatprep.subr.bf16.mxu0 0
      %6069 = vmatpush1.bf16.msra.mxu0 %v5725
      %6070 = vmatprep.mubr.bf16.mxu0 %v5125
      %6071 = vmatmul.mubr.bf16.gmra.mrb[0].mxu0 %v5124
      %v6072 = vpop.f32.mrb[0].mxu0
      %v6073 = vadd.f32 %v6033, %v6072
      %v6074 = vpop.f32.mrb[0].mxu0
      %v6075 = vpop.f32.mrb[0].mxu0
      %v6076 = vpop.f32.mrb[0].mxu0
      %6077 = vdwg.mxu0
      %6078 = vmatprep.subr.bf16.mxu0 0
      %6079 = vmatpush1.bf16.msra.mxu0 %v5726
      %6080 = vmatprep.subr.bf16.mxu0 0
      %6081 = vmatpush1.bf16.msra.mxu0 %v5727
      %6082 = vmatprep.subr.bf16.mxu0 0
      %6083 = vmatpush1.bf16.msra.mxu0 %v5728
      %6084 = vmatprep.subr.bf16.mxu0 0
      %6085 = vmatpush1.bf16.msra.mxu0 %v5729
      %6086 = vmatprep.subr.bf16.mxu0 0
      %6087 = vmatpush1.bf16.msra.mxu0 %v5730
      %6088 = vmatprep.subr.bf16.mxu0 0
      %6089 = vmatpush1.bf16.msra.mxu0 %v5731
      %6090 = vmatprep.subr.bf16.mxu0 0
      %6091 = vmatpush1.bf16.msra.mxu0 %v5732
      %6092 = vmatprep.subr.bf16.mxu0 0
      %6093 = vmatpush1.bf16.msra.mxu0 %v5733
      %6094 = vmatprep.subr.bf16.mxu0 0
      %6095 = vmatpush1.bf16.msra.mxu0 %v5734
      %6096 = vmatprep.subr.bf16.mxu0 0
      %6097 = vmatpush1.bf16.msra.mxu0 %v5735
      %6098 = vmatprep.subr.bf16.mxu0 0
      %6099 = vmatpush1.bf16.msra.mxu0 %v5736
      %6100 = vmatprep.subr.bf16.mxu0 0
      %6101 = vmatpush1.bf16.msra.mxu0 %v5737
      %6102 = vmatprep.subr.bf16.mxu0 0
      %6103 = vmatpush1.bf16.msra.mxu0 %v5738
      %6104 = vmatprep.subr.bf16.mxu0 0
      %6105 = vmatpush1.bf16.msra.mxu0 %v5739
      %6106 = vmatprep.subr.bf16.mxu0 0
      %6107 = vmatpush1.bf16.msra.mxu0 %v5740
      %6108 = vmatprep.subr.bf16.mxu0 0
      %6109 = vmatpush1.bf16.msra.mxu0 %v5741
      %6110 = vmatprep.mubr.bf16.mxu0 %v5127
      %6111 = vmatmul.mubr.bf16.gmra.mrb[0].mxu0 %v5126
      %v6112 = vpop.f32.mrb[0].mxu0
      %v6113 = vadd.f32 %v6073, %v6112
      %v6114 = vpop.f32.mrb[0].mxu0
      %v6115 = vpop.f32.mrb[0].mxu0
      %v6116 = vpop.f32.mrb[0].mxu0
      %6117 = vdwg.mxu0
      %6118 = vmatprep.subr.bf16.mxu0 0
      %6119 = vmatpush1.bf16.msra.mxu0 %v5742
      %6120 = vmatprep.subr.bf16.mxu0 0
      %6121 = vmatpush1.bf16.msra.mxu0 %v5743
      %6122 = vmatprep.subr.bf16.mxu0 0
      %6123 = vmatpush1.bf16.msra.mxu0 %v5744
      %6124 = vmatprep.subr.bf16.mxu0 0
      %6125 = vmatpush1.bf16.msra.mxu0 %v5745
      %6126 = vmatprep.subr.bf16.mxu0 0
      %6127 = vmatpush1.bf16.msra.mxu0 %v5746
      %6128 = vmatprep.subr.bf16.mxu0 0
      %6129 = vmatpush1.bf16.msra.mxu0 %v5747
      %6130 = vmatprep.subr.bf16.mxu0 0
      %6131 = vmatpush1.bf16.msra.mxu0 %v5748
      %6132 = vmatprep.subr.bf16.mxu0 0
      %6133 = vmatpush1.bf16.msra.mxu0 %v5749
      %6134 = vmatprep.subr.bf16.mxu0 0
      %6135 = vmatpush1.bf16.msra.mxu0 %v5750
      %6136 = vmatprep.subr.bf16.mxu0 0
      %6137 = vmatpush1.bf16.msra.mxu0 %v5751
      %6138 = vmatprep.subr.bf16.mxu0 0
      %6139 = vmatpush1.bf16.msra.mxu0 %v5752
      %6140 = vmatprep.subr.bf16.mxu0 0
      %6141 = vmatpush1.bf16.msra.mxu0 %v5753
      %6142 = vmatprep.subr.bf16.mxu0 0
      %6143 = vmatpush1.bf16.msra.mxu0 %v5754
      %6144 = vmatprep.subr.bf16.mxu0 0
      %6145 = vmatpush1.bf16.msra.mxu0 %v5755
      %6146 = vmatprep.subr.bf16.mxu0 0
      %6147 = vmatpush1.bf16.msra.mxu0 %v5756
      %6148 = vmatprep.subr.bf16.mxu0 0
      %6149 = vmatpush1.bf16.msra.mxu0 %v5757
      %6150 = vmatprep.mubr.bf16.mxu0 %v5129
      %6151 = vmatmul.mubr.bf16.gmra.mrb[0].mxu0 %v5128
      %v6152 = vpop.f32.mrb[0].mxu0
      %v6153 = vadd.f32 %v6113, %v6152
      %v6154 = vpop.f32.mrb[0].mxu0
      %v6155 = vpop.f32.mrb[0].mxu0
      %v6156 = vpop.f32.mrb[0].mxu0
      %6157 = vdwg.mxu0
      %6158 = vmatprep.subr.bf16.mxu0 0
      %6159 = vmatpush1.bf16.msra.mxu0 %v5758
      %6160 = vmatprep.subr.bf16.mxu0 0
      %6161 = vmatpush1.bf16.msra.mxu0 %v5759
      %6162 = vmatprep.subr.bf16.mxu0 0
      %6163 = vmatpush1.bf16.msra.mxu0 %v5760
      %6164 = vmatprep.subr.bf16.mxu0 0
      %6165 = vmatpush1.bf16.msra.mxu0 %v5761
      %6166 = vmatprep.subr.bf16.mxu0 0
      %6167 = vmatpush1.bf16.msra.mxu0 %v5762
      %6168 = vmatprep.subr.bf16.mxu0 0
      %6169 = vmatpush1.bf16.msra.mxu0 %v5763
      %6170 = vmatprep.subr.bf16.mxu0 0
      %6171 = vmatpush1.bf16.msra.mxu0 %v5764
      %6172 = vmatprep.subr.bf16.mxu0 0
      %6173 = vmatpush1.bf16.msra.mxu0 %v5765
      %6174 = vmatprep.subr.bf16.mxu0 0
      %6175 = vmatpush1.bf16.msra.mxu0 %v5766
      %6176 = vmatprep.subr.bf16.mxu0 0
      %6177 = vmatpush1.bf16.msra.mxu0 %v5767
      %6178 = vmatprep.subr.bf16.mxu0 0
      %6179 = vmatpush1.bf16.msra.mxu0 %v5768
      %6180 = vmatprep.subr.bf16.mxu0 0
      %6181 = vmatpush1.bf16.msra.mxu0 %v5769
      %6182 = vmatprep.subr.bf16.mxu0 0
      %6183 = vmatpush1.bf16.msra.mxu0 %v5770
      %6184 = vmatprep.subr.bf16.mxu0 0
      %6185 = vmatpush1.bf16.msra.mxu0 %v5771
      %6186 = vmatprep.subr.bf16.mxu0 0
      %6187 = vmatpush1.bf16.msra.mxu0 %v5772
      %6188 = vmatprep.subr.bf16.mxu0 0
      %6189 = vmatpush1.bf16.msra.mxu0 %v5773
      %6190 = vmatprep.mubr.bf16.mxu0 %v5131
      %6191 = vmatmul.mubr.bf16.gmra.mrb[0].mxu0 %v5130
      %v6192 = vpop.f32.mrb[0].mxu0
      %v6193 = vadd.f32 %v6153, %v6192
      %v6194 = vpop.f32.mrb[0].mxu0
      %v6195 = vpop.f32.mrb[0].mxu0
      %v6196 = vpop.f32.mrb[0].mxu0
      %6197 = vdwg.mxu0
      %6198 = vmatprep.subr.bf16.mxu0 0
      %6199 = vmatpush1.bf16.msra.mxu0 %v5774
      %6200 = vmatprep.subr.bf16.mxu0 0
      %6201 = vmatpush1.bf16.msra.mxu0 %v5775
      %6202 = vmatprep.subr.bf16.mxu0 0
      %6203 = vmatpush1.bf16.msra.mxu0 %v5776
      %6204 = vmatprep.subr.bf16.mxu0 0
      %6205 = vmatpush1.bf16.msra.mxu0 %v5777
      %6206 = vmatprep.subr.bf16.mxu0 0
      %6207 = vmatpush1.bf16.msra.mxu0 %v5778
      %6208 = vmatprep.subr.bf16.mxu0 0
      %6209 = vmatpush1.bf16.msra.mxu0 %v5779
      %6210 = vmatprep.subr.bf16.mxu0 0
      %6211 = vmatpush1.bf16.msra.mxu0 %v5780
      %6212 = vmatprep.subr.bf16.mxu0 0
      %6213 = vmatpush1.bf16.msra.mxu0 %v5781
      %6214 = vmatprep.subr.bf16.mxu0 0
      %6215 = vmatpush1.bf16.msra.mxu0 %v5782
      %6216 = vmatprep.subr.bf16.mxu0 0
      %6217 = vmatpush1.bf16.msra.mxu0 %v5783
      %6218 = vmatprep.subr.bf16.mxu0 0
      %6219 = vmatpush1.bf16.msra.mxu0 %v5784
      %6220 = vmatprep.subr.bf16.mxu0 0
      %6221 = vmatpush1.bf16.msra.mxu0 %v5785
      %6222 = vmatprep.subr.bf16.mxu0 0
      %6223 = vmatpush1.bf16.msra.mxu0 %v5786
      %6224 = vmatprep.subr.bf16.mxu0 0
      %6225 = vmatpush1.bf16.msra.mxu0 %v5787
      %6226 = vmatprep.subr.bf16.mxu0 0
      %6227 = vmatpush1.bf16.msra.mxu0 %v5788
      %6228 = vmatprep.subr.bf16.mxu0 0
      %6229 = vmatpush1.bf16.msra.mxu0 %v5789
      %6230 = vmatprep.mubr.bf16.mxu0 %v5133
      %6231 = vmatmul.mubr.bf16.gmra.mrb[0].mxu0 %v5132
      %v6232 = vpop.f32.mrb[0].mxu0
      %v6233 = vadd.f32 %v6193, %v6232
      %v6234 = vpop.f32.mrb[0].mxu0
      %v6235 = vpop.f32.mrb[0].mxu0
      %v6236 = vpop.f32.mrb[0].mxu0
      %6237 = vdwg.mxu0
      %6238 = vst [vmem:[%s195 + $0x2] sm:$0x1] %v6233
      %s6239 = scalar_lea.vmem %s2, 3072
      %v6240 = vld [vmem:[%s6239] sm:$0xf]
      %v6241 = vld [vmem:[%s6239 + $0x4] sm:$0xf]
      %v6242 = vld [vmem:[%s6239 + $0x8] sm:$0xf]
      %v6243 = vld [vmem:[%s6239 + $0xc] sm:$0xf]
      %v6244 = vld [vmem:[%s6239 + $0x10] sm:$0xf]
      %v6245 = vld [vmem:[%s6239 + $0x14] sm:$0xf]
      %v6246 = vld [vmem:[%s6239 + $0x18] sm:$0xf]
      %v6247 = vld [vmem:[%s6239 + $0x1c] sm:$0xf]
      %v6248 = vld [vmem:[%s6239 + $0x20] sm:$0xf]
      %v6249 = vld [vmem:[%s6239 + $0x24] sm:$0xf]
      %v6250 = vld [vmem:[%s6239 + $0x28] sm:$0xf]
      %v6251 = vld [vmem:[%s6239 + $0x2c] sm:$0xf]
      %v6252 = vld [vmem:[%s6239 + $0x30] sm:$0xf]
      %v6253 = vld [vmem:[%s6239 + $0x34] sm:$0xf]
      %v6254 = vld [vmem:[%s6239 + $0x38] sm:$0xf]
      %v6255 = vld [vmem:[%s6239 + $0x3c] sm:$0xf]
      %v6256 = vld [vmem:[%s6239 + $0x40] sm:$0xf]
      %v6257 = vld [vmem:[%s6239 + $0x44] sm:$0xf]
      %v6258 = vld [vmem:[%s6239 + $0x48] sm:$0xf]
      %v6259 = vld [vmem:[%s6239 + $0x4c] sm:$0xf]
      %v6260 = vld [vmem:[%s6239 + $0x50] sm:$0xf]
      %v6261 = vld [vmem:[%s6239 + $0x54] sm:$0xf]
      %v6262 = vld [vmem:[%s6239 + $0x58] sm:$0xf]
      %v6263 = vld [vmem:[%s6239 + $0x5c] sm:$0xf]
      %v6264 = vld [vmem:[%s6239 + $0x60] sm:$0xf]
      %v6265 = vld [vmem:[%s6239 + $0x64] sm:$0xf]
      %v6266 = vld [vmem:[%s6239 + $0x68] sm:$0xf]
      %v6267 = vld [vmem:[%s6239 + $0x6c] sm:$0xf]
      %v6268 = vld [vmem:[%s6239 + $0x70] sm:$0xf]
      %v6269 = vld [vmem:[%s6239 + $0x74] sm:$0xf]
      %v6270 = vld [vmem:[%s6239 + $0x78] sm:$0xf]
      %v6271 = vld [vmem:[%s6239 + $0x7c] sm:$0xf]
      %v6272 = vld [vmem:[%s6239 + $0x80] sm:$0xf]
      %v6273 = vld [vmem:[%s6239 + $0x84] sm:$0xf]
      %v6274 = vld [vmem:[%s6239 + $0x88] sm:$0xf]
      %v6275 = vld [vmem:[%s6239 + $0x8c] sm:$0xf]
      %v6276 = vld [vmem:[%s6239 + $0x90] sm:$0xf]
      %v6277 = vld [vmem:[%s6239 + $0x94] sm:$0xf]
      %v6278 = vld [vmem:[%s6239 + $0x98] sm:$0xf]
      %v6279 = vld [vmem:[%s6239 + $0x9c] sm:$0xf]
      %v6280 = vld [vmem:[%s6239 + $0xa0] sm:$0xf]
      %v6281 = vld [vmem:[%s6239 + $0xa4] sm:$0xf]
      %v6282 = vld [vmem:[%s6239 + $0xa8] sm:$0xf]
      %v6283 = vld [vmem:[%s6239 + $0xac] sm:$0xf]
      %v6284 = vld [vmem:[%s6239 + $0xb0] sm:$0xf]
      %v6285 = vld [vmem:[%s6239 + $0xb4] sm:$0xf]
      %v6286 = vld [vmem:[%s6239 + $0xb8] sm:$0xf]
      %v6287 = vld [vmem:[%s6239 + $0xbc] sm:$0xf]
      %v6288 = vld [vmem:[%s6239 + $0xc0] sm:$0xf]
      %v6289 = vld [vmem:[%s6239 + $0xc4] sm:$0xf]
      %v6290 = vld [vmem:[%s6239 + $0xc8] sm:$0xf]
      %v6291 = vld [vmem:[%s6239 + $0xcc] sm:$0xf]
      %v6292 = vld [vmem:[%s6239 + $0xd0] sm:$0xf]
      %v6293 = vld [vmem:[%s6239 + $0xd4] sm:$0xf]
      %v6294 = vld [vmem:[%s6239 + $0xd8] sm:$0xf]
      %v6295 = vld [vmem:[%s6239 + $0xdc] sm:$0xf]
      %v6296 = vld [vmem:[%s6239 + $0xe0] sm:$0xf]
      %v6297 = vld [vmem:[%s6239 + $0xe4] sm:$0xf]
      %v6298 = vld [vmem:[%s6239 + $0xe8] sm:$0xf]
      %v6299 = vld [vmem:[%s6239 + $0xec] sm:$0xf]
      %v6300 = vld [vmem:[%s6239 + $0xf0] sm:$0xf]
      %v6301 = vld [vmem:[%s6239 + $0xf4] sm:$0xf]
      %v6302 = vld [vmem:[%s6239 + $0xf8] sm:$0xf]
      %v6303 = vld [vmem:[%s6239 + $0xfc] sm:$0xf]
      %v6304 = vld [vmem:[%s6239 + $0x100] sm:$0xf]
      %v6305 = vld [vmem:[%s6239 + $0x104] sm:$0xf]
      %v6306 = vld [vmem:[%s6239 + $0x108] sm:$0xf]
      %v6307 = vld [vmem:[%s6239 + $0x10c] sm:$0xf]
      %v6308 = vld [vmem:[%s6239 + $0x110] sm:$0xf]
      %v6309 = vld [vmem:[%s6239 + $0x114] sm:$0xf]
      %v6310 = vld [vmem:[%s6239 + $0x118] sm:$0xf]
      %v6311 = vld [vmem:[%s6239 + $0x11c] sm:$0xf]
      %v6312 = vld [vmem:[%s6239 + $0x120] sm:$0xf]
      %v6313 = vld [vmem:[%s6239 + $0x124] sm:$0xf]
      %v6314 = vld [vmem:[%s6239 + $0x128] sm:$0xf]
      %v6315 = vld [vmem:[%s6239 + $0x12c] sm:$0xf]
      %v6316 = vld [vmem:[%s6239 + $0x130] sm:$0xf]
      %v6317 = vld [vmem:[%s6239 + $0x134] sm:$0xf]
      %v6318 = vld [vmem:[%s6239 + $0x138] sm:$0xf]
      %v6319 = vld [vmem:[%s6239 + $0x13c] sm:$0xf]
      %v6320 = vld [vmem:[%s6239 + $0x140] sm:$0xf]
      %v6321 = vld [vmem:[%s6239 + $0x144] sm:$0xf]
      %v6322 = vld [vmem:[%s6239 + $0x148] sm:$0xf]
      %v6323 = vld [vmem:[%s6239 + $0x14c] sm:$0xf]
      %v6324 = vld [vmem:[%s6239 + $0x150] sm:$0xf]
      %v6325 = vld [vmem:[%s6239 + $0x154] sm:$0xf]
      %v6326 = vld [vmem:[%s6239 + $0x158] sm:$0xf]
      %v6327 = vld [vmem:[%s6239 + $0x15c] sm:$0xf]
      %v6328 = vld [vmem:[%s6239 + $0x160] sm:$0xf]
      %v6329 = vld [vmem:[%s6239 + $0x164] sm:$0xf]
      %v6330 = vld [vmem:[%s6239 + $0x168] sm:$0xf]
      %v6331 = vld [vmem:[%s6239 + $0x16c] sm:$0xf]
      %v6332 = vld [vmem:[%s6239 + $0x170] sm:$0xf]
      %v6333 = vld [vmem:[%s6239 + $0x174] sm:$0xf]
      %v6334 = vld [vmem:[%s6239 + $0x178] sm:$0xf]
      %v6335 = vld [vmem:[%s6239 + $0x17c] sm:$0xf]
      %v6336 = vld [vmem:[%s6239 + $0x180] sm:$0xf]
      %v6337 = vld [vmem:[%s6239 + $0x184] sm:$0xf]
      %v6338 = vld [vmem:[%s6239 + $0x188] sm:$0xf]
      %v6339 = vld [vmem:[%s6239 + $0x18c] sm:$0xf]
      %v6340 = vld [vmem:[%s6239 + $0x190] sm:$0xf]
      %v6341 = vld [vmem:[%s6239 + $0x194] sm:$0xf]
      %v6342 = vld [vmem:[%s6239 + $0x198] sm:$0xf]
      %v6343 = vld [vmem:[%s6239 + $0x19c] sm:$0xf]
      %v6344 = vld [vmem:[%s6239 + $0x1a0] sm:$0xf]
      %v6345 = vld [vmem:[%s6239 + $0x1a4] sm:$0xf]
      %v6346 = vld [vmem:[%s6239 + $0x1a8] sm:$0xf]
      %v6347 = vld [vmem:[%s6239 + $0x1ac] sm:$0xf]
      %v6348 = vld [vmem:[%s6239 + $0x1b0] sm:$0xf]
      %v6349 = vld [vmem:[%s6239 + $0x1b4] sm:$0xf]
      %v6350 = vld [vmem:[%s6239 + $0x1b8] sm:$0xf]
      %v6351 = vld [vmem:[%s6239 + $0x1bc] sm:$0xf]
      %v6352 = vld [vmem:[%s6239 + $0x1c0] sm:$0xf]
      %v6353 = vld [vmem:[%s6239 + $0x1c4] sm:$0xf]
      %v6354 = vld [vmem:[%s6239 + $0x1c8] sm:$0xf]
      %v6355 = vld [vmem:[%s6239 + $0x1cc] sm:$0xf]
      %v6356 = vld [vmem:[%s6239 + $0x1d0] sm:$0xf]
      %v6357 = vld [vmem:[%s6239 + $0x1d4] sm:$0xf]
      %v6358 = vld [vmem:[%s6239 + $0x1d8] sm:$0xf]
      %v6359 = vld [vmem:[%s6239 + $0x1dc] sm:$0xf]
      %v6360 = vld [vmem:[%s6239 + $0x1e0] sm:$0xf]
      %v6361 = vld [vmem:[%s6239 + $0x1e4] sm:$0xf]
      %v6362 = vld [vmem:[%s6239 + $0x1e8] sm:$0xf]
      %v6363 = vld [vmem:[%s6239 + $0x1ec] sm:$0xf]
      %v6364 = vld [vmem:[%s6239 + $0x1f0] sm:$0xf]
      %v6365 = vld [vmem:[%s6239 + $0x1f4] sm:$0xf]
      %v6366 = vld [vmem:[%s6239 + $0x1f8] sm:$0xf]
      %v6367 = vld [vmem:[%s6239 + $0x1fc] sm:$0xf]
      %v6368 = vld [vmem:[%s6239 + $0x200] sm:$0xf]
      %v6369 = vld [vmem:[%s6239 + $0x204] sm:$0xf]
      %v6370 = vld [vmem:[%s6239 + $0x208] sm:$0xf]
      %v6371 = vld [vmem:[%s6239 + $0x20c] sm:$0xf]
      %v6372 = vld [vmem:[%s6239 + $0x210] sm:$0xf]
      %v6373 = vld [vmem:[%s6239 + $0x214] sm:$0xf]
      %v6374 = vld [vmem:[%s6239 + $0x218] sm:$0xf]
      %v6375 = vld [vmem:[%s6239 + $0x21c] sm:$0xf]
      %v6376 = vld [vmem:[%s6239 + $0x220] sm:$0xf]
      %v6377 = vld [vmem:[%s6239 + $0x224] sm:$0xf]
      %v6378 = vld [vmem:[%s6239 + $0x228] sm:$0xf]
      %v6379 = vld [vmem:[%s6239 + $0x22c] sm:$0xf]
      %v6380 = vld [vmem:[%s6239 + $0x230] sm:$0xf]
      %v6381 = vld [vmem:[%s6239 + $0x234] sm:$0xf]
      %v6382 = vld [vmem:[%s6239 + $0x238] sm:$0xf]
      %v6383 = vld [vmem:[%s6239 + $0x23c] sm:$0xf]
      %v6384 = vld [vmem:[%s6239 + $0x240] sm:$0xf]
      %v6385 = vld [vmem:[%s6239 + $0x244] sm:$0xf]
      %v6386 = vld [vmem:[%s6239 + $0x248] sm:$0xf]
      %v6387 = vld [vmem:[%s6239 + $0x24c] sm:$0xf]
      %v6388 = vld [vmem:[%s6239 + $0x250] sm:$0xf]
      %v6389 = vld [vmem:[%s6239 + $0x254] sm:$0xf]
      %v6390 = vld [vmem:[%s6239 + $0x258] sm:$0xf]
      %v6391 = vld [vmem:[%s6239 + $0x25c] sm:$0xf]
      %v6392 = vld [vmem:[%s6239 + $0x260] sm:$0xf]
      %v6393 = vld [vmem:[%s6239 + $0x264] sm:$0xf]
      %v6394 = vld [vmem:[%s6239 + $0x268] sm:$0xf]
      %v6395 = vld [vmem:[%s6239 + $0x26c] sm:$0xf]
      %v6396 = vld [vmem:[%s6239 + $0x270] sm:$0xf]
      %v6397 = vld [vmem:[%s6239 + $0x274] sm:$0xf]
      %v6398 = vld [vmem:[%s6239 + $0x278] sm:$0xf]
      %v6399 = vld [vmem:[%s6239 + $0x27c] sm:$0xf]
      %v6400 = vld [vmem:[%s6239 + $0x280] sm:$0xf]
      %v6401 = vld [vmem:[%s6239 + $0x284] sm:$0xf]
      %v6402 = vld [vmem:[%s6239 + $0x288] sm:$0xf]
      %v6403 = vld [vmem:[%s6239 + $0x28c] sm:$0xf]
      %v6404 = vld [vmem:[%s6239 + $0x290] sm:$0xf]
      %v6405 = vld [vmem:[%s6239 + $0x294] sm:$0xf]
      %v6406 = vld [vmem:[%s6239 + $0x298] sm:$0xf]
      %v6407 = vld [vmem:[%s6239 + $0x29c] sm:$0xf]
      %v6408 = vld [vmem:[%s6239 + $0x2a0] sm:$0xf]
      %v6409 = vld [vmem:[%s6239 + $0x2a4] sm:$0xf]
      %v6410 = vld [vmem:[%s6239 + $0x2a8] sm:$0xf]
      %v6411 = vld [vmem:[%s6239 + $0x2ac] sm:$0xf]
      %v6412 = vld [vmem:[%s6239 + $0x2b0] sm:$0xf]
      %v6413 = vld [vmem:[%s6239 + $0x2b4] sm:$0xf]
      %v6414 = vld [vmem:[%s6239 + $0x2b8] sm:$0xf]
      %v6415 = vld [vmem:[%s6239 + $0x2bc] sm:$0xf]
      %v6416 = vld [vmem:[%s6239 + $0x2c0] sm:$0xf]
      %v6417 = vld [vmem:[%s6239 + $0x2c4] sm:$0xf]
      %v6418 = vld [vmem:[%s6239 + $0x2c8] sm:$0xf]
      %v6419 = vld [vmem:[%s6239 + $0x2cc] sm:$0xf]
      %v6420 = vld [vmem:[%s6239 + $0x2d0] sm:$0xf]
      %v6421 = vld [vmem:[%s6239 + $0x2d4] sm:$0xf]
      %v6422 = vld [vmem:[%s6239 + $0x2d8] sm:$0xf]
      %v6423 = vld [vmem:[%s6239 + $0x2dc] sm:$0xf]
      %v6424 = vld [vmem:[%s6239 + $0x2e0] sm:$0xf]
      %v6425 = vld [vmem:[%s6239 + $0x2e4] sm:$0xf]
      %v6426 = vld [vmem:[%s6239 + $0x2e8] sm:$0xf]
      %v6427 = vld [vmem:[%s6239 + $0x2ec] sm:$0xf]
      %v6428 = vld [vmem:[%s6239 + $0x2f0] sm:$0xf]
      %v6429 = vld [vmem:[%s6239 + $0x2f4] sm:$0xf]
      %v6430 = vld [vmem:[%s6239 + $0x2f8] sm:$0xf]
      %v6431 = vld [vmem:[%s6239 + $0x2fc] sm:$0xf]
      %v6432 = vld [vmem:[%s6239 + $0x300] sm:$0xf]
      %v6433 = vld [vmem:[%s6239 + $0x304] sm:$0xf]
      %v6434 = vld [vmem:[%s6239 + $0x308] sm:$0xf]
      %v6435 = vld [vmem:[%s6239 + $0x30c] sm:$0xf]
      %v6436 = vld [vmem:[%s6239 + $0x310] sm:$0xf]
      %v6437 = vld [vmem:[%s6239 + $0x314] sm:$0xf]
      %v6438 = vld [vmem:[%s6239 + $0x318] sm:$0xf]
      %v6439 = vld [vmem:[%s6239 + $0x31c] sm:$0xf]
      %v6440 = vld [vmem:[%s6239 + $0x320] sm:$0xf]
      %v6441 = vld [vmem:[%s6239 + $0x324] sm:$0xf]
      %v6442 = vld [vmem:[%s6239 + $0x328] sm:$0xf]
      %v6443 = vld [vmem:[%s6239 + $0x32c] sm:$0xf]
      %v6444 = vld [vmem:[%s6239 + $0x330] sm:$0xf]
      %v6445 = vld [vmem:[%s6239 + $0x334] sm:$0xf]
      %v6446 = vld [vmem:[%s6239 + $0x338] sm:$0xf]
      %v6447 = vld [vmem:[%s6239 + $0x33c] sm:$0xf]
      %v6448 = vld [vmem:[%s6239 + $0x340] sm:$0xf]
      %v6449 = vld [vmem:[%s6239 + $0x344] sm:$0xf]
      %v6450 = vld [vmem:[%s6239 + $0x348] sm:$0xf]
      %v6451 = vld [vmem:[%s6239 + $0x34c] sm:$0xf]
      %v6452 = vld [vmem:[%s6239 + $0x350] sm:$0xf]
      %v6453 = vld [vmem:[%s6239 + $0x354] sm:$0xf]
      %v6454 = vld [vmem:[%s6239 + $0x358] sm:$0xf]
      %v6455 = vld [vmem:[%s6239 + $0x35c] sm:$0xf]
      %v6456 = vld [vmem:[%s6239 + $0x360] sm:$0xf]
      %v6457 = vld [vmem:[%s6239 + $0x364] sm:$0xf]
      %v6458 = vld [vmem:[%s6239 + $0x368] sm:$0xf]
      %v6459 = vld [vmem:[%s6239 + $0x36c] sm:$0xf]
      %v6460 = vld [vmem:[%s6239 + $0x370] sm:$0xf]
      %v6461 = vld [vmem:[%s6239 + $0x374] sm:$0xf]
      %v6462 = vld [vmem:[%s6239 + $0x378] sm:$0xf]
      %v6463 = vld [vmem:[%s6239 + $0x37c] sm:$0xf]
      %v6464 = vld [vmem:[%s6239 + $0x380] sm:$0xf]
      %v6465 = vld [vmem:[%s6239 + $0x384] sm:$0xf]
      %v6466 = vld [vmem:[%s6239 + $0x388] sm:$0xf]
      %v6467 = vld [vmem:[%s6239 + $0x38c] sm:$0xf]
      %v6468 = vld [vmem:[%s6239 + $0x390] sm:$0xf]
      %v6469 = vld [vmem:[%s6239 + $0x394] sm:$0xf]
      %v6470 = vld [vmem:[%s6239 + $0x398] sm:$0xf]
      %v6471 = vld [vmem:[%s6239 + $0x39c] sm:$0xf]
      %v6472 = vld [vmem:[%s6239 + $0x3a0] sm:$0xf]
      %v6473 = vld [vmem:[%s6239 + $0x3a4] sm:$0xf]
      %v6474 = vld [vmem:[%s6239 + $0x3a8] sm:$0xf]
      %v6475 = vld [vmem:[%s6239 + $0x3ac] sm:$0xf]
      %v6476 = vld [vmem:[%s6239 + $0x3b0] sm:$0xf]
      %v6477 = vld [vmem:[%s6239 + $0x3b4] sm:$0xf]
      %v6478 = vld [vmem:[%s6239 + $0x3b8] sm:$0xf]
      %v6479 = vld [vmem:[%s6239 + $0x3bc] sm:$0xf]
      %v6480 = vld [vmem:[%s6239 + $0x3c0] sm:$0xf]
      %v6481 = vld [vmem:[%s6239 + $0x3c4] sm:$0xf]
      %v6482 = vld [vmem:[%s6239 + $0x3c8] sm:$0xf]
      %v6483 = vld [vmem:[%s6239 + $0x3cc] sm:$0xf]
      %v6484 = vld [vmem:[%s6239 + $0x3d0] sm:$0xf]
      %v6485 = vld [vmem:[%s6239 + $0x3d4] sm:$0xf]
      %v6486 = vld [vmem:[%s6239 + $0x3d8] sm:$0xf]
      %v6487 = vld [vmem:[%s6239 + $0x3dc] sm:$0xf]
      %v6488 = vld [vmem:[%s6239 + $0x3e0] sm:$0xf]
      %v6489 = vld [vmem:[%s6239 + $0x3e4] sm:$0xf]
      %v6490 = vld [vmem:[%s6239 + $0x3e8] sm:$0xf]
      %v6491 = vld [vmem:[%s6239 + $0x3ec] sm:$0xf]
      %v6492 = vld [vmem:[%s6239 + $0x3f0] sm:$0xf]
      %v6493 = vld [vmem:[%s6239 + $0x3f4] sm:$0xf]
      %v6494 = vld [vmem:[%s6239 + $0x3f8] sm:$0xf]
      %v6495 = vld [vmem:[%s6239 + $0x3fc] sm:$0xf]
      %s6496 = scalar_lea.vmem %s3, 3
      %v6497 = vld [vmem:[%s6496] sm:$0x1]
      %v6498 = vrot.slane %v3691, 1
      %v6499 = vrot.slane %v3694, 1
      %v6500 = vrot.slane %v3697, 1
      %v6501 = vrot.slane %v3700, 1
      %v6502 = vrot.slane %v3703, 1
      %v6503 = vrot.slane %v3706, 1
      %v6504 = vrot.slane %v3709, 1
      %v6505 = vrot.slane %v3712, 1
      %v6506 = vrot.slane %v3715, 1
      %v6507 = vrot.slane %v3718, 1
      %v6508 = vrot.slane %v3721, 1
      %v6509 = vrot.slane %v3724, 1
      %v6510 = vrot.slane %v3727, 1
      %v6511 = vrot.slane %v3730, 1
      %v6512 = vrot.slane %v3733, 1
      %v6513 = vrot.slane %v3736, 1
      %v6786 = vunpack.c.l.b16 %v6240
      %v6787 = vunpack.c.l.b16 %v6241
      %v6788 = vunpack.c.l.b16 %v6242
      %v6789 = vunpack.c.l.b16 %v6243
      %v6790 = vunpack.c.l.b16 %v6244
      %v6791 = vunpack.c.l.b16 %v6245
      %v6792 = vunpack.c.l.b16 %v6246
      %v6793 = vunpack.c.l.b16 %v6247
      %v6794 = vunpack.c.l.b16 %v6248
      %v6795 = vunpack.c.l.b16 %v6249
      %v6796 = vunpack.c.l.b16 %v6250
      %v6797 = vunpack.c.l.b16 %v6251
      %v6798 = vunpack.c.l.b16 %v6252
      %v6799 = vunpack.c.l.b16 %v6253
      %v6800 = vunpack.c.l.b16 %v6254
      %v6801 = vunpack.c.l.b16 %v6255
      %v6802 = vunpack.c.l.b16 %v6256
      %v6803 = vunpack.c.l.b16 %v6257
      %v6804 = vunpack.c.l.b16 %v6258
      %v6805 = vunpack.c.l.b16 %v6259
      %v6806 = vunpack.c.l.b16 %v6260
      %v6807 = vunpack.c.l.b16 %v6261
      %v6808 = vunpack.c.l.b16 %v6262
      %v6809 = vunpack.c.l.b16 %v6263
      %v6810 = vunpack.c.l.b16 %v6264
      %v6811 = vunpack.c.l.b16 %v6265
      %v6812 = vunpack.c.l.b16 %v6266
      %v6813 = vunpack.c.l.b16 %v6267
      %v6814 = vunpack.c.l.b16 %v6268
      %v6815 = vunpack.c.l.b16 %v6269
      %v6816 = vunpack.c.l.b16 %v6270
      %v6817 = vunpack.c.l.b16 %v6271
      %v6818 = vunpack.c.l.b16 %v6272
      %v6819 = vunpack.c.l.b16 %v6273
      %v6820 = vunpack.c.l.b16 %v6274
      %v6821 = vunpack.c.l.b16 %v6275
      %v6822 = vunpack.c.l.b16 %v6276
      %v6823 = vunpack.c.l.b16 %v6277
      %v6824 = vunpack.c.l.b16 %v6278
      %v6825 = vunpack.c.l.b16 %v6279
      %v6826 = vunpack.c.l.b16 %v6280
      %v6827 = vunpack.c.l.b16 %v6281
      %v6828 = vunpack.c.l.b16 %v6282
      %v6829 = vunpack.c.l.b16 %v6283
      %v6830 = vunpack.c.l.b16 %v6284
      %v6831 = vunpack.c.l.b16 %v6285
      %v6832 = vunpack.c.l.b16 %v6286
      %v6833 = vunpack.c.l.b16 %v6287
      %v6834 = vunpack.c.l.b16 %v6288
      %v6835 = vunpack.c.l.b16 %v6289
      %v6836 = vunpack.c.l.b16 %v6290
      %v6837 = vunpack.c.l.b16 %v6291
      %v6838 = vunpack.c.l.b16 %v6292
      %v6839 = vunpack.c.l.b16 %v6293
      %v6840 = vunpack.c.l.b16 %v6294
      %v6841 = vunpack.c.l.b16 %v6295
      %v6842 = vunpack.c.l.b16 %v6296
      %v6843 = vunpack.c.l.b16 %v6297
      %v6844 = vunpack.c.l.b16 %v6298
      %v6845 = vunpack.c.l.b16 %v6299
      %v6846 = vunpack.c.l.b16 %v6300
      %v6847 = vunpack.c.l.b16 %v6301
      %v6848 = vunpack.c.l.b16 %v6302
      %v6849 = vunpack.c.l.b16 %v6303
      %v6850 = vunpack.c.l.b16 %v6304
      %v6851 = vunpack.c.l.b16 %v6305
      %v6852 = vunpack.c.l.b16 %v6306
      %v6853 = vunpack.c.l.b16 %v6307
      %v6854 = vunpack.c.l.b16 %v6308
      %v6855 = vunpack.c.l.b16 %v6309
      %v6856 = vunpack.c.l.b16 %v6310
      %v6857 = vunpack.c.l.b16 %v6311
      %v6858 = vunpack.c.l.b16 %v6312
      %v6859 = vunpack.c.l.b16 %v6313
      %v6860 = vunpack.c.l.b16 %v6314
      %v6861 = vunpack.c.l.b16 %v6315
      %v6862 = vunpack.c.l.b16 %v6316
      %v6863 = vunpack.c.l.b16 %v6317
      %v6864 = vunpack.c.l.b16 %v6318
      %v6865 = vunpack.c.l.b16 %v6319
      %v6866 = vunpack.c.l.b16 %v6320
      %v6867 = vunpack.c.l.b16 %v6321
      %v6868 = vunpack.c.l.b16 %v6322
      %v6869 = vunpack.c.l.b16 %v6323
      %v6870 = vunpack.c.l.b16 %v6324
      %v6871 = vunpack.c.l.b16 %v6325
      %v6872 = vunpack.c.l.b16 %v6326
      %v6873 = vunpack.c.l.b16 %v6327
      %v6874 = vunpack.c.l.b16 %v6328
      %v6875 = vunpack.c.l.b16 %v6329
      %v6876 = vunpack.c.l.b16 %v6330
      %v6877 = vunpack.c.l.b16 %v6331
      %v6878 = vunpack.c.l.b16 %v6332
      %v6879 = vunpack.c.l.b16 %v6333
      %v6880 = vunpack.c.l.b16 %v6334
      %v6881 = vunpack.c.l.b16 %v6335
      %v6882 = vunpack.c.l.b16 %v6336
      %v6883 = vunpack.c.l.b16 %v6337
      %v6884 = vunpack.c.l.b16 %v6338
      %v6885 = vunpack.c.l.b16 %v6339
      %v6886 = vunpack.c.l.b16 %v6340
      %v6887 = vunpack.c.l.b16 %v6341
      %v6888 = vunpack.c.l.b16 %v6342
      %v6889 = vunpack.c.l.b16 %v6343
      %v6890 = vunpack.c.l.b16 %v6344
      %v6891 = vunpack.c.l.b16 %v6345
      %v6892 = vunpack.c.l.b16 %v6346
      %v6893 = vunpack.c.l.b16 %v6347
      %v6894 = vunpack.c.l.b16 %v6348
      %v6895 = vunpack.c.l.b16 %v6349
      %v6896 = vunpack.c.l.b16 %v6350
      %v6897 = vunpack.c.l.b16 %v6351
      %v6898 = vunpack.c.l.b16 %v6352
      %v6899 = vunpack.c.l.b16 %v6353
      %v6900 = vunpack.c.l.b16 %v6354
      %v6901 = vunpack.c.l.b16 %v6355
      %v6902 = vunpack.c.l.b16 %v6356
      %v6903 = vunpack.c.l.b16 %v6357
      %v6904 = vunpack.c.l.b16 %v6358
      %v6905 = vunpack.c.l.b16 %v6359
      %v6906 = vunpack.c.l.b16 %v6360
      %v6907 = vunpack.c.l.b16 %v6361
      %v6908 = vunpack.c.l.b16 %v6362
      %v6909 = vunpack.c.l.b16 %v6363
      %v6910 = vunpack.c.l.b16 %v6364
      %v6911 = vunpack.c.l.b16 %v6365
      %v6912 = vunpack.c.l.b16 %v6366
      %v6913 = vunpack.c.l.b16 %v6367
      %v6914 = vunpack.c.l.b16 %v6368
      %v6915 = vunpack.c.l.b16 %v6369
      %v6916 = vunpack.c.l.b16 %v6370
      %v6917 = vunpack.c.l.b16 %v6371
      %v6918 = vunpack.c.l.b16 %v6372
      %v6919 = vunpack.c.l.b16 %v6373
      %v6920 = vunpack.c.l.b16 %v6374
      %v6921 = vunpack.c.l.b16 %v6375
      %v6922 = vunpack.c.l.b16 %v6376
      %v6923 = vunpack.c.l.b16 %v6377
      %v6924 = vunpack.c.l.b16 %v6378
      %v6925 = vunpack.c.l.b16 %v6379
      %v6926 = vunpack.c.l.b16 %v6380
      %v6927 = vunpack.c.l.b16 %v6381
      %v6928 = vunpack.c.l.b16 %v6382
      %v6929 = vunpack.c.l.b16 %v6383
      %v6930 = vunpack.c.l.b16 %v6384
      %v6931 = vunpack.c.l.b16 %v6385
      %v6932 = vunpack.c.l.b16 %v6386
      %v6933 = vunpack.c.l.b16 %v6387
      %v6934 = vunpack.c.l.b16 %v6388
      %v6935 = vunpack.c.l.b16 %v6389
      %v6936 = vunpack.c.l.b16 %v6390
      %v6937 = vunpack.c.l.b16 %v6391
      %v6938 = vunpack.c.l.b16 %v6392
      %v6939 = vunpack.c.l.b16 %v6393
      %v6940 = vunpack.c.l.b16 %v6394
      %v6941 = vunpack.c.l.b16 %v6395
      %v6942 = vunpack.c.l.b16 %v6396
      %v6943 = vunpack.c.l.b16 %v6397
      %v6944 = vunpack.c.l.b16 %v6398
      %v6945 = vunpack.c.l.b16 %v6399
      %v6946 = vunpack.c.l.b16 %v6400
      %v6947 = vunpack.c.l.b16 %v6401
      %v6948 = vunpack.c.l.b16 %v6402
      %v6949 = vunpack.c.l.b16 %v6403
      %v6950 = vunpack.c.l.b16 %v6404
      %v6951 = vunpack.c.l.b16 %v6405
      %v6952 = vunpack.c.l.b16 %v6406
      %v6953 = vunpack.c.l.b16 %v6407
      %v6954 = vunpack.c.l.b16 %v6408
      %v6955 = vunpack.c.l.b16 %v6409
      %v6956 = vunpack.c.l.b16 %v6410
      %v6957 = vunpack.c.l.b16 %v6411
      %v6958 = vunpack.c.l.b16 %v6412
      %v6959 = vunpack.c.l.b16 %v6413
      %v6960 = vunpack.c.l.b16 %v6414
      %v6961 = vunpack.c.l.b16 %v6415
      %v6962 = vunpack.c.l.b16 %v6416
      %v6963 = vunpack.c.l.b16 %v6417
      %v6964 = vunpack.c.l.b16 %v6418
      %v6965 = vunpack.c.l.b16 %v6419
      %v6966 = vunpack.c.l.b16 %v6420
      %v6967 = vunpack.c.l.b16 %v6421
      %v6968 = vunpack.c.l.b16 %v6422
      %v6969 = vunpack.c.l.b16 %v6423
      %v6970 = vunpack.c.l.b16 %v6424
      %v6971 = vunpack.c.l.b16 %v6425
      %v6972 = vunpack.c.l.b16 %v6426
      %v6973 = vunpack.c.l.b16 %v6427
      %v6974 = vunpack.c.l.b16 %v6428
      %v6975 = vunpack.c.l.b16 %v6429
      %v6976 = vunpack.c.l.b16 %v6430
      %v6977 = vunpack.c.l.b16 %v6431
      %v6978 = vunpack.c.l.b16 %v6432
      %v6979 = vunpack.c.l.b16 %v6433
      %v6980 = vunpack.c.l.b16 %v6434
      %v6981 = vunpack.c.l.b16 %v6435
      %v6982 = vunpack.c.l.b16 %v6436
      %v6983 = vunpack.c.l.b16 %v6437
      %v6984 = vunpack.c.l.b16 %v6438
      %v6985 = vunpack.c.l.b16 %v6439
      %v6986 = vunpack.c.l.b16 %v6440
      %v6987 = vunpack.c.l.b16 %v6441
      %v6988 = vunpack.c.l.b16 %v6442
      %v6989 = vunpack.c.l.b16 %v6443
      %v6990 = vunpack.c.l.b16 %v6444
      %v6991 = vunpack.c.l.b16 %v6445
      %v6992 = vunpack.c.l.b16 %v6446
      %v6993 = vunpack.c.l.b16 %v6447
      %v6994 = vunpack.c.l.b16 %v6448
      %v6995 = vunpack.c.l.b16 %v6449
      %v6996 = vunpack.c.l.b16 %v6450
      %v6997 = vunpack.c.l.b16 %v6451
      %v6998 = vunpack.c.l.b16 %v6452
      %v6999 = vunpack.c.l.b16 %v6453
      %v7000 = vunpack.c.l.b16 %v6454
      %v7001 = vunpack.c.l.b16 %v6455
      %v7002 = vunpack.c.l.b16 %v6456
      %v7003 = vunpack.c.l.b16 %v6457
      %v7004 = vunpack.c.l.b16 %v6458
      %v7005 = vunpack.c.l.b16 %v6459
      %v7006 = vunpack.c.l.b16 %v6460
      %v7007 = vunpack.c.l.b16 %v6461
      %v7008 = vunpack.c.l.b16 %v6462
      %v7009 = vunpack.c.l.b16 %v6463
      %v7010 = vunpack.c.l.b16 %v6464
      %v7011 = vunpack.c.l.b16 %v6465
      %v7012 = vunpack.c.l.b16 %v6466
      %v7013 = vunpack.c.l.b16 %v6467
      %v7014 = vunpack.c.l.b16 %v6468
      %v7015 = vunpack.c.l.b16 %v6469
      %v7016 = vunpack.c.l.b16 %v6470
      %v7017 = vunpack.c.l.b16 %v6471
      %v7018 = vunpack.c.l.b16 %v6472
      %v7019 = vunpack.c.l.b16 %v6473
      %v7020 = vunpack.c.l.b16 %v6474
      %v7021 = vunpack.c.l.b16 %v6475
      %v7022 = vunpack.c.l.b16 %v6476
      %v7023 = vunpack.c.l.b16 %v6477
      %v7024 = vunpack.c.l.b16 %v6478
      %v7025 = vunpack.c.l.b16 %v6479
      %v7026 = vunpack.c.l.b16 %v6480
      %v7027 = vunpack.c.l.b16 %v6481
      %v7028 = vunpack.c.l.b16 %v6482
      %v7029 = vunpack.c.l.b16 %v6483
      %v7030 = vunpack.c.l.b16 %v6484
      %v7031 = vunpack.c.l.b16 %v6485
      %v7032 = vunpack.c.l.b16 %v6486
      %v7033 = vunpack.c.l.b16 %v6487
      %v7034 = vunpack.c.l.b16 %v6488
      %v7035 = vunpack.c.l.b16 %v6489
      %v7036 = vunpack.c.l.b16 %v6490
      %v7037 = vunpack.c.l.b16 %v6491
      %v7038 = vunpack.c.l.b16 %v6492
      %v7039 = vunpack.c.l.b16 %v6493
      %v7040 = vunpack.c.l.b16 %v6494
      %v7041 = vunpack.c.l.b16 %v6495
      %v7042 = vpack.c.b16 %v6787, %v6786
      %v7043 = vpack.c.b16 %v6789, %v6788
      %v7044 = vpack.c.b16 %v6791, %v6790
      %v7045 = vpack.c.b16 %v6793, %v6792
      %v7046 = vpack.c.b16 %v6795, %v6794
      %v7047 = vpack.c.b16 %v6797, %v6796
      %v7048 = vpack.c.b16 %v6799, %v6798
      %v7049 = vpack.c.b16 %v6801, %v6800
      %v7050 = vpack.c.b16 %v6803, %v6802
      %v7051 = vpack.c.b16 %v6805, %v6804
      %v7052 = vpack.c.b16 %v6807, %v6806
      %v7053 = vpack.c.b16 %v6809, %v6808
      %v7054 = vpack.c.b16 %v6811, %v6810
      %v7055 = vpack.c.b16 %v6813, %v6812
      %v7056 = vpack.c.b16 %v6815, %v6814
      %v7057 = vpack.c.b16 %v6817, %v6816
      %v7058 = vpack.c.b16 %v6819, %v6818
      %v7059 = vpack.c.b16 %v6821, %v6820
      %v7060 = vpack.c.b16 %v6823, %v6822
      %v7061 = vpack.c.b16 %v6825, %v6824
      %v7062 = vpack.c.b16 %v6827, %v6826
      %v7063 = vpack.c.b16 %v6829, %v6828
      %v7064 = vpack.c.b16 %v6831, %v6830
      %v7065 = vpack.c.b16 %v6833, %v6832
      %v7066 = vpack.c.b16 %v6835, %v6834
      %v7067 = vpack.c.b16 %v6837, %v6836
      %v7068 = vpack.c.b16 %v6839, %v6838
      %v7069 = vpack.c.b16 %v6841, %v6840
      %v7070 = vpack.c.b16 %v6843, %v6842
      %v7071 = vpack.c.b16 %v6845, %v6844
      %v7072 = vpack.c.b16 %v6847, %v6846
      %v7073 = vpack.c.b16 %v6849, %v6848
      %v7074 = vpack.c.b16 %v6851, %v6850
      %v7075 = vpack.c.b16 %v6853, %v6852
      %v7076 = vpack.c.b16 %v6855, %v6854
      %v7077 = vpack.c.b16 %v6857, %v6856
      %v7078 = vpack.c.b16 %v6859, %v6858
      %v7079 = vpack.c.b16 %v6861, %v6860
      %v7080 = vpack.c.b16 %v6863, %v6862
      %v7081 = vpack.c.b16 %v6865, %v6864
      %v7082 = vpack.c.b16 %v6867, %v6866
      %v7083 = vpack.c.b16 %v6869, %v6868
      %v7084 = vpack.c.b16 %v6871, %v6870
      %v7085 = vpack.c.b16 %v6873, %v6872
      %v7086 = vpack.c.b16 %v6875, %v6874
      %v7087 = vpack.c.b16 %v6877, %v6876
      %v7088 = vpack.c.b16 %v6879, %v6878
      %v7089 = vpack.c.b16 %v6881, %v6880
      %v7090 = vpack.c.b16 %v6883, %v6882
      %v7091 = vpack.c.b16 %v6885, %v6884
      %v7092 = vpack.c.b16 %v6887, %v6886
      %v7093 = vpack.c.b16 %v6889, %v6888
      %v7094 = vpack.c.b16 %v6891, %v6890
      %v7095 = vpack.c.b16 %v6893, %v6892
      %v7096 = vpack.c.b16 %v6895, %v6894
      %v7097 = vpack.c.b16 %v6897, %v6896
      %v7098 = vpack.c.b16 %v6899, %v6898
      %v7099 = vpack.c.b16 %v6901, %v6900
      %v7100 = vpack.c.b16 %v6903, %v6902
      %v7101 = vpack.c.b16 %v6905, %v6904
      %v7102 = vpack.c.b16 %v6907, %v6906
      %v7103 = vpack.c.b16 %v6909, %v6908
      %v7104 = vpack.c.b16 %v6911, %v6910
      %v7105 = vpack.c.b16 %v6913, %v6912
      %v7106 = vpack.c.b16 %v6915, %v6914
      %v7107 = vpack.c.b16 %v6917, %v6916
      %v7108 = vpack.c.b16 %v6919, %v6918
      %v7109 = vpack.c.b16 %v6921, %v6920
      %v7110 = vpack.c.b16 %v6923, %v6922
      %v7111 = vpack.c.b16 %v6925, %v6924
      %v7112 = vpack.c.b16 %v6927, %v6926
      %v7113 = vpack.c.b16 %v6929, %v6928
      %v7114 = vpack.c.b16 %v6931, %v6930
      %v7115 = vpack.c.b16 %v6933, %v6932
      %v7116 = vpack.c.b16 %v6935, %v6934
      %v7117 = vpack.c.b16 %v6937, %v6936
      %v7118 = vpack.c.b16 %v6939, %v6938
      %v7119 = vpack.c.b16 %v6941, %v6940
      %v7120 = vpack.c.b16 %v6943, %v6942
      %v7121 = vpack.c.b16 %v6945, %v6944
      %v7122 = vpack.c.b16 %v6947, %v6946
      %v7123 = vpack.c.b16 %v6949, %v6948
      %v7124 = vpack.c.b16 %v6951, %v6950
      %v7125 = vpack.c.b16 %v6953, %v6952
      %v7126 = vpack.c.b16 %v6955, %v6954
      %v7127 = vpack.c.b16 %v6957, %v6956
      %v7128 = vpack.c.b16 %v6959, %v6958
      %v7129 = vpack.c.b16 %v6961, %v6960
      %v7130 = vpack.c.b16 %v6963, %v6962
      %v7131 = vpack.c.b16 %v6965, %v6964
      %v7132 = vpack.c.b16 %v6967, %v6966
      %v7133 = vpack.c.b16 %v6969, %v6968
      %v7134 = vpack.c.b16 %v6971, %v6970
      %v7135 = vpack.c.b16 %v6973, %v6972
      %v7136 = vpack.c.b16 %v6975, %v6974
      %v7137 = vpack.c.b16 %v6977, %v6976
      %v7138 = vpack.c.b16 %v6979, %v6978
      %v7139 = vpack.c.b16 %v6981, %v6980
      %v7140 = vpack.c.b16 %v6983, %v6982
      %v7141 = vpack.c.b16 %v6985, %v6984
      %v7142 = vpack.c.b16 %v6987, %v6986
      %v7143 = vpack.c.b16 %v6989, %v6988
      %v7144 = vpack.c.b16 %v6991, %v6990
      %v7145 = vpack.c.b16 %v6993, %v6992
      %v7146 = vpack.c.b16 %v6995, %v6994
      %v7147 = vpack.c.b16 %v6997, %v6996
      %v7148 = vpack.c.b16 %v6999, %v6998
      %v7149 = vpack.c.b16 %v7001, %v7000
      %v7150 = vpack.c.b16 %v7003, %v7002
      %v7151 = vpack.c.b16 %v7005, %v7004
      %v7152 = vpack.c.b16 %v7007, %v7006
      %v7153 = vpack.c.b16 %v7009, %v7008
      %v7154 = vpack.c.b16 %v7011, %v7010
      %v7155 = vpack.c.b16 %v7013, %v7012
      %v7156 = vpack.c.b16 %v7015, %v7014
      %v7157 = vpack.c.b16 %v7017, %v7016
      %v7158 = vpack.c.b16 %v7019, %v7018
      %v7159 = vpack.c.b16 %v7021, %v7020
      %v7160 = vpack.c.b16 %v7023, %v7022
      %v7161 = vpack.c.b16 %v7025, %v7024
      %v7162 = vpack.c.b16 %v7027, %v7026
      %v7163 = vpack.c.b16 %v7029, %v7028
      %v7164 = vpack.c.b16 %v7031, %v7030
      %v7165 = vpack.c.b16 %v7033, %v7032
      %v7166 = vpack.c.b16 %v7035, %v7034
      %v7167 = vpack.c.b16 %v7037, %v7036
      %v7168 = vpack.c.b16 %v7039, %v7038
      %v7169 = vpack.c.b16 %v7041, %v7040
      %7298 = vmatprep.subr.bf16.mxu0 0
      %7299 = vmatpush1.bf16.msra.mxu0 %v7042
      %7300 = vmatprep.subr.bf16.mxu0 0
      %7301 = vmatpush1.bf16.msra.mxu0 %v7043
      %7302 = vmatprep.subr.bf16.mxu0 0
      %7303 = vmatpush1.bf16.msra.mxu0 %v7044
      %7304 = vmatprep.subr.bf16.mxu0 0
      %7305 = vmatpush1.bf16.msra.mxu0 %v7045
      %7306 = vmatprep.subr.bf16.mxu0 0
      %7307 = vmatpush1.bf16.msra.mxu0 %v7046
      %7308 = vmatprep.subr.bf16.mxu0 0
      %7309 = vmatpush1.bf16.msra.mxu0 %v7047
      %7310 = vmatprep.subr.bf16.mxu0 0
      %7311 = vmatpush1.bf16.msra.mxu0 %v7048
      %7312 = vmatprep.subr.bf16.mxu0 0
      %7313 = vmatpush1.bf16.msra.mxu0 %v7049
      %7314 = vmatprep.subr.bf16.mxu0 0
      %7315 = vmatpush1.bf16.msra.mxu0 %v7050
      %7316 = vmatprep.subr.bf16.mxu0 0
      %7317 = vmatpush1.bf16.msra.mxu0 %v7051
      %7318 = vmatprep.subr.bf16.mxu0 0
      %7319 = vmatpush1.bf16.msra.mxu0 %v7052
      %7320 = vmatprep.subr.bf16.mxu0 0
      %7321 = vmatpush1.bf16.msra.mxu0 %v7053
      %7322 = vmatprep.subr.bf16.mxu0 0
      %7323 = vmatpush1.bf16.msra.mxu0 %v7054
      %7324 = vmatprep.subr.bf16.mxu0 0
      %7325 = vmatpush1.bf16.msra.mxu0 %v7055
      %7326 = vmatprep.subr.bf16.mxu0 0
      %7327 = vmatpush1.bf16.msra.mxu0 %v7056
      %7328 = vmatprep.subr.bf16.mxu0 0
      %7329 = vmatpush1.bf16.msra.mxu0 %v7057
      %7330 = vmatprep.mubr.bf16.mxu0 %v6499
      %7331 = vmatmul.mubr.bf16.gmra.mrb[0].mxu0 %v6498
      %v7332 = vpop.f32.mrb[0].mxu0
      %v7333 = vadd.f32 %v6497, %v7332
      %v7334 = vpop.f32.mrb[0].mxu0
      %v7335 = vpop.f32.mrb[0].mxu0
      %v7336 = vpop.f32.mrb[0].mxu0
      %7337 = vdwg.mxu0
      %7338 = vmatprep.subr.bf16.mxu0 0
      %7339 = vmatpush1.bf16.msra.mxu0 %v7058
      %7340 = vmatprep.subr.bf16.mxu0 0
      %7341 = vmatpush1.bf16.msra.mxu0 %v7059
      %7342 = vmatprep.subr.bf16.mxu0 0
      %7343 = vmatpush1.bf16.msra.mxu0 %v7060
      %7344 = vmatprep.subr.bf16.mxu0 0
      %7345 = vmatpush1.bf16.msra.mxu0 %v7061
      %7346 = vmatprep.subr.bf16.mxu0 0
      %7347 = vmatpush1.bf16.msra.mxu0 %v7062
      %7348 = vmatprep.subr.bf16.mxu0 0
      %7349 = vmatpush1.bf16.msra.mxu0 %v7063
      %7350 = vmatprep.subr.bf16.mxu0 0
      %7351 = vmatpush1.bf16.msra.mxu0 %v7064
      %7352 = vmatprep.subr.bf16.mxu0 0
      %7353 = vmatpush1.bf16.msra.mxu0 %v7065
      %7354 = vmatprep.subr.bf16.mxu0 0
      %7355 = vmatpush1.bf16.msra.mxu0 %v7066
      %7356 = vmatprep.subr.bf16.mxu0 0
      %7357 = vmatpush1.bf16.msra.mxu0 %v7067
      %7358 = vmatprep.subr.bf16.mxu0 0
      %7359 = vmatpush1.bf16.msra.mxu0 %v7068
      %7360 = vmatprep.subr.bf16.mxu0 0
      %7361 = vmatpush1.bf16.msra.mxu0 %v7069
      %7362 = vmatprep.subr.bf16.mxu0 0
      %7363 = vmatpush1.bf16.msra.mxu0 %v7070
      %7364 = vmatprep.subr.bf16.mxu0 0
      %7365 = vmatpush1.bf16.msra.mxu0 %v7071
      %7366 = vmatprep.subr.bf16.mxu0 0
      %7367 = vmatpush1.bf16.msra.mxu0 %v7072
      %7368 = vmatprep.subr.bf16.mxu0 0
      %7369 = vmatpush1.bf16.msra.mxu0 %v7073
      %7370 = vmatprep.mubr.bf16.mxu0 %v6501
      %7371 = vmatmul.mubr.bf16.gmra.mrb[0].mxu0 %v6500
      %v7372 = vpop.f32.mrb[0].mxu0
      %v7373 = vadd.f32 %v7333, %v7372
      %v7374 = vpop.f32.mrb[0].mxu0
      %v7375 = vpop.f32.mrb[0].mxu0
      %v7376 = vpop.f32.mrb[0].mxu0
      %7377 = vdwg.mxu0
      %7378 = vmatprep.subr.bf16.mxu0 0
      %7379 = vmatpush1.bf16.msra.mxu0 %v7074
      %7380 = vmatprep.subr.bf16.mxu0 0
      %7381 = vmatpush1.bf16.msra.mxu0 %v7075
      %7382 = vmatprep.subr.bf16.mxu0 0
      %7383 = vmatpush1.bf16.msra.mxu0 %v7076
      %7384 = vmatprep.subr.bf16.mxu0 0
      %7385 = vmatpush1.bf16.msra.mxu0 %v7077
      %7386 = vmatprep.subr.bf16.mxu0 0
      %7387 = vmatpush1.bf16.msra.mxu0 %v7078
      %7388 = vmatprep.subr.bf16.mxu0 0
      %7389 = vmatpush1.bf16.msra.mxu0 %v7079
      %7390 = vmatprep.subr.bf16.mxu0 0
      %7391 = vmatpush1.bf16.msra.mxu0 %v7080
      %7392 = vmatprep.subr.bf16.mxu0 0
      %7393 = vmatpush1.bf16.msra.mxu0 %v7081
      %7394 = vmatprep.subr.bf16.mxu0 0
      %7395 = vmatpush1.bf16.msra.mxu0 %v7082
      %7396 = vmatprep.subr.bf16.mxu0 0
      %7397 = vmatpush1.bf16.msra.mxu0 %v7083
      %7398 = vmatprep.subr.bf16.mxu0 0
      %7399 = vmatpush1.bf16.msra.mxu0 %v7084
      %7400 = vmatprep.subr.bf16.mxu0 0
      %7401 = vmatpush1.bf16.msra.mxu0 %v7085
      %7402 = vmatprep.subr.bf16.mxu0 0
      %7403 = vmatpush1.bf16.msra.mxu0 %v7086
      %7404 = vmatprep.subr.bf16.mxu0 0
      %7405 = vmatpush1.bf16.msra.mxu0 %v7087
      %7406 = vmatprep.subr.bf16.mxu0 0
      %7407 = vmatpush1.bf16.msra.mxu0 %v7088
      %7408 = vmatprep.subr.bf16.mxu0 0
      %7409 = vmatpush1.bf16.msra.mxu0 %v7089
      %7410 = vmatprep.mubr.bf16.mxu0 %v6503
      %7411 = vmatmul.mubr.bf16.gmra.mrb[0].mxu0 %v6502
      %v7412 = vpop.f32.mrb[0].mxu0
      %v7413 = vadd.f32 %v7373, %v7412
      %v7414 = vpop.f32.mrb[0].mxu0
      %v7415 = vpop.f32.mrb[0].mxu0
      %v7416 = vpop.f32.mrb[0].mxu0
      %7417 = vdwg.mxu0
      %7418 = vmatprep.subr.bf16.mxu0 0
      %7419 = vmatpush1.bf16.msra.mxu0 %v7090
      %7420 = vmatprep.subr.bf16.mxu0 0
      %7421 = vmatpush1.bf16.msra.mxu0 %v7091
      %7422 = vmatprep.subr.bf16.mxu0 0
      %7423 = vmatpush1.bf16.msra.mxu0 %v7092
      %7424 = vmatprep.subr.bf16.mxu0 0
      %7425 = vmatpush1.bf16.msra.mxu0 %v7093
      %7426 = vmatprep.subr.bf16.mxu0 0
      %7427 = vmatpush1.bf16.msra.mxu0 %v7094
      %7428 = vmatprep.subr.bf16.mxu0 0
      %7429 = vmatpush1.bf16.msra.mxu0 %v7095
      %7430 = vmatprep.subr.bf16.mxu0 0
      %7431 = vmatpush1.bf16.msra.mxu0 %v7096
      %7432 = vmatprep.subr.bf16.mxu0 0
      %7433 = vmatpush1.bf16.msra.mxu0 %v7097
      %7434 = vmatprep.subr.bf16.mxu0 0
      %7435 = vmatpush1.bf16.msra.mxu0 %v7098
      %7436 = vmatprep.subr.bf16.mxu0 0
      %7437 = vmatpush1.bf16.msra.mxu0 %v7099
      %7438 = vmatprep.subr.bf16.mxu0 0
      %7439 = vmatpush1.bf16.msra.mxu0 %v7100
      %7440 = vmatprep.subr.bf16.mxu0 0
      %7441 = vmatpush1.bf16.msra.mxu0 %v7101
      %7442 = vmatprep.subr.bf16.mxu0 0
      %7443 = vmatpush1.bf16.msra.mxu0 %v7102
      %7444 = vmatprep.subr.bf16.mxu0 0
      %7445 = vmatpush1.bf16.msra.mxu0 %v7103
      %7446 = vmatprep.subr.bf16.mxu0 0
      %7447 = vmatpush1.bf16.msra.mxu0 %v7104
      %7448 = vmatprep.subr.bf16.mxu0 0
      %7449 = vmatpush1.bf16.msra.mxu0 %v7105
      %7450 = vmatprep.mubr.bf16.mxu0 %v6505
      %7451 = vmatmul.mubr.bf16.gmra.mrb[0].mxu0 %v6504
      %v7452 = vpop.f32.mrb[0].mxu0
      %v7453 = vadd.f32 %v7413, %v7452
      %v7454 = vpop.f32.mrb[0].mxu0
      %v7455 = vpop.f32.mrb[0].mxu0
      %v7456 = vpop.f32.mrb[0].mxu0
      %7457 = vdwg.mxu0
      %7458 = vmatprep.subr.bf16.mxu0 0
      %7459 = vmatpush1.bf16.msra.mxu0 %v7106
      %7460 = vmatprep.subr.bf16.mxu0 0
      %7461 = vmatpush1.bf16.msra.mxu0 %v7107
      %7462 = vmatprep.subr.bf16.mxu0 0
      %7463 = vmatpush1.bf16.msra.mxu0 %v7108
      %7464 = vmatprep.subr.bf16.mxu0 0
      %7465 = vmatpush1.bf16.msra.mxu0 %v7109
      %7466 = vmatprep.subr.bf16.mxu0 0
      %7467 = vmatpush1.bf16.msra.mxu0 %v7110
      %7468 = vmatprep.subr.bf16.mxu0 0
      %7469 = vmatpush1.bf16.msra.mxu0 %v7111
      %7470 = vmatprep.subr.bf16.mxu0 0
      %7471 = vmatpush1.bf16.msra.mxu0 %v7112
      %7472 = vmatprep.subr.bf16.mxu0 0
      %7473 = vmatpush1.bf16.msra.mxu0 %v7113
      %7474 = vmatprep.subr.bf16.mxu0 0
      %7475 = vmatpush1.bf16.msra.mxu0 %v7114
      %7476 = vmatprep.subr.bf16.mxu0 0
      %7477 = vmatpush1.bf16.msra.mxu0 %v7115
      %7478 = vmatprep.subr.bf16.mxu0 0
      %7479 = vmatpush1.bf16.msra.mxu0 %v7116
      %7480 = vmatprep.subr.bf16.mxu0 0
      %7481 = vmatpush1.bf16.msra.mxu0 %v7117
      %7482 = vmatprep.subr.bf16.mxu0 0
      %7483 = vmatpush1.bf16.msra.mxu0 %v7118
      %7484 = vmatprep.subr.bf16.mxu0 0
      %7485 = vmatpush1.bf16.msra.mxu0 %v7119
      %7486 = vmatprep.subr.bf16.mxu0 0
      %7487 = vmatpush1.bf16.msra.mxu0 %v7120
      %7488 = vmatprep.subr.bf16.mxu0 0
      %7489 = vmatpush1.bf16.msra.mxu0 %v7121
      %7490 = vmatprep.mubr.bf16.mxu0 %v6507
      %7491 = vmatmul.mubr.bf16.gmra.mrb[0].mxu0 %v6506
      %v7492 = vpop.f32.mrb[0].mxu0
      %v7493 = vadd.f32 %v7453, %v7492
      %v7494 = vpop.f32.mrb[0].mxu0
      %v7495 = vpop.f32.mrb[0].mxu0
      %v7496 = vpop.f32.mrb[0].mxu0
      %7497 = vdwg.mxu0
      %7498 = vmatprep.subr.bf16.mxu0 0
      %7499 = vmatpush1.bf16.msra.mxu0 %v7122
      %7500 = vmatprep.subr.bf16.mxu0 0
      %7501 = vmatpush1.bf16.msra.mxu0 %v7123
      %7502 = vmatprep.subr.bf16.mxu0 0
      %7503 = vmatpush1.bf16.msra.mxu0 %v7124
      %7504 = vmatprep.subr.bf16.mxu0 0
      %7505 = vmatpush1.bf16.msra.mxu0 %v7125
      %7506 = vmatprep.subr.bf16.mxu0 0
      %7507 = vmatpush1.bf16.msra.mxu0 %v7126
      %7508 = vmatprep.subr.bf16.mxu0 0
      %7509 = vmatpush1.bf16.msra.mxu0 %v7127
      %7510 = vmatprep.subr.bf16.mxu0 0
      %7511 = vmatpush1.bf16.msra.mxu0 %v7128
      %7512 = vmatprep.subr.bf16.mxu0 0
      %7513 = vmatpush1.bf16.msra.mxu0 %v7129
      %7514 = vmatprep.subr.bf16.mxu0 0
      %7515 = vmatpush1.bf16.msra.mxu0 %v7130
      %7516 = vmatprep.subr.bf16.mxu0 0
      %7517 = vmatpush1.bf16.msra.mxu0 %v7131
      %7518 = vmatprep.subr.bf16.mxu0 0
      %7519 = vmatpush1.bf16.msra.mxu0 %v7132
      %7520 = vmatprep.subr.bf16.mxu0 0
      %7521 = vmatpush1.bf16.msra.mxu0 %v7133
      %7522 = vmatprep.subr.bf16.mxu0 0
      %7523 = vmatpush1.bf16.msra.mxu0 %v7134
      %7524 = vmatprep.subr.bf16.mxu0 0
      %7525 = vmatpush1.bf16.msra.mxu0 %v7135
      %7526 = vmatprep.subr.bf16.mxu0 0
      %7527 = vmatpush1.bf16.msra.mxu0 %v7136
      %7528 = vmatprep.subr.bf16.mxu0 0
      %7529 = vmatpush1.bf16.msra.mxu0 %v7137
      %7530 = vmatprep.mubr.bf16.mxu0 %v6509
      %7531 = vmatmul.mubr.bf16.gmra.mrb[0].mxu0 %v6508
      %v7532 = vpop.f32.mrb[0].mxu0
      %v7533 = vadd.f32 %v7493, %v7532
      %v7534 = vpop.f32.mrb[0].mxu0
      %v7535 = vpop.f32.mrb[0].mxu0
      %v7536 = vpop.f32.mrb[0].mxu0
      %7537 = vdwg.mxu0
      %7538 = vmatprep.subr.bf16.mxu0 0
      %7539 = vmatpush1.bf16.msra.mxu0 %v7138
      %7540 = vmatprep.subr.bf16.mxu0 0
      %7541 = vmatpush1.bf16.msra.mxu0 %v7139
      %7542 = vmatprep.subr.bf16.mxu0 0
      %7543 = vmatpush1.bf16.msra.mxu0 %v7140
      %7544 = vmatprep.subr.bf16.mxu0 0
      %7545 = vmatpush1.bf16.msra.mxu0 %v7141
      %7546 = vmatprep.subr.bf16.mxu0 0
      %7547 = vmatpush1.bf16.msra.mxu0 %v7142
      %7548 = vmatprep.subr.bf16.mxu0 0
      %7549 = vmatpush1.bf16.msra.mxu0 %v7143
      %7550 = vmatprep.subr.bf16.mxu0 0
      %7551 = vmatpush1.bf16.msra.mxu0 %v7144
      %7552 = vmatprep.subr.bf16.mxu0 0
      %7553 = vmatpush1.bf16.msra.mxu0 %v7145
      %7554 = vmatprep.subr.bf16.mxu0 0
      %7555 = vmatpush1.bf16.msra.mxu0 %v7146
      %7556 = vmatprep.subr.bf16.mxu0 0
      %7557 = vmatpush1.bf16.msra.mxu0 %v7147
      %7558 = vmatprep.subr.bf16.mxu0 0
      %7559 = vmatpush1.bf16.msra.mxu0 %v7148
      %7560 = vmatprep.subr.bf16.mxu0 0
      %7561 = vmatpush1.bf16.msra.mxu0 %v7149
      %7562 = vmatprep.subr.bf16.mxu0 0
      %7563 = vmatpush1.bf16.msra.mxu0 %v7150
      %7564 = vmatprep.subr.bf16.mxu0 0
      %7565 = vmatpush1.bf16.msra.mxu0 %v7151
      %7566 = vmatprep.subr.bf16.mxu0 0
      %7567 = vmatpush1.bf16.msra.mxu0 %v7152
      %7568 = vmatprep.subr.bf16.mxu0 0
      %7569 = vmatpush1.bf16.msra.mxu0 %v7153
      %7570 = vmatprep.mubr.bf16.mxu0 %v6511
      %7571 = vmatmul.mubr.bf16.gmra.mrb[0].mxu0 %v6510
      %v7572 = vpop.f32.mrb[0].mxu0
      %v7573 = vadd.f32 %v7533, %v7572
      %v7574 = vpop.f32.mrb[0].mxu0
      %v7575 = vpop.f32.mrb[0].mxu0
      %v7576 = vpop.f32.mrb[0].mxu0
      %7577 = vdwg.mxu0
      %7578 = vmatprep.subr.bf16.mxu0 0
      %7579 = vmatpush1.bf16.msra.mxu0 %v7154
      %7580 = vmatprep.subr.bf16.mxu0 0
      %7581 = vmatpush1.bf16.msra.mxu0 %v7155
      %7582 = vmatprep.subr.bf16.mxu0 0
      %7583 = vmatpush1.bf16.msra.mxu0 %v7156
      %7584 = vmatprep.subr.bf16.mxu0 0
      %7585 = vmatpush1.bf16.msra.mxu0 %v7157
      %7586 = vmatprep.subr.bf16.mxu0 0
      %7587 = vmatpush1.bf16.msra.mxu0 %v7158
      %7588 = vmatprep.subr.bf16.mxu0 0
      %7589 = vmatpush1.bf16.msra.mxu0 %v7159
      %7590 = vmatprep.subr.bf16.mxu0 0
      %7591 = vmatpush1.bf16.msra.mxu0 %v7160
      %7592 = vmatprep.subr.bf16.mxu0 0
      %7593 = vmatpush1.bf16.msra.mxu0 %v7161
      %7594 = vmatprep.subr.bf16.mxu0 0
      %7595 = vmatpush1.bf16.msra.mxu0 %v7162
      %7596 = vmatprep.subr.bf16.mxu0 0
      %7597 = vmatpush1.bf16.msra.mxu0 %v7163
      %7598 = vmatprep.subr.bf16.mxu0 0
      %7599 = vmatpush1.bf16.msra.mxu0 %v7164
      %7600 = vmatprep.subr.bf16.mxu0 0
      %7601 = vmatpush1.bf16.msra.mxu0 %v7165
      %7602 = vmatprep.subr.bf16.mxu0 0
      %7603 = vmatpush1.bf16.msra.mxu0 %v7166
      %7604 = vmatprep.subr.bf16.mxu0 0
      %7605 = vmatpush1.bf16.msra.mxu0 %v7167
      %7606 = vmatprep.subr.bf16.mxu0 0
      %7607 = vmatpush1.bf16.msra.mxu0 %v7168
      %7608 = vmatprep.subr.bf16.mxu0 0
      %7609 = vmatpush1.bf16.msra.mxu0 %v7169
      %7610 = vmatprep.mubr.bf16.mxu0 %v6513
      %7611 = vmatmul.mubr.bf16.gmra.mrb[0].mxu0 %v6512
      %v7612 = vpop.f32.mrb[0].mxu0
      %v7613 = vadd.f32 %v7573, %v7612
      %v7614 = vpop.f32.mrb[0].mxu0
      %v7615 = vpop.f32.mrb[0].mxu0
      %v7616 = vpop.f32.mrb[0].mxu0
      %7617 = vdwg.mxu0
      %7618 = vst [vmem:[%s195 + $0x3] sm:$0x1] %v7613
      %p7619 = scmp.lt.s32.totalorder %s15, 3
      %s7620 = scalar_select %p7619, %s15, 3
      %s7621 = smul.addr %s7620, 4
      %s7622 = scalar_lea.vmem %s4, %s7621
      // Predicated region
      $region37: #{cpb_forward.1} parent=35 // pred_check
        %p7623 = pneg %p122
      $region38: #{cpb_forward.1} parent=35 // pred_check_branch
        %7625 = sbr.rel (%p7623) target = $region40
      $region39: #{cpb_forward.1} parent=35 // pred_region
        _
      $region40: #{cpb_forward.1} parent=35 // pred_fallthru
        _
    $region36: #{cpb_forward.1} parent=5 // pred_fallthru
      _
    %p7626 = scmp.le.s32.totalorder 2, %s10
    // Predicated region
    $region41: #{cpb_forward.1} parent=5 // pred_check
      %p7627 = pneg %p7626
    $region42: #{cpb_forward.1} parent=5 // pred_check_branch
      %7629 = sbr.rel (%p7627) target = $region44
    $region43: #{cpb_forward.1} parent=5 // pred_region
      %s7630 = ssub.s32 %s10, 2
      // Predicated region
      $region45: #{cpb_forward.1} parent=43 // pred_check
        %p7631 = pneg %p128
      $region46: #{cpb_forward.1} parent=43 // pred_check_branch
        %7633 = sbr.rel (%p7631) target = $region48
      $region47: #{cpb_forward.1} parent=43 // pred_region
        %p7634 = scmp.lt.s32.totalorder %s16, 3
        %s7635 = scalar_select %p7634, %s16, 3
        %s7636 = smul.addr %s7635, 4
        %s7637 = scalar_lea.vmem %s4, %s7636
      $region48: #{cpb_forward.1} parent=43 // pred_fallthru
        _
    $region44: #{cpb_forward.1} parent=5 // pred_fallthru
      _
  $region6: #{cpb_forward.1} parent=0 // loop_footer
    %s14 = sadd.s32 1, %s10
  $region7: #{cpb_forward.1} parent=0 // loop_footer_branch
    %9 = sbr.rel target = $region3
  $region8: #{cpb_forward.1} parent=0 // loop_exit
    _

</llo_original>
